<compile_context>
chip_gen: v5e
topology: v5e:2x2
jax: 0.10.0
libtpu: 0.0.40
codegen_flags: <defaults>
</compile_context>

<pallas_src>
import functools

import jax
import jax.numpy as jnp
import numpy as np
from jax.experimental import pallas as pl
from jax.experimental.pallas import tpu as pltpu

LANE = 128
COL_OFF = 8            # sublane-aligned column offset of the interior in xpad


def _round_up(x: int, m: int) -> int:
    return (x + m - 1) // m * m


def _default_block_k() -> int:
    """Reduction block: 256 matches the v6e/v7x MXU depth; 128 for v4/v5."""
    try:
        kind = jax.devices()[0].device_kind.lower()
    except Exception:  # pragma: no cover - defensive
        kind = ""
    return 256 if ("v6" in kind or "v7" in kind) else 128


def _fcn_head_kernel(x_ref, w3_ref, b3_ref, w1_ref, b1_ref, o_ref,
                     xpad_ref, acc_ref, *, ck, w3_resident, compute_dtype):
    """One (image, C_in-block) step of the fused FCNHead."""
    k = pl.program_id(1)
    nk = pl.num_programs(1)
    _, H, W, _ = x_ref.shape
    c_mid_p = acc_ref.shape[-1]

    @pl.when(k == 0)
    def _init():
        # Zero halo border (stays zero; the interior is overwritten below)
        # and the f32 accumulator for this image.
        xpad_ref[...] = jnp.zeros_like(xpad_ref)
        acc_ref[...] = jnp.zeros_like(acc_ref)

    # In-kernel spatial halo: store the unpadded activation block into the
    # zero-bordered VMEM scratch (row offset 1, column offset 8 -> the store is
    # sublane-aligned).  No padded copy of x ever touches HBM.
    xpad_ref[1:H + 1, COL_OFF:COL_OFF + W, :] = x_ref[0].astype(compute_dtype)

    # Build the dx-grouped patch slab ONCE per grid step:
    # columns [dx=0 | dx=1 | dx=2] concatenated along the (lane) channel axis.
    left = xpad_ref[:, COL_OFF - 1:COL_OFF - 1 + W, :]      # (H+2, W, ck)
    center = xpad_ref[:, COL_OFF:COL_OFF + W, :]            # (H+2, W, ck)
    right = xpad_ref[:, COL_OFF + 1:COL_OFF + 1 + W, :]     # (H+2, W, ck)
    patch3 = jnp.concatenate([left, center, right], axis=-1)  # (H+2, W, 3*ck)

    # 3 K-grouped matmuls (K = 3*ck) instead of 9 K=ck matmuls.
    acc = acc_ref[...]
    for dy in range(3):
        if w3_resident:
            off = pl.multiple_of(k * ck, ck)
            w_dy = w3_ref[dy, :, pl.ds(off, ck), :]          # (3, ck, c_mid_p)
        else:
            w_dy = w3_ref[dy]                                # (3, ck, c_mid_p)
        patch = patch3[dy:dy + H].reshape(H * W, 3 * ck)
        acc = acc + jnp.dot(patch, w_dy.reshape(3 * ck, c_mid_p),
                            preferred_element_type=jnp.float32)
    acc_ref[...] = acc

    @pl.when(k == nk - 1)
    def _epilogue():
        # Folded BatchNorm shift + ReLU (BN scale is folded into w3).
        h = jnp.maximum(acc_ref[...] + b3_ref[...], 0.0)
        # Dropout: identity at inference time.
        # TODO(synk): training-mode dropout (random mask) is not implemented.
        y = jnp.dot(h.astype(w1_ref.dtype), w1_ref[...],
                    preferred_element_type=jnp.float32)
        y = y + b1_ref[...]
        o_ref[...] = y.reshape(1, H, W, -1).astype(o_ref.dtype)


def fcn_head_forward_nhwc(x_nhwc, w3_oihw, bn_gamma, bn_beta, bn_mean, bn_var,
                          w1_oihw, b1, *, eps=1e-5, compute_dtype=None,
                          out_dtype=None, block_k=None, w3_resident=None):
    """Fused FCNHead on an NHWC activation.  Returns NHWC output (unpadded C)."""
    n, h, w, c_in = x_nhwc.shape
    c_mid = w3_oihw.shape[0]
    c_out = w1_oihw.shape[0]
    assert w3_oihw.shape == (c_mid, c_in, 3, 3)
    assert w1_oihw.shape == (c_out, c_mid, 1, 1)

    compute_dtype = compute_dtype or jnp.bfloat16      # bf16 MXU inputs by default
    out_dtype = out_dtype or x_nhwc.dtype
    cbytes = jnp.dtype(compute_dtype).itemsize
    xbytes = jnp.dtype(x_nhwc.dtype).itemsize
    obytes = jnp.dtype(out_dtype).itemsize

    # ---- fold BatchNorm (eval mode) into the 3x3 conv -----------------------
    scale = (bn_gamma / jnp.sqrt(bn_var + eps)).astype(jnp.float32)   # (c_mid,)
    shift = (bn_beta - bn_mean * scale).astype(jnp.float32)           # (c_mid,)
    # (c_mid, c_in, 3, 3) -> (ky, kx, c_in, c_mid), BN scale folded in.
    w3 = jnp.transpose(w3_oihw, (2, 3, 1, 0)).astype(jnp.float32) * scale
    w1 = jnp.transpose(w1_oihw[:, :, 0, 0], (1, 0)).astype(jnp.float32)

    # ---- channel padding / reduction blocking (lane-dense blocks) -----------
    c_in_p = c_in if c_in < LANE else _round_up(c_in, LANE)
    block_k = block_k or _default_block_k()
    if c_in_p % block_k == 0:
        ck = block_k
    elif c_in_p % LANE == 0:
        ck = LANE
    else:
        ck = c_in_p                      # c_in < 128: single full-extent block
    n_k = c_in_p // ck
    c_mid_p = _round_up(c_mid, LANE)
    c_out_p = _round_up(c_out, LANE)

    # Only channel padding if needed; the spatial halo is built in-kernel.
    x_in = x_nhwc if c_in_p == c_in else jnp.pad(
        x_nhwc, ((0, 0), (0, 0), (0, 0), (0, c_in_p - c_in)))
    w3_p = jnp.pad(w3, ((0, 0), (0, 0), (0, c_in_p - c_in),
                        (0, c_mid_p - c_mid))).astype(compute_dtype)
    w1_p = jnp.pad(w1, ((0, c_mid_p - c_mid),
                        (0, c_out_p - c_out))).astype(compute_dtype)
    b3_p = jnp.pad(shift, (0, c_mid_p - c_mid)).reshape(1, c_mid_p)
    b1_p = jnp.pad(b1.astype(jnp.float32), (0, c_out_p - c_out)).reshape(1, c_out_p)

    # ---- VMEM budget: resident-w3 decision + explicit vmem_limit_bytes ------
    hp, wpad = h + 2, w + COL_OFF + 1
    acc_bytes = h * w * c_mid_p * 4
    xpad_bytes = hp * wpad * ck * cbytes
    x_blk_bytes = 2 * h * w * ck * xbytes                 # double-buffered input
    out_blk_bytes = 2 * h * w * c_out_p * obytes
    w1_bytes = 2 * c_mid_p * c_out_p * cbytes + 2 * (c_mid_p + c_out_p) * 4
    tmp_bytes = ((3 * hp * w * ck + hp * w * 3 * ck + h * w * 3 * ck) * cbytes
                 + h * w * c_mid_p * 4 + h * w * c_out_p * 4)
    w3_res_bytes = 2 * 9 * c_in_p * c_mid_p * cbytes
    w3_blk_bytes = 2 * 9 * ck * c_mid_p * cbytes
    base = (acc_bytes + xpad_bytes + x_blk_bytes + out_blk_bytes
            + w1_bytes + tmp_bytes)
    if w3_resident is None:
        w3_resident = (n_k > 1) and (base + w3_res_bytes) <= (40 << 20)
    w3_resident = bool(w3_resident) and n_k > 1
    need = base + (w3_res_bytes if w3_resident else w3_blk_bytes)
    vmem_limit = int(min(max(int(need * 1.4) + (2 << 20), 24 << 20), 64 << 20))

    if w3_resident:
        # Constant index_map -> fetched from HBM once, stays resident in VMEM.
        w3_spec = pl.BlockSpec((3, 3, c_in_p, c_mid_p), lambda i, k: (0, 0, 0, 0))
    else:
        w3_spec = pl.BlockSpec((3, 3, ck, c_mid_p), lambda i, k: (0, 0, k, 0))

    kernel = functools.partial(_fcn_head_kernel, ck=ck,
                               w3_resident=w3_resident,
                               compute_dtype=compute_dtype)

    out = pl.pallas_call(
        kernel,
        out_shape=jax.ShapeDtypeStruct((n, h, w, c_out_p), out_dtype),
        grid_spec=pltpu.PrefetchScalarGridSpec(
            num_scalar_prefetch=0,
            grid=(n, n_k),
            in_specs=[
                # Activation: one image, one C_in block (NO spatial halo here).
                pl.BlockSpec((1, h, w, ck), lambda i, k: (i, 0, 0, k)),
                # Folded 3x3 weight (resident or streamed per C_in block).
                w3_spec,
                # Folded BN shift (bias of the 3x3 conv), f32.
                pl.BlockSpec((1, c_mid_p), lambda i, k: (0, 0)),
                # 1x1 classifier weight / bias (kept resident).
                pl.BlockSpec((c_mid_p, c_out_p), lambda i, k: (0, 0)),
                pl.BlockSpec((1, c_out_p), lambda i, k: (0, 0)),
            ],
            # Invariant along k -> the output tile stays resident across the
            # C_in reduction and is written once (lane-dense: c_out_p % 128 == 0).
            out_specs=pl.BlockSpec((1, h, w, c_out_p), lambda i, k: (i, 0, 0, 0)),
            scratch_shapes=[
                # Zero-bordered padded activation tile (spatial halo in VMEM).
                pltpu.VMEM((hp, wpad, ck), compute_dtype),
                # f32 accumulator for the C_mid intermediate (never hits HBM).
                pltpu.VMEM((h * w, c_mid_p), jnp.float32),
            ],
        ),
        compiler_params=pltpu.CompilerParams(
            dimension_semantics=("parallel", "arbitrary"),
            vmem_limit_bytes=vmem_limit,
        ),
    )(x_in, w3_p, b3_p, w1_p, b1_p)

    return out[..., :c_out]           # drop the lane padding of the class dim


def fcn_head_forward(x_nchw, w3_oihw, bn_gamma, bn_beta, bn_mean, bn_var,
                     w1_oihw, b1, *, eps=1e-5, compute_dtype=None,
                     out_dtype=None, block_k=None, w3_resident=None):
    """NCHW wrapper matching the PyTorch module interface.

    NOTE: for production, feed NHWC activations to `fcn_head_forward_nhwc`
    directly and skip both boundary transposes.
    """
    x_nhwc = jnp.transpose(x_nchw, (0, 2, 3, 1))
    y = fcn_head_forward_nhwc(x_nhwc, w3_oihw, bn_gamma, bn_beta, bn_mean,
                              bn_var, w1_oihw, b1, eps=eps,
                              compute_dtype=compute_dtype, out_dtype=out_dtype,
                              block_k=block_k, w3_resident=w3_resident)
    return jnp.transpose(y, (0, 3, 1, 2))


def fcn_head_reference(x_nchw, w3_oihw, bn_gamma, bn_beta, bn_mean, bn_var,
                       w1_oihw, b1, *, eps=1e-5):
    """Pure-JAX reference (eval-mode FCNHead) for correctness checking."""
    y = jax.lax.conv_general_dilated(
        x_nchw, w3_oihw, window_strides=(1, 1), padding=((1, 1), (1, 1)),
        dimension_numbers=("NCHW", "OIHW", "NCHW"))
    scale = bn_gamma / jnp.sqrt(bn_var + eps)
    shift = bn_beta - bn_mean * scale
    y = y * scale[None, :, None, None] + shift[None, :, None, None]
    y = jnp.maximum(y, 0.0)
    # Dropout: identity in eval mode.
    y = jax.lax.conv_general_dilated(
        y, w1_oihw, window_strides=(1, 1), padding="VALID",
        dimension_numbers=("NCHW", "OIHW", "NCHW"))
    return y + b1[None, :, None, None]


if __name__ == "__main__":
    # Small but representative shapes: C_IN a multiple of 128 so the C_in
    # reduction axis has >1 step on every chip generation (ck=128 or 256).
    N, C_IN, H, W = 2, 512, 16, 16
    C_MID = C_IN // 4          # 128  (inter_channel = in_channel // 4)
    C_OUT = 21                 # e.g. Pascal-VOC classes

    key = jax.random.PRNGKey(0)
    ks = jax.random.split(key, 8)
    x = jax.random.normal(ks[0], (N, C_IN, H, W), jnp.float32)
    w3 = jax.random.normal(ks[1], (C_MID, C_IN, 3, 3), jnp.float32) / np.sqrt(9 * C_IN)
    gamma = 1.0 + 0.1 * jax.random.normal(ks[2], (C_MID,), jnp.float32)
    beta = 0.1 * jax.random.normal(ks[3], (C_MID,), jnp.float32)
    mean = 0.1 * jax.random.normal(ks[4], (C_MID,), jnp.float32)
    var = jnp.abs(1.0 + 0.1 * jax.random.normal(ks[5], (C_MID,), jnp.float32))
    w1 = jax.random.normal(ks[6], (C_OUT, C_MID, 1, 1), jnp.float32) / np.sqrt(C_MID)
    b1 = 0.1 * jax.random.normal(ks[7], (C_OUT,), jnp.float32)

    y_ref = jax.block_until_ready(
        fcn_head_reference(x, w3, gamma, beta, mean, var, w1, b1))

    # Default path: bf16 MXU inputs, f32 accumulation, auto (resident) w3.
    y = jax.block_until_ready(
        fcn_head_forward(x, w3, gamma, beta, mean, var, w1, b1))
    assert y.shape == (N, C_OUT, H, W), y.shape
    np.testing.assert_allclose(np.asarray(y), np.asarray(y_ref),
                               rtol=3e-2, atol=6e-2)

    # f32-compute / streamed-weight path (covers the non-resident BlockSpec).
    y32 = jax.block_until_ready(
        fcn_head_forward(x, w3, gamma, beta, mean, var, w1, b1,
                         compute_dtype=jnp.float32, w3_resident=False))
    np.testing.assert_allclose(np.asarray(y32), np.asarray(y_ref),
                               rtol=3e-2, atol=3e-2)

    print("KERNEL_OK")
</pallas_src>

<mosaic_0001>
module attributes {stable_mosaic.version = 11 : i64} {
  func.func @_fcn_head_kernel(%arg0: i32, %arg1: i32, %arg2: memref<1x16x16x128xf32, #tpu.memory_space<vmem>>, %arg3: memref<3x3x512x128xbf16, #tpu.memory_space<vmem>>, %arg4: memref<1x128xf32, #tpu.memory_space<vmem>>, %arg5: memref<128x128xbf16, #tpu.memory_space<vmem>>, %arg6: memref<1x128xf32, #tpu.memory_space<vmem>>, %arg7: memref<1x16x16x128xf32, #tpu.memory_space<vmem>>, %arg8: memref<18x25x128xbf16, #tpu.memory_space<vmem>>, %arg9: memref<256x128xf32, #tpu.memory_space<vmem>>) attributes {dimension_semantics = [#tpu.dimension_semantics<parallel>, #tpu.dimension_semantics<arbitrary>], iteration_bounds = array<i64: 2, 4>, scalar_prefetch = 0 : i64, scratch_operands = 2 : i64, tpu.core_type = #tpu.core_type<tc>, window_params = [{transform_indices = @transform_0, window_bounds = array<i64: 1, 16, 16, 128>}, {pipeline_mode = #tpu.pipeline_mode<synchronous>, transform_indices = @transform_1, window_bounds = array<i64: 3, 3, 512, 128>}, {pipeline_mode = #tpu.pipeline_mode<synchronous>, transform_indices = @transform_2, window_bounds = array<i64: 1, 128>}, {pipeline_mode = #tpu.pipeline_mode<synchronous>, transform_indices = @transform_3, window_bounds = array<i64: 128, 128>}, {pipeline_mode = #tpu.pipeline_mode<synchronous>, transform_indices = @transform_4, window_bounds = array<i64: 1, 128>}, {transform_indices = @transform_5, window_bounds = array<i64: 1, 16, 16, 128>}]} {
    %c0_i32 = arith.constant 0 : i32
    %0 = arith.cmpi eq, %arg1, %c0_i32 : i32
    %1 = arith.extui %0 : i1 to i32
    %c0_i32_0 = arith.constant 0 : i32
    %2 = arith.cmpi ne, %1, %c0_i32_0 : i32
    scf.if %2 {
      %cst_29 = arith.constant 0.000000e+00 : bf16
      %46 = vector.broadcast %cst_29 : bf16 to vector<18x25x128xbf16>
      %c0_30 = arith.constant 0 : index
      %c0_31 = arith.constant 0 : index
      %c0_32 = arith.constant 0 : index
      %47 = vector.load %arg8[%c0_30, %c0_31, %c0_32] : memref<18x25x128xbf16, #tpu.memory_space<vmem>>, vector<18x25x128xbf16>
      tpu.vector_store %arg8[%c0_30, %c0_31, %c0_32], %46 {strides = array<i32>} : memref<18x25x128xbf16, #tpu.memory_space<vmem>>, vector<18x25x128xbf16>,
      %cst_33 = arith.constant 0.000000e+00 : f32
      %48 = vector.broadcast %cst_33 : f32 to vector<256x128xf32>
      %c0_34 = arith.constant 0 : index
      %c0_35 = arith.constant 0 : index
      %49 = vector.load %arg9[%c0_34, %c0_35] : memref<256x128xf32, #tpu.memory_space<vmem>>, vector<256x128xf32>
      tpu.vector_store %arg9[%c0_34, %c0_35], %48 {strides = array<i32>} : memref<256x128xf32, #tpu.memory_space<vmem>>, vector<256x128xf32>,
    } else {
    }
    %c0 = arith.constant 0 : index
    %c0_1 = arith.constant 0 : index
    %c0_2 = arith.constant 0 : index
    %c0_3 = arith.constant 0 : index
    %3 = vector.load %arg2[%c0, %c0_1, %c0_2, %c0_3] : memref<1x16x16x128xf32, #tpu.memory_space<vmem>>, vector<1x16x16x128xf32>
    %4 = vector.shape_cast %3 : vector<1x16x16x128xf32> to vector<16x16x128xf32>
    %5 = arith.truncf %4 : vector<16x16x128xf32> to vector<16x16x128xbf16>
    %c1 = arith.constant 1 : index
    %c8 = arith.constant 8 : index
    %c0_4 = arith.constant 0 : index
    %6 = vector.load %arg8[%c1, %c8, %c0_4] : memref<18x25x128xbf16, #tpu.memory_space<vmem>>, vector<16x16x128xbf16>
    tpu.vector_store %arg8[%c1, %c8, %c0_4], %5 {strides = array<i32>} : memref<18x25x128xbf16, #tpu.memory_space<vmem>>, vector<16x16x128xbf16>,
    %c0_5 = arith.constant 0 : index
    %c7 = arith.constant 7 : index
    %c0_6 = arith.constant 0 : index
    %7 = vector.load %arg8[%c0_5, %c7, %c0_6] : memref<18x25x128xbf16, #tpu.memory_space<vmem>>, vector<18x16x128xbf16>
    %c0_7 = arith.constant 0 : index
    %c8_8 = arith.constant 8 : index
    %c0_9 = arith.constant 0 : index
    %8 = vector.load %arg8[%c0_7, %c8_8, %c0_9] : memref<18x25x128xbf16, #tpu.memory_space<vmem>>, vector<18x16x128xbf16>
    %c0_10 = arith.constant 0 : index
    %c9 = arith.constant 9 : index
    %c0_11 = arith.constant 0 : index
    %9 = vector.load %arg8[%c0_10, %c9, %c0_11] : memref<18x25x128xbf16, #tpu.memory_space<vmem>>, vector<18x16x128xbf16>
    %10 = tpu.concatenate %7, %8, %9 in 2 : vector<18x16x128xbf16>, vector<18x16x128xbf16>, vector<18x16x128xbf16> -> vector<18x16x384xbf16>
    %c0_12 = arith.constant 0 : index
    %c0_13 = arith.constant 0 : index
    %11 = vector.load %arg9[%c0_12, %c0_13] : memref<256x128xf32, #tpu.memory_space<vmem>>, vector<256x128xf32>
    %c128_i32 = arith.constant 128 : i32
    %12 = arith.muli %arg1, %c128_i32 : i32
    %13 = tpu.assume_multiple %12, 128 : i32
    %c0_14 = arith.constant 0 : index
    %c0_15 = arith.constant 0 : index
    %14 = arith.index_cast %13 : i32 to index
    %c0_16 = arith.constant 0 : index
    %15 = vector.load %arg3[%c0_14, %c0_15, %14, %c0_16] : memref<3x3x512x128xbf16, #tpu.memory_space<vmem>>, vector<1x3x128x128xbf16>
    %16 = vector.shape_cast %15 : vector<1x3x128x128xbf16> to vector<3x128x128xbf16>
    %17 = vector.extract_strided_slice %10 {offsets = [0, 0, 0], sizes = [16, 16, 384], strides = [1, 1, 1]} : vector<18x16x384xbf16> to vector<16x16x384xbf16>
    %18 = vector.shape_cast %17 : vector<16x16x384xbf16> to vector<256x384xbf16>
    %19 = vector.shape_cast %16 : vector<3x128x128xbf16> to vector<384x128xbf16>
    %cst = arith.constant dense<0.000000e+00> : vector<256x128xf32>
    %20 = tpu.matmul %18, %19, %cst {dimension_numbers = #tpu.dot_dimension_numbers<[1], [0], [0], [1], [0, 0, 1, 1], [], []>} : vector<256x384xbf16>, vector<384x128xbf16>, vector<256x128xf32> -> vector<256x128xf32>
    %21 = arith.addf %11, %20 : vector<256x128xf32>
    %c128_i32_17 = arith.constant 128 : i32
    %22 = arith.muli %arg1, %c128_i32_17 : i32
    %23 = tpu.assume_multiple %22, 128 : i32
    %c1_18 = arith.constant 1 : index
    %c0_19 = arith.constant 0 : index
    %24 = arith.index_cast %23 : i32 to index
    %c0_20 = arith.constant 0 : index
    %25 = vector.load %arg3[%c1_18, %c0_19, %24, %c0_20] : memref<3x3x512x128xbf16, #tpu.memory_space<vmem>>, vector<1x3x128x128xbf16>
    %26 = vector.shape_cast %25 : vector<1x3x128x128xbf16> to vector<3x128x128xbf16>
    %27 = vector.extract_strided_slice %10 {offsets = [1, 0, 0], sizes = [16, 16, 384], strides = [1, 1, 1]} : vector<18x16x384xbf16> to vector<16x16x384xbf16>
    %28 = vector.shape_cast %27 : vector<16x16x384xbf16> to vector<256x384xbf16>
    %29 = vector.shape_cast %26 : vector<3x128x128xbf16> to vector<384x128xbf16>
    %cst_21 = arith.constant dense<0.000000e+00> : vector<256x128xf32>
    %30 = tpu.matmul %28, %29, %cst_21 {dimension_numbers = #tpu.dot_dimension_numbers<[1], [0], [0], [1], [0, 0, 1, 1], [], []>} : vector<256x384xbf16>, vector<384x128xbf16>, vector<256x128xf32> -> vector<256x128xf32>
    %31 = arith.addf %21, %30 : vector<256x128xf32>
    %c128_i32_22 = arith.constant 128 : i32
    %32 = arith.muli %arg1, %c128_i32_22 : i32
    %33 = tpu.assume_multiple %32, 128 : i32
    %c2 = arith.constant 2 : index
    %c0_23 = arith.constant 0 : index
    %34 = arith.index_cast %33 : i32 to index
    %c0_24 = arith.constant 0 : index
    %35 = vector.load %arg3[%c2, %c0_23, %34, %c0_24] : memref<3x3x512x128xbf16, #tpu.memory_space<vmem>>, vector<1x3x128x128xbf16>
    %36 = vector.shape_cast %35 : vector<1x3x128x128xbf16> to vector<3x128x128xbf16>
    %37 = vector.extract_strided_slice %10 {offsets = [2, 0, 0], sizes = [16, 16, 384], strides = [1, 1, 1]} : vector<18x16x384xbf16> to vector<16x16x384xbf16>
    %38 = vector.shape_cast %37 : vector<16x16x384xbf16> to vector<256x384xbf16>
    %39 = vector.shape_cast %36 : vector<3x128x128xbf16> to vector<384x128xbf16>
    %cst_25 = arith.constant dense<0.000000e+00> : vector<256x128xf32>
    %40 = tpu.matmul %38, %39, %cst_25 {dimension_numbers = #tpu.dot_dimension_numbers<[1], [0], [0], [1], [0, 0, 1, 1], [], []>} : vector<256x384xbf16>, vector<384x128xbf16>, vector<256x128xf32> -> vector<256x128xf32>
    %41 = arith.addf %31, %40 : vector<256x128xf32>
    %c0_26 = arith.constant 0 : index
    %c0_27 = arith.constant 0 : index
    %42 = vector.load %arg9[%c0_26, %c0_27] : memref<256x128xf32, #tpu.memory_space<vmem>>, vector<256x128xf32>
    tpu.vector_store %arg9[%c0_26, %c0_27], %41 {strides = array<i32>} : memref<256x128xf32, #tpu.memory_space<vmem>>, vector<256x128xf32>,
    %c3_i32 = arith.constant 3 : i32
    %43 = arith.cmpi eq, %arg1, %c3_i32 : i32
    %44 = arith.extui %43 : i1 to i32
    %c0_i32_28 = arith.constant 0 : i32
    %45 = arith.cmpi ne, %44, %c0_i32_28 : i32
    scf.if %45 {
      %c0_29 = arith.constant 0 : index
      %c0_30 = arith.constant 0 : index
      %46 = vector.load %arg9[%c0_29, %c0_30] : memref<256x128xf32, #tpu.memory_space<vmem>>, vector<256x128xf32>
      %c0_31 = arith.constant 0 : index
      %c0_32 = arith.constant 0 : index
      %47 = vector.load %arg4[%c0_31, %c0_32] : memref<1x128xf32, #tpu.memory_space<vmem>>, vector<1x128xf32>
      %48 = vector.broadcast %47 : vector<1x128xf32> to vector<256x128xf32>
      %49 = arith.addf %46, %48 : vector<256x128xf32>
      %cst_33 = arith.constant 0.000000e+00 : f32
      %50 = vector.broadcast %cst_33 : f32 to vector<256x128xf32>
      %51 = arith.maximumf %49, %50 : vector<256x128xf32>
      %52 = arith.truncf %51 : vector<256x128xf32> to vector<256x128xbf16>
      %c0_34 = arith.constant 0 : index
      %c0_35 = arith.constant 0 : index
      %53 = vector.load %arg5[%c0_34, %c0_35] : memref<128x128xbf16, #tpu.memory_space<vmem>>, vector<128x128xbf16>
      %cst_36 = arith.constant dense<0.000000e+00> : vector<256x128xf32>
      %54 = tpu.matmul %52, %53, %cst_36 {dimension_numbers = #tpu.dot_dimension_numbers<[1], [0], [0], [1], [0, 0, 1, 1], [], []>} : vector<256x128xbf16>, vector<128x128xbf16>, vector<256x128xf32> -> vector<256x128xf32>
      %c0_37 = arith.constant 0 : index
      %c0_38 = arith.constant 0 : index
      %55 = vector.load %arg6[%c0_37, %c0_38] : memref<1x128xf32, #tpu.memory_space<vmem>>, vector<1x128xf32>
      %56 = vector.broadcast %55 : vector<1x128xf32> to vector<256x128xf32>
      %57 = arith.addf %54, %56 : vector<256x128xf32>
      %58 = vector.shape_cast %57 : vector<256x128xf32> to vector<1x16x16x128xf32>
      %c0_39 = arith.constant 0 : index
      %c0_40 = arith.constant 0 : index
      %c0_41 = arith.constant 0 : index
      %c0_42 = arith.constant 0 : index
      %59 = vector.load %arg7[%c0_39, %c0_40, %c0_41, %c0_42] : memref<1x16x16x128xf32, #tpu.memory_space<vmem>>, vector<1x16x16x128xf32>
      tpu.vector_store %arg7[%c0_39, %c0_40, %c0_41, %c0_42], %58 {strides = array<i32>} : memref<1x16x16x128xf32, #tpu.memory_space<vmem>>, vector<1x16x16x128xf32>,
    } else {
    }
    return
  }
  func.func @transform_0(%arg0: i32, %arg1: i32) -> (i32, i32, i32, i32) {
    %c0_i32 = arith.constant 0 : i32
    %c0_i32_0 = arith.constant 0 : i32
    %c0_i32_1 = arith.constant 0 : i32
    return %arg0, %c0_i32, %c0_i32_0, %arg1 : i32, i32, i32, i32
  }
  func.func @transform_1(%arg0: i32, %arg1: i32) -> (i32, i32, i32, i32) {
    %c0_i32 = arith.constant 0 : i32
    %c0_i32_0 = arith.constant 0 : i32
    %c0_i32_1 = arith.constant 0 : i32
    %c0_i32_2 = arith.constant 0 : i32
    %c0_i32_3 = arith.constant 0 : i32
    return %c0_i32, %c0_i32_0, %c0_i32_1, %c0_i32_2 : i32, i32, i32, i32
  }
  func.func @transform_2(%arg0: i32, %arg1: i32) -> (i32, i32) {
    %c0_i32 = arith.constant 0 : i32
    %c0_i32_0 = arith.constant 0 : i32
    %c0_i32_1 = arith.constant 0 : i32
    return %c0_i32, %c0_i32_0 : i32, i32
  }
  func.func @transform_3(%arg0: i32, %arg1: i32) -> (i32, i32) {
    %c0_i32 = arith.constant 0 : i32
    %c0_i32_0 = arith.constant 0 : i32
    %c0_i32_1 = arith.constant 0 : i32
    return %c0_i32, %c0_i32_0 : i32, i32
  }
  func.func @transform_4(%arg0: i32, %arg1: i32) -> (i32, i32) {
    %c0_i32 = arith.constant 0 : i32
    %c0_i32_0 = arith.constant 0 : i32
    %c0_i32_1 = arith.constant 0 : i32
    return %c0_i32, %c0_i32_0 : i32, i32
  }
  func.func @transform_5(%arg0: i32, %arg1: i32) -> (i32, i32, i32, i32) {
    %c0_i32 = arith.constant 0 : i32
    %c0_i32_0 = arith.constant 0 : i32
    %c0_i32_1 = arith.constant 0 : i32
    %c0_i32_2 = arith.constant 0 : i32
    return %arg0, %c0_i32, %c0_i32_0, %c0_i32_1 : i32, i32, i32, i32
  }
}

</mosaic_0001>

<llo_original>
// kernel: tpu_custom_call.1
$region0: #{tpu_custom_call.1}
  #allocation0 [shape = 'u32[]', space=smem, size = 0x4, offset = 0x4, fixed_abs, tag = 'smem constant byte address 0x4 - core index']
  #allocation1 [shape = 'u32[72,128]{1,0:T(1,128)}', space=vmem, size = 0x9000, scoped, tag = 'internal scratch']
  #allocation2 [shape = 'bf16[18,25,128]{2,1,0:T(8,128)(2,1)}', space=vmem, size = 0x24000, scoped, tag = 'scratch operand']
  #allocation3 [shape = 'f32[256,128]{1,0:T(8,128)}', space=vmem, size = 0x20000, scoped, tag = 'scratch operand']
  %s0 = inlined_call_operand.hbm [shape: f32[2,16,16,512], index: 0, kind: input, shape index: {}]
  %s1 = inlined_call_operand.hbm [shape: bf16[3,3,512,128], index: 1, kind: input, shape index: {}]
  %s2 = inlined_call_operand.hbm [shape: f32[1,128], index: 2, kind: input, shape index: {}]
  %s3 = inlined_call_operand.hbm [shape: bf16[128,128], index: 3, kind: input, shape index: {}]
  %s4 = inlined_call_operand.hbm [shape: f32[1,128], index: 4, kind: input, shape index: {}]
  %s5 = inlined_call_operand.hbm [shape: f32[2,16,16,128], index: 5, kind: output, shape index: {}]
  %s6 = sld [smem:[#allocation0]]
  $region81: #{tpu_custom_call.1} parent=0
    _
  %s8 = ssub.s32 1, %s6
  %s9 = scalar_select 0, %s8, %s6
  $region1: #{tpu_custom_call.1} parent=0
    #allocation4 [shape = 'u8[262144]{0}', space=vmem, size = 0x40000, scoped, tag = 'input window, operand 0']
    #allocation5 [shape = 's32[2]{0}', space=sflag, size = 0x8, scoped, tag = 'scoped memory for tpu_custom_call.1']
    #allocation6 [shape = 's32[2]{0}', space=sflag, size = 0x8, scoped, tag = 'scoped memory for tpu_custom_call.1']
    #allocation7 [shape = 'u8[1179648]{0}', space=vmem, size = 0x120000, scoped, tag = 'input window, operand 1, single buffered']
    #allocation8 [shape = 's32[1]{0}', space=sflag, size = 0x4, scoped, tag = 'scoped memory for tpu_custom_call.1']
    #allocation9 [shape = 'u8[512]{0}', space=vmem, size = 0x400, scoped, tag = 'input window, operand 2, single buffered']
    #allocation10 [shape = 'u8[32768]{0}', space=vmem, size = 0x8000, scoped, tag = 'input window, operand 3, single buffered']
    #allocation11 [shape = 's32[1]{0}', space=sflag, size = 0x4, scoped, tag = 'scoped memory for tpu_custom_call.1']
    #allocation12 [shape = 'u8[512]{0}', space=vmem, size = 0x400, scoped, tag = 'input window, operand 4, single buffered']
    #allocation13 [shape = 'u8[262144]{0}', space=vmem, size = 0x40000, scoped, tag = 'output window, operand 0']
    %10 = vsyncpa [#allocation5], 0
    %s11 = scalar_lea.sflag [#allocation5], 1
    %12 = vsyncpa %s11, 0
    %13 = vsyncpa [#allocation8], 0
    %14 = vsyncpa [#allocation11], 0
    %15 = vsyncpa [#allocation6], 0
    %s16 = scalar_lea.sflag [#allocation6], 1
    %17 = vsyncpa %s16, 0
    loop: start=0, step=1, limit=10
    $region2: #{tpu_custom_call.1} parent=1 // loop_pre_header
      _
    $region3: #{tpu_custom_call.1} parent=1 // loop_header
      %s19 = sphi 0, %s23
      %p20 = scmp.ge.s32.totalorder %s19, 10
      %s26 = sphi 0, %s38
      %s27 = sphi 0, %s34
      %s28 = sphi 0, %s26
      %s29 = sphi 0, %s27
      %s30 = sphi 0, %s28
      %s31 = sphi 0, %s29
      %s43 = sphi 0, %s45
      %s46 = sphi 0, %s43
      %s47 = sphi 0, %s46
      %s63 = sphi 0, %s47
      %s67 = sphi 0, %s67
      %s69 = sphi 0, %s67
      %s70 = sphi 0, %s69
      %s84 = sphi 0, %s70
      %s88 = sphi 0, %s88
      %s90 = sphi 0, %s88
      %s91 = sphi 0, %s90
      %s105 = sphi 0, %s91
      %s109 = sphi 0, %s109
      %s111 = sphi 0, %s109
      %s112 = sphi 0, %s111
      %s126 = sphi 0, %s112
      %s130 = sphi 0, %s130
      %s132 = sphi 0, %s130
      %s133 = sphi 0, %s132
      %s147 = sphi 0, %s133
      %s153 = sphi 0, %s155
      %s156 = sphi 0, %s153
      %s157 = sphi 0, %s156
      %s173 = sphi 0, %s157
    $region4: #{tpu_custom_call.1} parent=1 // loop_header_branch
      %22 = sbr.rel (%p20) target = $region8
    $region5: #{tpu_custom_call.1} parent=1 // loop_body
      %s24 = ssub.s32 %s19, 1
      %s25 = ssub.s32 %s19, 2
      %s32 = sadd.s32 1, %s27
      %p33 = scmp.ge.s32.totalorder %s32, 4
      %s34 = scalar_select %p33, 0, %s32
      %s35 = sadd.s32 1, %s26
      %s36 = scalar_select %p33, %s35, %s26
      %p37 = scmp.ge.s32.totalorder %s36, 2
      %s38 = scalar_select %p37, 0, %s36
      %s39 = ssub.s32 %s26, %s38
      %s40 = ssub.s32 %s27, %s34
      %s41 = sor.u32 %s39, %s40
      %p42 = scmp.eq.s32.totalorder %s41, 0
      %s44 = sadd.s32 %s43, 1
      %s45 = scalar_select %p42, %s43, %s44
      %p48 = pneg %p42
      %p49 = scmp.eq.s32.totalorder %s19, 7
      %p50 = por %p48, %p49
      %p51 = scmp.ne.s32.totalorder %s43, %s46
      %p52 = scmp.eq.s32.totalorder %s19, 0
      %p53 = por %p51, %p52
      %p54 = scmp.ne.s32.totalorder %s43, %s46
      %p55 = scmp.eq.s32.totalorder %s24, 7
      %p56 = por %p54, %p55
      %p57 = scmp.ne.s32.totalorder %s46, %s47
      %p58 = scmp.eq.s32.totalorder %s24, 0
      %p59 = por %p57, %p58
      %p60 = scmp.ne.s32.totalorder %s46, %s47
      %p61 = scmp.eq.s32.totalorder %s25, 7
      %p62 = por %p60, %p61
      %p64 = scmp.ne.s32.totalorder %s47, %s63
      %p65 = scmp.eq.s32.totalorder %s25, 0
      %p66 = por %p64, %p65
      %s68 = sadd.s32 %s67, 1
      %p71 = scmp.eq.s32.totalorder %s19, 7
      %p72 = scmp.ne.s32.totalorder %s67, %s69
      %p73 = scmp.eq.s32.totalorder %s19, 0
      %p74 = por %p72, %p73
      %p75 = scmp.ne.s32.totalorder %s67, %s69
      %p76 = scmp.eq.s32.totalorder %s24, 7
      %p77 = por %p75, %p76
      %p78 = scmp.ne.s32.totalorder %s69, %s70
      %p79 = scmp.eq.s32.totalorder %s24, 0
      %p80 = por %p78, %p79
      %p81 = scmp.ne.s32.totalorder %s69, %s70
      %p82 = scmp.eq.s32.totalorder %s25, 7
      %p83 = por %p81, %p82
      %p85 = scmp.ne.s32.totalorder %s70, %s84
      %p86 = scmp.eq.s32.totalorder %s25, 0
      %p87 = por %p85, %p86
      %s89 = sadd.s32 %s88, 1
      %p92 = scmp.eq.s32.totalorder %s19, 7
      %p93 = scmp.ne.s32.totalorder %s88, %s90
      %p94 = scmp.eq.s32.totalorder %s19, 0
      %p95 = por %p93, %p94
      %p96 = scmp.ne.s32.totalorder %s88, %s90
      %p97 = scmp.eq.s32.totalorder %s24, 7
      %p98 = por %p96, %p97
      %p99 = scmp.ne.s32.totalorder %s90, %s91
      %p100 = scmp.eq.s32.totalorder %s24, 0
      %p101 = por %p99, %p100
      %p102 = scmp.ne.s32.totalorder %s90, %s91
      %p103 = scmp.eq.s32.totalorder %s25, 7
      %p104 = por %p102, %p103
      %p106 = scmp.ne.s32.totalorder %s91, %s105
      %p107 = scmp.eq.s32.totalorder %s25, 0
      %p108 = por %p106, %p107
      %s110 = sadd.s32 %s109, 1
      %p113 = scmp.eq.s32.totalorder %s19, 7
      %p114 = scmp.ne.s32.totalorder %s109, %s111
      %p115 = scmp.eq.s32.totalorder %s19, 0
      %p116 = por %p114, %p115
      %p117 = scmp.ne.s32.totalorder %s109, %s111
      %p118 = scmp.eq.s32.totalorder %s24, 7
      %p119 = por %p117, %p118
      %p120 = scmp.ne.s32.totalorder %s111, %s112
      %p121 = scmp.eq.s32.totalorder %s24, 0
      %p122 = por %p120, %p121
      %p123 = scmp.ne.s32.totalorder %s111, %s112
      %p124 = scmp.eq.s32.totalorder %s25, 7
      %p125 = por %p123, %p124
      %p127 = scmp.ne.s32.totalorder %s112, %s126
      %p128 = scmp.eq.s32.totalorder %s25, 0
      %p129 = por %p127, %p128
      %s131 = sadd.s32 %s130, 1
      %p134 = scmp.eq.s32.totalorder %s19, 7
      %p135 = scmp.ne.s32.totalorder %s130, %s132
      %p136 = scmp.eq.s32.totalorder %s19, 0
      %p137 = por %p135, %p136
      %p138 = scmp.ne.s32.totalorder %s130, %s132
      %p139 = scmp.eq.s32.totalorder %s24, 7
      %p140 = por %p138, %p139
      %p141 = scmp.ne.s32.totalorder %s132, %s133
      %p142 = scmp.eq.s32.totalorder %s24, 0
      %p143 = por %p141, %p142
      %p144 = scmp.ne.s32.totalorder %s132, %s133
      %p145 = scmp.eq.s32.totalorder %s25, 7
      %p146 = por %p144, %p145
      %p148 = scmp.ne.s32.totalorder %s133, %s147
      %p149 = scmp.eq.s32.totalorder %s25, 0
      %p150 = por %p148, %p149
      %s151 = ssub.s32 %s26, %s38
      %p152 = scmp.eq.s32.totalorder %s151, 0
      %s154 = sadd.s32 %s153, 1
      %s155 = scalar_select %p152, %s153, %s154
      %p158 = pneg %p152
      %p159 = scmp.eq.s32.totalorder %s19, 7
      %p160 = por %p158, %p159
      %p161 = scmp.ne.s32.totalorder %s153, %s156
      %p162 = scmp.eq.s32.totalorder %s19, 0
      %p163 = por %p161, %p162
      %p164 = scmp.ne.s32.totalorder %s153, %s156
      %p165 = scmp.eq.s32.totalorder %s24, 7
      %p166 = por %p164, %p165
      %p167 = scmp.ne.s32.totalorder %s156, %s157
      %p168 = scmp.eq.s32.totalorder %s24, 0
      %p169 = por %p167, %p168
      %p170 = scmp.ne.s32.totalorder %s156, %s157
      %p171 = scmp.eq.s32.totalorder %s25, 7
      %p172 = por %p170, %p171
      %p174 = scmp.ne.s32.totalorder %s157, %s173
      %p175 = scmp.eq.s32.totalorder %s25, 0
      %p176 = por %p174, %p175
      %p177 = scmp.le.s32.totalorder 1, %s19
      %p178 = scmp.lt.s32.totalorder %s19, 9
      %p179 = pnand %p177, %p178
      %p180 = pneg %p179
      // Predicated region
      $region9: #{tpu_custom_call.1} parent=5 // pred_check
        _
      $region10: #{tpu_custom_call.1} parent=5 // pred_check_branch
        %182 = sbr.rel (%p179) target = $region12
      $region11: #{tpu_custom_call.1} parent=5 // pred_region
        %s183 = ssub.s32 %s19, 1
        // Predicated region
        $region13: #{tpu_custom_call.1} parent=11 // pred_check
          %p184 = pneg %p80
        $region14: #{tpu_custom_call.1} parent=11 // pred_check_branch
          %186 = sbr.rel (%p184) target = $region16
        $region15: #{tpu_custom_call.1} parent=11 // pred_region
          %188 = vsyncadd [#allocation8], 0
          %s189 = sshll.u32 %s1, 4
          %s190 = int_to_ptr.hbm [resolvable:$true] %s189
          %s191 = sshll.u32 [#allocation7], 4
          %s192 = int_to_ptr.vmem [resolvable:$true] %s191
          %197 = dma.hbm_to_vmem [thread:$0]  %s190, 36864, %s192, [#allocation8], 64, 64, 4
        $region16: #{tpu_custom_call.1} parent=11 // pred_fallthru
          _
        // Predicated region
        $region17: #{tpu_custom_call.1} parent=11 // pred_check
          %p198 = pneg %p101
        $region18: #{tpu_custom_call.1} parent=11 // pred_check_branch
          %200 = sbr.rel (%p198) target = $region20
        $region19: #{tpu_custom_call.1} parent=11 // pred_region
          %202 = vsyncadd [#allocation8], 0
          %s204 = sshll.u32 %s2, 4
          %s205 = int_to_ptr.hbm [resolvable:$true] %s204
          %s206 = sshll.u32 [#allocation9], 4
          %s207 = int_to_ptr.vmem [resolvable:$true] %s206
          %209 = dma.hbm_to_vmem [thread:$0]  %s205, 16, %s207, [#allocation8]
        $region20: #{tpu_custom_call.1} parent=11 // pred_fallthru
          _
        // Predicated region
        $region21: #{tpu_custom_call.1} parent=11 // pred_check
          %p210 = pneg %p122
        $region22: #{tpu_custom_call.1} parent=11 // pred_check_branch
          %212 = sbr.rel (%p210) target = $region24
        $region23: #{tpu_custom_call.1} parent=11 // pred_region
          %214 = vsyncadd [#allocation11], 0
          %s215 = sshll.u32 %s3, 4
          %s216 = int_to_ptr.hbm [resolvable:$true] %s215
          %s217 = sshll.u32 [#allocation10], 4
          %s218 = int_to_ptr.vmem [resolvable:$true] %s217
          %223 = dma.hbm_to_vmem [thread:$0]  %s216, 1024, %s218, [#allocation11], 64, 64, 4
        $region24: #{tpu_custom_call.1} parent=11 // pred_fallthru
          _
        // Predicated region
        $region25: #{tpu_custom_call.1} parent=11 // pred_check
          %p224 = pneg %p143
        $region26: #{tpu_custom_call.1} parent=11 // pred_check_branch
          %226 = sbr.rel (%p224) target = $region28
        $region27: #{tpu_custom_call.1} parent=11 // pred_region
          %228 = vsyncadd [#allocation11], 0
          %s230 = sshll.u32 %s4, 4
          %s231 = int_to_ptr.hbm [resolvable:$true] %s230
          %s232 = sshll.u32 [#allocation12], 4
          %s233 = int_to_ptr.vmem [resolvable:$true] %s232
          %235 = dma.hbm_to_vmem [thread:$0]  %s231, 16, %s233, [#allocation11]
        $region28: #{tpu_custom_call.1} parent=11 // pred_fallthru
          _
      $region12: #{tpu_custom_call.1} parent=5 // pred_fallthru
        _
      %p236 = scmp.lt.s32.totalorder %s19, 8
      // Predicated region
      $region29: #{tpu_custom_call.1} parent=5 // pred_check
        %p237 = pneg %p236
      $region30: #{tpu_custom_call.1} parent=5 // pred_check_branch
        %239 = sbr.rel (%p237) target = $region32
      $region31: #{tpu_custom_call.1} parent=5 // pred_region
        // Predicated region
        $region33: #{tpu_custom_call.1} parent=31 // pred_check
          %p240 = pneg %p53
        $region34: #{tpu_custom_call.1} parent=31 // pred_check_branch
          %242 = sbr.rel (%p240) target = $region36
        $region35: #{tpu_custom_call.1} parent=31 // pred_region
          %s243 = sand.u32 %s43, 1
          %s244 = scalar_lea.sflag [#allocation5], %s243
          %s245 = sand.u32 %s43, 1
          %s246 = smul.addr %s245, 256
          %s247 = scalar_lea.vmem [#allocation4], %s246
          %249 = vsyncadd %s244, 0
          %s250 = smul.addr %s26, 128
          %s251 = sadd.s32 %s27, %s250
          %s252 = smul.addr %s251, 8
          %s253 = scalar_lea.hbm %s0, %s252
          %s254 = sshll.u32 %s253, 4
          %s255 = int_to_ptr.hbm [resolvable:$true] %s254
          %s256 = sshll.u32 %s247, 4
          %s257 = int_to_ptr.vmem [resolvable:$true] %s256
          %262 = dma.hbm_to_vmem [thread:$0]  %s255, 4096, %s257, %s244, 512, 128, 8
        $region36: #{tpu_custom_call.1} parent=31 // pred_fallthru
          _
      $region32: #{tpu_custom_call.1} parent=5 // pred_fallthru
        _
      %p263 = scmp.le.s32.totalorder 1, %s19
      %p264 = scmp.lt.s32.totalorder %s19, 9
      %p265 = pnand %p263, %p264
      %p266 = pneg %p265
      // Predicated region
      $region37: #{tpu_custom_call.1} parent=5 // pred_check
        _
      $region38: #{tpu_custom_call.1} parent=5 // pred_check_branch
        %268 = sbr.rel (%p265) target = $region40
      $region39: #{tpu_custom_call.1} parent=5 // pred_region
        %s269 = ssub.s32 %s19, 1
        %s270 = sand.u32 %s46, 1
        %s271 = scalar_lea.sflag [#allocation5], %s270
        %s272 = sand.u32 %s46, 1
        %s273 = smul.addr %s272, 256
        %s274 = scalar_lea.vmem [#allocation4], %s273
        // Predicated region
        $region41: #{tpu_custom_call.1} parent=39 // pred_check
          %p275 = pneg %p59
        $region42: #{tpu_custom_call.1} parent=39 // pred_check_branch
          %277 = sbr.rel (%p275) target = $region44
        $region43: #{tpu_custom_call.1} parent=39 // pred_region
          %279 = dma.done %s271, 4096
        $region44: #{tpu_custom_call.1} parent=39 // pred_fallthru
          _
        // Predicated region
        $region45: #{tpu_custom_call.1} parent=39 // pred_check
          %p280 = pneg %p80
        $region46: #{tpu_custom_call.1} parent=39 // pred_check_branch
          %282 = sbr.rel (%p280) target = $region48
        $region47: #{tpu_custom_call.1} parent=39 // pred_region
          %284 = dma.done [#allocation8], 36864
        $region48: #{tpu_custom_call.1} parent=39 // pred_fallthru
          _
        // Predicated region
        $region49: #{tpu_custom_call.1} parent=39 // pred_check
          %p285 = pneg %p101
        $region50: #{tpu_custom_call.1} parent=39 // pred_check_branch
          %287 = sbr.rel (%p285) target = $region52
        $region51: #{tpu_custom_call.1} parent=39 // pred_region
          %289 = dma.done [#allocation8], 16
        $region52: #{tpu_custom_call.1} parent=39 // pred_fallthru
          _
        // Predicated region
        $region53: #{tpu_custom_call.1} parent=39 // pred_check
          %p290 = pneg %p122
        $region54: #{tpu_custom_call.1} parent=39 // pred_check_branch
          %292 = sbr.rel (%p290) target = $region56
        $region55: #{tpu_custom_call.1} parent=39 // pred_region
          %294 = dma.done [#allocation11], 1024
        $region56: #{tpu_custom_call.1} parent=39 // pred_fallthru
          _
        // Predicated region
        $region57: #{tpu_custom_call.1} parent=39 // pred_check
          %p295 = pneg %p143
        $region58: #{tpu_custom_call.1} parent=39 // pred_check_branch
          %297 = sbr.rel (%p295) target = $region60
        $region59: #{tpu_custom_call.1} parent=39 // pred_region
          %299 = dma.done [#allocation11], 16
        $region60: #{tpu_custom_call.1} parent=39 // pred_fallthru
          _
        %s300 = sand.u32 %s46, 1
        %s301 = scalar_lea.sflag [#allocation5], %s300
        %s302 = sand.u32 %s46, 1
        %s303 = smul.addr %s302, 256
        %s304 = scalar_lea.vmem [#allocation4], %s303
        %p305 = pneg %p59
        %p306 = pneg %p56
        %p307 = pneg %p80
        %p308 = pneg %p77
        %p309 = pneg %p101
        %p310 = pneg %p98
        %p311 = pneg %p122
        %p312 = pneg %p119
        %p313 = pneg %p143
        %p314 = pneg %p140
        %p315 = pneg %p169
        %p316 = pneg %p166
        %s317 = sand.u32 %s156, 1
        %s318 = scalar_lea.sflag [#allocation6], %s317
        %s319 = sand.u32 %s156, 1
        %s320 = smul.addr %s319, 256
        %s321 = scalar_lea.vmem [#allocation13], %s320
        %p323 = scmp.eq.s32.totalorder %s29, 0
        // Predicated region
        $region61: #{tpu_custom_call.1} parent=39 // pred_check
          %p324 = pneg %p323
        $region62: #{tpu_custom_call.1} parent=39 // pred_check_branch
          %326 = sbr.rel (%p324) target = $region64
        $region63: #{tpu_custom_call.1} parent=39 // pred_region
          %327 = vst [vmem:[#allocation2] sm:$0xf] 0
          %328 = vst [vmem:[#allocation2 + $0x4] sm:$0xf] 0
          %329 = vst [vmem:[#allocation2 + $0x8] sm:$0xf] 0
          %vm330 = vcmask 1040384
          %vm331 = vsmask.f32 256
          %vm332 = vmand %vm330, %vm331
          %v333 = vld [vmem:[#allocation2 + $0xc] sm:$0x1]
          %v334 = vsel %vm332, 0, %v333
          %335 = vst [vmem:[#allocation2 + $0xc] sm:$0x1] %v334
          %336 = vst [vmem:[#allocation2 + $0x10] sm:$0xf] 0
          %337 = vst [vmem:[#allocation2 + $0x14] sm:$0xf] 0
          %338 = vst [vmem:[#allocation2 + $0x18] sm:$0xf] 0
          %v339 = vld [vmem:[#allocation2 + $0x1c] sm:$0x1]
          %v340 = vsel %vm332, 0, %v339
          %341 = vst [vmem:[#allocation2 + $0x1c] sm:$0x1] %v340
          %342 = vst [vmem:[#allocation2 + $0x20] sm:$0xf] 0
          %343 = vst [vmem:[#allocation2 + $0x24] sm:$0xf] 0
          %344 = vst [vmem:[#allocation2 + $0x28] sm:$0xf] 0
          %v345 = vld [vmem:[#allocation2 + $0x2c] sm:$0x1]
          %v346 = vsel %vm332, 0, %v345
          %347 = vst [vmem:[#allocation2 + $0x2c] sm:$0x1] %v346
          %348 = vst [vmem:[#allocation2 + $0x30] sm:$0xf] 0
          %349 = vst [vmem:[#allocation2 + $0x34] sm:$0xf] 0
          %350 = vst [vmem:[#allocation2 + $0x38] sm:$0xf] 0
          %v351 = vld [vmem:[#allocation2 + $0x3c] sm:$0x1]
          %v352 = vsel %vm332, 0, %v351
          %353 = vst [vmem:[#allocation2 + $0x3c] sm:$0x1] %v352
          %354 = vst [vmem:[#allocation2 + $0x40] sm:$0xf] 0
          %355 = vst [vmem:[#allocation2 + $0x44] sm:$0xf] 0
          %356 = vst [vmem:[#allocation2 + $0x48] sm:$0xf] 0
          %v357 = vld [vmem:[#allocation2 + $0x4c] sm:$0x1]
          %v358 = vsel %vm332, 0, %v357
          %359 = vst [vmem:[#allocation2 + $0x4c] sm:$0x1] %v358
          %360 = vst [vmem:[#allocation2 + $0x50] sm:$0xf] 0
          %361 = vst [vmem:[#allocation2 + $0x54] sm:$0xf] 0
          %362 = vst [vmem:[#allocation2 + $0x58] sm:$0xf] 0
          %v363 = vld [vmem:[#allocation2 + $0x5c] sm:$0x1]
          %v364 = vsel %vm332, 0, %v363
          %365 = vst [vmem:[#allocation2 + $0x5c] sm:$0x1] %v364
          %366 = vst [vmem:[#allocation2 + $0x60] sm:$0xf] 0
          %367 = vst [vmem:[#allocation2 + $0x64] sm:$0xf] 0
          %368 = vst [vmem:[#allocation2 + $0x68] sm:$0xf] 0
          %v369 = vld [vmem:[#allocation2 + $0x6c] sm:$0x1]
          %v370 = vsel %vm332, 0, %v369
          %371 = vst [vmem:[#allocation2 + $0x6c] sm:$0x1] %v370
          %372 = vst [vmem:[#allocation2 + $0x70] sm:$0xf] 0
          %373 = vst [vmem:[#allocation2 + $0x74] sm:$0xf] 0
          %374 = vst [vmem:[#allocation2 + $0x78] sm:$0xf] 0
          %v375 = vld [vmem:[#allocation2 + $0x7c] sm:$0x1]
          %v376 = vsel %vm332, 0, %v375
          %377 = vst [vmem:[#allocation2 + $0x7c] sm:$0x1] %v376
          %378 = vst [vmem:[#allocation2 + $0x80] sm:$0xf] 0
          %379 = vst [vmem:[#allocation2 + $0x84] sm:$0xf] 0
          %380 = vst [vmem:[#allocation2 + $0x88] sm:$0xf] 0
          %v381 = vld [vmem:[#allocation2 + $0x8c] sm:$0x1]
          %v382 = vsel %vm332, 0, %v381
          %383 = vst [vmem:[#allocation2 + $0x8c] sm:$0x1] %v382
          %384 = vst [vmem:[#allocation2 + $0x90] sm:$0xf] 0
          %385 = vst [vmem:[#allocation2 + $0x94] sm:$0xf] 0
          %386 = vst [vmem:[#allocation2 + $0x98] sm:$0xf] 0
          %v387 = vld [vmem:[#allocation2 + $0x9c] sm:$0x1]
          %v388 = vsel %vm332, 0, %v387
          %389 = vst [vmem:[#allocation2 + $0x9c] sm:$0x1] %v388
          %390 = vst [vmem:[#allocation2 + $0xa0] sm:$0xf] 0
          %391 = vst [vmem:[#allocation2 + $0xa4] sm:$0xf] 0
          %392 = vst [vmem:[#allocation2 + $0xa8] sm:$0xf] 0
          %v393 = vld [vmem:[#allocation2 + $0xac] sm:$0x1]
          %v394 = vsel %vm332, 0, %v393
          %395 = vst [vmem:[#allocation2 + $0xac] sm:$0x1] %v394
          %396 = vst [vmem:[#allocation2 + $0xb0] sm:$0xf] 0
          %397 = vst [vmem:[#allocation2 + $0xb4] sm:$0xf] 0
          %398 = vst [vmem:[#allocation2 + $0xb8] sm:$0xf] 0
          %v399 = vld [vmem:[#allocation2 + $0xbc] sm:$0x1]
          %v400 = vsel %vm332, 0, %v399
          %401 = vst [vmem:[#allocation2 + $0xbc] sm:$0x1] %v400
          %402 = vst [vmem:[#allocation2 + $0xc0] sm:$0xf] 0
          %403 = vst [vmem:[#allocation2 + $0xc4] sm:$0xf] 0
          %404 = vst [vmem:[#allocation2 + $0xc8] sm:$0xf] 0
          %v405 = vld [vmem:[#allocation2 + $0xcc] sm:$0x1]
          %v406 = vsel %vm332, 0, %v405
          %407 = vst [vmem:[#allocation2 + $0xcc] sm:$0x1] %v406
          %408 = vst [vmem:[#allocation2 + $0xd0] sm:$0xf] 0
          %409 = vst [vmem:[#allocation2 + $0xd4] sm:$0xf] 0
          %410 = vst [vmem:[#allocation2 + $0xd8] sm:$0xf] 0
          %v411 = vld [vmem:[#allocation2 + $0xdc] sm:$0x1]
          %v412 = vsel %vm332, 0, %v411
          %413 = vst [vmem:[#allocation2 + $0xdc] sm:$0x1] %v412
          %414 = vst [vmem:[#allocation2 + $0xe0] sm:$0xf] 0
          %415 = vst [vmem:[#allocation2 + $0xe4] sm:$0xf] 0
          %416 = vst [vmem:[#allocation2 + $0xe8] sm:$0xf] 0
          %v417 = vld [vmem:[#allocation2 + $0xec] sm:$0x1]
          %v418 = vsel %vm332, 0, %v417
          %419 = vst [vmem:[#allocation2 + $0xec] sm:$0x1] %v418
          %420 = vst [vmem:[#allocation2 + $0xf0] sm:$0xf] 0
          %421 = vst [vmem:[#allocation2 + $0xf4] sm:$0xf] 0
          %422 = vst [vmem:[#allocation2 + $0xf8] sm:$0xf] 0
          %v423 = vld [vmem:[#allocation2 + $0xfc] sm:$0x1]
          %v424 = vsel %vm332, 0, %v423
          %425 = vst [vmem:[#allocation2 + $0xfc] sm:$0x1] %v424
          %426 = vst [vmem:[#allocation2 + $0x100] sm:$0xf] 0
          %427 = vst [vmem:[#allocation2 + $0x104] sm:$0xf] 0
          %428 = vst [vmem:[#allocation2 + $0x108] sm:$0xf] 0
          %v429 = vld [vmem:[#allocation2 + $0x10c] sm:$0x1]
          %v430 = vsel %vm332, 0, %v429
          %431 = vst [vmem:[#allocation2 + $0x10c] sm:$0x1] %v430
          %432 = vst [vmem:[#allocation2 + $0x110] sm:$0xf] 0
          %433 = vst [vmem:[#allocation2 + $0x114] sm:$0xf] 0
          %434 = vst [vmem:[#allocation2 + $0x118] sm:$0xf] 0
          %v435 = vld [vmem:[#allocation2 + $0x11c] sm:$0x1]
          %v436 = vsel %vm332, 0, %v435
          %437 = vst [vmem:[#allocation2 + $0x11c] sm:$0x1] %v436
          %438 = vst [vmem:[#allocation3] sm:$0xff] 0.0
          %439 = vst [vmem:[#allocation3 + $0x8] sm:$0xff] 0.0
          %440 = vst [vmem:[#allocation3 + $0x10] sm:$0xff] 0.0
          %441 = vst [vmem:[#allocation3 + $0x18] sm:$0xff] 0.0
          %442 = vst [vmem:[#allocation3 + $0x20] sm:$0xff] 0.0
          %443 = vst [vmem:[#allocation3 + $0x28] sm:$0xff] 0.0
          %444 = vst [vmem:[#allocation3 + $0x30] sm:$0xff] 0.0
          %445 = vst [vmem:[#allocation3 + $0x38] sm:$0xff] 0.0
          %446 = vst [vmem:[#allocation3 + $0x40] sm:$0xff] 0.0
          %447 = vst [vmem:[#allocation3 + $0x48] sm:$0xff] 0.0
          %448 = vst [vmem:[#allocation3 + $0x50] sm:$0xff] 0.0
          %449 = vst [vmem:[#allocation3 + $0x58] sm:$0xff] 0.0
          %450 = vst [vmem:[#allocation3 + $0x60] sm:$0xff] 0.0
          %451 = vst [vmem:[#allocation3 + $0x68] sm:$0xff] 0.0
          %452 = vst [vmem:[#allocation3 + $0x70] sm:$0xff] 0.0
          %453 = vst [vmem:[#allocation3 + $0x78] sm:$0xff] 0.0
          %454 = vst [vmem:[#allocation3 + $0x80] sm:$0xff] 0.0
          %455 = vst [vmem:[#allocation3 + $0x88] sm:$0xff] 0.0
          %456 = vst [vmem:[#allocation3 + $0x90] sm:$0xff] 0.0
          %457 = vst [vmem:[#allocation3 + $0x98] sm:$0xff] 0.0
          %458 = vst [vmem:[#allocation3 + $0xa0] sm:$0xff] 0.0
          %459 = vst [vmem:[#allocation3 + $0xa8] sm:$0xff] 0.0
          %460 = vst [vmem:[#allocation3 + $0xb0] sm:$0xff] 0.0
          %461 = vst [vmem:[#allocation3 + $0xb8] sm:$0xff] 0.0
          %462 = vst [vmem:[#allocation3 + $0xc0] sm:$0xff] 0.0
          %463 = vst [vmem:[#allocation3 + $0xc8] sm:$0xff] 0.0
          %464 = vst [vmem:[#allocation3 + $0xd0] sm:$0xff] 0.0
          %465 = vst [vmem:[#allocation3 + $0xd8] sm:$0xff] 0.0
          %466 = vst [vmem:[#allocation3 + $0xe0] sm:$0xff] 0.0
          %467 = vst [vmem:[#allocation3 + $0xe8] sm:$0xff] 0.0
          %468 = vst [vmem:[#allocation3 + $0xf0] sm:$0xff] 0.0
          %469 = vst [vmem:[#allocation3 + $0xf8] sm:$0xff] 0.0
        $region64: #{tpu_custom_call.1} parent=39 // pred_fallthru
          _
        %v470 = vld [vmem:[%s274] sm:$0xff]
        %v471 = vld [vmem:[%s274 + $0x8] sm:$0xff]
        %v472 = vld [vmem:[%s274 + $0x10] sm:$0xff]
        %v473 = vld [vmem:[%s274 + $0x18] sm:$0xff]
        %v474 = vld [vmem:[%s274 + $0x20] sm:$0xff]
        %v475 = vld [vmem:[%s274 + $0x28] sm:$0xff]
        %v476 = vld [vmem:[%s274 + $0x30] sm:$0xff]
        %v477 = vld [vmem:[%s274 + $0x38] sm:$0xff]
        %v478 = vld [vmem:[%s274 + $0x40] sm:$0xff]
        %v479 = vld [vmem:[%s274 + $0x48] sm:$0xff]
        %v480 = vld [vmem:[%s274 + $0x50] sm:$0xff]
        %v481 = vld [vmem:[%s274 + $0x58] sm:$0xff]
        %v482 = vld [vmem:[%s274 + $0x60] sm:$0xff]
        %v483 = vld [vmem:[%s274 + $0x68] sm:$0xff]
        %v484 = vld [vmem:[%s274 + $0x70] sm:$0xff]
        %v485 = vld [vmem:[%s274 + $0x78] sm:$0xff]
        %v486 = vld [vmem:[%s274 + $0x80] sm:$0xff]
        %v487 = vld [vmem:[%s274 + $0x88] sm:$0xff]
        %v488 = vld [vmem:[%s274 + $0x90] sm:$0xff]
        %v489 = vld [vmem:[%s274 + $0x98] sm:$0xff]
        %v490 = vld [vmem:[%s274 + $0xa0] sm:$0xff]
        %v491 = vld [vmem:[%s274 + $0xa8] sm:$0xff]
        %v492 = vld [vmem:[%s274 + $0xb0] sm:$0xff]
        %v493 = vld [vmem:[%s274 + $0xb8] sm:$0xff]
        %v494 = vld [vmem:[%s274 + $0xc0] sm:$0xff]
        %v495 = vld [vmem:[%s274 + $0xc8] sm:$0xff]
        %v496 = vld [vmem:[%s274 + $0xd0] sm:$0xff]
        %v497 = vld [vmem:[%s274 + $0xd8] sm:$0xff]
        %v498 = vld [vmem:[%s274 + $0xe0] sm:$0xff]
        %v499 = vld [vmem:[%s274 + $0xe8] sm:$0xff]
        %v500 = vld [vmem:[%s274 + $0xf0] sm:$0xff]
        %v501 = vld [vmem:[%s274 + $0xf8] sm:$0xff]
        %v502 = vpack.c.bf16 %v470, %v470
        %v503 = vpack.c.bf16 %v471, %v471
        %v504 = vpack.c.bf16 %v472, %v472
        %v505 = vpack.c.bf16 %v473, %v473
        %v506 = vpack.c.bf16 %v474, %v474
        %v507 = vpack.c.bf16 %v475, %v475
        %v508 = vpack.c.bf16 %v476, %v476
        %v509 = vpack.c.bf16 %v477, %v477
        %v510 = vpack.c.bf16 %v478, %v478
        %v511 = vpack.c.bf16 %v479, %v479
        %v512 = vpack.c.bf16 %v480, %v480
        %v513 = vpack.c.bf16 %v481, %v481
        %v514 = vpack.c.bf16 %v482, %v482
        %v515 = vpack.c.bf16 %v483, %v483
        %v516 = vpack.c.bf16 %v484, %v484
        %v517 = vpack.c.bf16 %v485, %v485
        %v518 = vpack.c.bf16 %v486, %v486
        %v519 = vpack.c.bf16 %v487, %v487
        %v520 = vpack.c.bf16 %v488, %v488
        %v521 = vpack.c.bf16 %v489, %v489
        %v522 = vpack.c.bf16 %v490, %v490
        %v523 = vpack.c.bf16 %v491, %v491
        %v524 = vpack.c.bf16 %v492, %v492
        %v525 = vpack.c.bf16 %v493, %v493
        %v526 = vpack.c.bf16 %v494, %v494
        %v527 = vpack.c.bf16 %v495, %v495
        %v528 = vpack.c.bf16 %v496, %v496
        %v529 = vpack.c.bf16 %v497, %v497
        %v530 = vpack.c.bf16 %v498, %v498
        %v531 = vpack.c.bf16 %v499, %v499
        %v532 = vpack.c.bf16 %v500, %v500
        %v533 = vpack.c.bf16 %v501, %v501
        %s534 = scalar_lea.vmem [#allocation2], 16
        %535 = vst [vmem:[%s534 + $0x4] sm:$0xf] %v502
        %536 = vst [vmem:[%s534 + $0x8] sm:$0xf] %v503
        %537 = vst [vmem:[%s534 + $0x14] sm:$0xf] %v504
        %538 = vst [vmem:[%s534 + $0x18] sm:$0xf] %v505
        %539 = vst [vmem:[%s534 + $0x24] sm:$0xf] %v506
        %540 = vst [vmem:[%s534 + $0x28] sm:$0xf] %v507
        %541 = vst [vmem:[%s534 + $0x34] sm:$0xf] %v508
        %542 = vst [vmem:[%s534 + $0x38] sm:$0xf] %v509
        %543 = vst [vmem:[%s534 + $0x44] sm:$0xf] %v510
        %544 = vst [vmem:[%s534 + $0x48] sm:$0xf] %v511
        %545 = vst [vmem:[%s534 + $0x54] sm:$0xf] %v512
        %546 = vst [vmem:[%s534 + $0x58] sm:$0xf] %v513
        %547 = vst [vmem:[%s534 + $0x64] sm:$0xf] %v514
        %548 = vst [vmem:[%s534 + $0x68] sm:$0xf] %v515
        %549 = vst [vmem:[%s534 + $0x74] sm:$0xf] %v516
        %550 = vst [vmem:[%s534 + $0x78] sm:$0xf] %v517
        %551 = vst [vmem:[%s534 + $0x84] sm:$0xf] %v518
        %552 = vst [vmem:[%s534 + $0x88] sm:$0xf] %v519
        %553 = vst [vmem:[%s534 + $0x94] sm:$0xf] %v520
        %554 = vst [vmem:[%s534 + $0x98] sm:$0xf] %v521
        %555 = vst [vmem:[%s534 + $0xa4] sm:$0xf] %v522
        %556 = vst [vmem:[%s534 + $0xa8] sm:$0xf] %v523
        %557 = vst [vmem:[%s534 + $0xb4] sm:$0xf] %v524
        %558 = vst [vmem:[%s534 + $0xb8] sm:$0xf] %v525
        %559 = vst [vmem:[%s534 + $0xc4] sm:$0xf] %v526
        %560 = vst [vmem:[%s534 + $0xc8] sm:$0xf] %v527
        %561 = vst [vmem:[%s534 + $0xd4] sm:$0xf] %v528
        %562 = vst [vmem:[%s534 + $0xd8] sm:$0xf] %v529
        %563 = vst [vmem:[%s534 + $0xe4] sm:$0xf] %v530
        %564 = vst [vmem:[%s534 + $0xe8] sm:$0xf] %v531
        %565 = vst [vmem:[%s534 + $0xf4] sm:$0xf] %v532
        %566 = vst [vmem:[%s534 + $0xf8] sm:$0xf] %v533
        %v567 = vld [vmem:[#allocation2] sm:$0x8]
        %v568 = vld [vmem:[#allocation2 + $0x4] sm:$0xf]
        %v569 = vld [vmem:[#allocation2 + $0x8] sm:$0xf]
        %v570 = vld [vmem:[#allocation2 + $0x10] sm:$0x8]
        %v571 = vld [vmem:[#allocation2 + $0x14] sm:$0xf]
        %v572 = vld [vmem:[#allocation2 + $0x18] sm:$0xf]
        %v573 = vld [vmem:[#allocation2 + $0x20] sm:$0x8]
        %v574 = vld [vmem:[#allocation2 + $0x24] sm:$0xf]
        %v575 = vld [vmem:[#allocation2 + $0x28] sm:$0xf]
        %v576 = vld [vmem:[#allocation2 + $0x30] sm:$0x8]
        %v577 = vld [vmem:[#allocation2 + $0x34] sm:$0xf]
        %v578 = vld [vmem:[#allocation2 + $0x38] sm:$0xf]
        %v579 = vld [vmem:[#allocation2 + $0x40] sm:$0x8]
        %v580 = vld [vmem:[#allocation2 + $0x44] sm:$0xf]
        %v581 = vld [vmem:[#allocation2 + $0x48] sm:$0xf]
        %v582 = vld [vmem:[#allocation2 + $0x50] sm:$0x8]
        %v583 = vld [vmem:[#allocation2 + $0x54] sm:$0xf]
        %v584 = vld [vmem:[#allocation2 + $0x58] sm:$0xf]
        %v585 = vld [vmem:[#allocation2 + $0x60] sm:$0x8]
        %v586 = vld [vmem:[#allocation2 + $0x64] sm:$0xf]
        %v587 = vld [vmem:[#allocation2 + $0x68] sm:$0xf]
        %v588 = vld [vmem:[#allocation2 + $0x70] sm:$0x8]
        %v589 = vld [vmem:[#allocation2 + $0x74] sm:$0xf]
        %v590 = vld [vmem:[#allocation2 + $0x78] sm:$0xf]
        %v591 = vld [vmem:[#allocation2 + $0x80] sm:$0x8]
        %v592 = vld [vmem:[#allocation2 + $0x84] sm:$0xf]
        %v593 = vld [vmem:[#allocation2 + $0x88] sm:$0xf]
        %v594 = vld [vmem:[#allocation2 + $0x90] sm:$0x8]
        %v595 = vld [vmem:[#allocation2 + $0x94] sm:$0xf]
        %v596 = vld [vmem:[#allocation2 + $0x98] sm:$0xf]
        %v597 = vld [vmem:[#allocation2 + $0xa0] sm:$0x8]
        %v598 = vld [vmem:[#allocation2 + $0xa4] sm:$0xf]
        %v599 = vld [vmem:[#allocation2 + $0xa8] sm:$0xf]
        %v600 = vld [vmem:[#allocation2 + $0xb0] sm:$0x8]
        %v601 = vld [vmem:[#allocation2 + $0xb4] sm:$0xf]
        %v602 = vld [vmem:[#allocation2 + $0xb8] sm:$0xf]
        %v603 = vld [vmem:[#allocation2 + $0xc0] sm:$0x8]
        %v604 = vld [vmem:[#allocation2 + $0xc4] sm:$0xf]
        %v605 = vld [vmem:[#allocation2 + $0xc8] sm:$0xf]
        %v606 = vld [vmem:[#allocation2 + $0xd0] sm:$0x8]
        %v607 = vld [vmem:[#allocation2 + $0xd4] sm:$0xf]
        %v608 = vld [vmem:[#allocation2 + $0xd8] sm:$0xf]
        %v609 = vld [vmem:[#allocation2 + $0xe0] sm:$0x8]
        %v610 = vld [vmem:[#allocation2 + $0xe4] sm:$0xf]
        %v611 = vld [vmem:[#allocation2 + $0xe8] sm:$0xf]
        %v612 = vld [vmem:[#allocation2 + $0xf0] sm:$0x8]
        %v613 = vld [vmem:[#allocation2 + $0xf4] sm:$0xf]
        %v614 = vld [vmem:[#allocation2 + $0xf8] sm:$0xf]
        %v615 = vld [vmem:[#allocation2 + $0x100] sm:$0x8]
        %v616 = vld [vmem:[#allocation2 + $0x104] sm:$0xf]
        %v617 = vld [vmem:[#allocation2 + $0x108] sm:$0xf]
        %v618 = vld [vmem:[#allocation2 + $0x110] sm:$0x8]
        %v619 = vld [vmem:[#allocation2 + $0x114] sm:$0xf]
        %v620 = vld [vmem:[#allocation2 + $0x118] sm:$0xf]
        %v621 = vld [vmem:[#allocation2 + $0xc] sm:$0x1]
        %v622 = vld [vmem:[#allocation2 + $0x1c] sm:$0x1]
        %v623 = vld [vmem:[#allocation2 + $0x2c] sm:$0x1]
        %v624 = vld [vmem:[#allocation2 + $0x3c] sm:$0x1]
        %v625 = vld [vmem:[#allocation2 + $0x4c] sm:$0x1]
        %v626 = vld [vmem:[#allocation2 + $0x5c] sm:$0x1]
        %v627 = vld [vmem:[#allocation2 + $0x6c] sm:$0x1]
        %v628 = vld [vmem:[#allocation2 + $0x7c] sm:$0x1]
        %v629 = vld [vmem:[#allocation2 + $0x8c] sm:$0x1]
        %v630 = vld [vmem:[#allocation2 + $0x9c] sm:$0x1]
        %v631 = vld [vmem:[#allocation2 + $0xac] sm:$0x1]
        %v632 = vld [vmem:[#allocation2 + $0xbc] sm:$0x1]
        %v633 = vld [vmem:[#allocation2 + $0xcc] sm:$0x1]
        %v634 = vld [vmem:[#allocation2 + $0xdc] sm:$0x1]
        %v635 = vld [vmem:[#allocation2 + $0xec] sm:$0x1]
        %v636 = vld [vmem:[#allocation2 + $0xfc] sm:$0x1]
        %v637 = vld [vmem:[#allocation2 + $0x10c] sm:$0x1]
        %v638 = vld [vmem:[#allocation2 + $0x11c] sm:$0x1]
        %v693 = vunpack.c.l.b16 %v567
        %v694 = vunpack.c.l.b16 %v568
        %v695 = vunpack.c.l.b16 %v569
        %v696 = vunpack.c.l.b16 %v570
        %v697 = vunpack.c.l.b16 %v571
        %v698 = vunpack.c.l.b16 %v572
        %v699 = vunpack.c.l.b16 %v573
        %v700 = vunpack.c.l.b16 %v574
        %v701 = vunpack.c.l.b16 %v575
        %v702 = vunpack.c.l.b16 %v576
        %v703 = vunpack.c.l.b16 %v577
        %v704 = vunpack.c.l.b16 %v578
        %v705 = vunpack.c.l.b16 %v579
        %v706 = vunpack.c.l.b16 %v580
        %v707 = vunpack.c.l.b16 %v581
        %v708 = vunpack.c.l.b16 %v582
        %v709 = vunpack.c.l.b16 %v583
        %v710 = vunpack.c.l.b16 %v584
        %v711 = vunpack.c.l.b16 %v585
        %v712 = vunpack.c.l.b16 %v586
        %v713 = vunpack.c.l.b16 %v587
        %v714 = vunpack.c.l.b16 %v588
        %v715 = vunpack.c.l.b16 %v589
        %v716 = vunpack.c.l.b16 %v590
        %v717 = vunpack.c.l.b16 %v591
        %v718 = vunpack.c.l.b16 %v592
        %v719 = vunpack.c.l.b16 %v593
        %v720 = vunpack.c.l.b16 %v594
        %v721 = vunpack.c.l.b16 %v595
        %v722 = vunpack.c.l.b16 %v596
        %v723 = vunpack.c.l.b16 %v597
        %v724 = vunpack.c.l.b16 %v598
        %v725 = vunpack.c.l.b16 %v599
        %v726 = vunpack.c.l.b16 %v600
        %v727 = vunpack.c.l.b16 %v601
        %v728 = vunpack.c.l.b16 %v602
        %v729 = vunpack.c.l.b16 %v603
        %v730 = vunpack.c.l.b16 %v604
        %v731 = vunpack.c.l.b16 %v605
        %v732 = vunpack.c.l.b16 %v606
        %v733 = vunpack.c.l.b16 %v607
        %v734 = vunpack.c.l.b16 %v608
        %v735 = vunpack.c.l.b16 %v609
        %v736 = vunpack.c.l.b16 %v610
        %v737 = vunpack.c.l.b16 %v611
        %v738 = vunpack.c.l.b16 %v612
        %v739 = vunpack.c.l.b16 %v613
        %v740 = vunpack.c.l.b16 %v614
        %v741 = vunpack.c.l.b16 %v615
        %v742 = vunpack.c.l.b16 %v616
        %v743 = vunpack.c.l.b16 %v617
        %v744 = vunpack.c.l.b16 %v618
        %v745 = vunpack.c.l.b16 %v619
        %v746 = vunpack.c.l.b16 %v620
        %v747 = vpack.c.b16 %v694, %v693
        %v748 = vpack.c.b16 %v695, %v695
        %v749 = vpack.c.b16 %v697, %v696
        %v750 = vpack.c.b16 %v698, %v698
        %v751 = vpack.c.b16 %v700, %v699
        %v752 = vpack.c.b16 %v701, %v701
        %v753 = vpack.c.b16 %v703, %v702
        %v754 = vpack.c.b16 %v704, %v704
        %v755 = vpack.c.b16 %v706, %v705
        %v756 = vpack.c.b16 %v707, %v707
        %v757 = vpack.c.b16 %v709, %v708
        %v758 = vpack.c.b16 %v710, %v710
        %v759 = vpack.c.b16 %v712, %v711
        %v760 = vpack.c.b16 %v713, %v713
        %v761 = vpack.c.b16 %v715, %v714
        %v762 = vpack.c.b16 %v716, %v716
        %v763 = vpack.c.b16 %v718, %v717
        %v764 = vpack.c.b16 %v719, %v719
        %v765 = vpack.c.b16 %v721, %v720
        %v766 = vpack.c.b16 %v722, %v722
        %v767 = vpack.c.b16 %v724, %v723
        %v768 = vpack.c.b16 %v725, %v725
        %v769 = vpack.c.b16 %v727, %v726
        %v770 = vpack.c.b16 %v728, %v728
        %v771 = vpack.c.b16 %v730, %v729
        %v772 = vpack.c.b16 %v731, %v731
        %v773 = vpack.c.b16 %v733, %v732
        %v774 = vpack.c.b16 %v734, %v734
        %v775 = vpack.c.b16 %v736, %v735
        %v776 = vpack.c.b16 %v737, %v737
        %v777 = vpack.c.b16 %v739, %v738
        %v778 = vpack.c.b16 %v740, %v740
        %v779 = vpack.c.b16 %v742, %v741
        %v780 = vpack.c.b16 %v743, %v743
        %v781 = vpack.c.b16 %v745, %v744
        %v782 = vpack.c.b16 %v746, %v746
        %v783 = vpack.c.b16 %v695, %v694
        %v784 = vpack.c.b16 %v698, %v697
        %v785 = vpack.c.b16 %v701, %v700
        %v786 = vpack.c.b16 %v704, %v703
        %v787 = vpack.c.b16 %v707, %v706
        %v788 = vpack.c.b16 %v710, %v709
        %v789 = vpack.c.b16 %v713, %v712
        %v790 = vpack.c.b16 %v716, %v715
        %v791 = vpack.c.b16 %v719, %v718
        %v792 = vpack.c.b16 %v722, %v721
        %v793 = vpack.c.b16 %v725, %v724
        %v794 = vpack.c.b16 %v728, %v727
        %v795 = vpack.c.b16 %v731, %v730
        %v796 = vpack.c.b16 %v734, %v733
        %v797 = vpack.c.b16 %v737, %v736
        %v798 = vpack.c.b16 %v740, %v739
        %v799 = vpack.c.b16 %v743, %v742
        %v800 = vpack.c.b16 %v746, %v745
        %v802 = vshrl.u32 %v783, 16
        %v804 = vrot.slane %v802, 4
        %v805 = vshll.u32 %v783, 16
        %v807 = vrot.slane %v805, 5
        %v808 = vor.u32 %v804, %v807
        %v810 = vshrl.u32 %v784, 16
        %v812 = vrot.slane %v810, 4
        %v813 = vshll.u32 %v784, 16
        %v815 = vrot.slane %v813, 5
        %v816 = vor.u32 %v812, %v815
        %v818 = vshrl.u32 %v785, 16
        %v820 = vrot.slane %v818, 4
        %v821 = vshll.u32 %v785, 16
        %v823 = vrot.slane %v821, 5
        %v824 = vor.u32 %v820, %v823
        %v826 = vshrl.u32 %v786, 16
        %v828 = vrot.slane %v826, 4
        %v829 = vshll.u32 %v786, 16
        %v831 = vrot.slane %v829, 5
        %v832 = vor.u32 %v828, %v831
        %v834 = vshrl.u32 %v787, 16
        %v836 = vrot.slane %v834, 4
        %v837 = vshll.u32 %v787, 16
        %v839 = vrot.slane %v837, 5
        %v840 = vor.u32 %v836, %v839
        %v842 = vshrl.u32 %v788, 16
        %v844 = vrot.slane %v842, 4
        %v845 = vshll.u32 %v788, 16
        %v847 = vrot.slane %v845, 5
        %v848 = vor.u32 %v844, %v847
        %v850 = vshrl.u32 %v789, 16
        %v852 = vrot.slane %v850, 4
        %v853 = vshll.u32 %v789, 16
        %v855 = vrot.slane %v853, 5
        %v856 = vor.u32 %v852, %v855
        %v858 = vshrl.u32 %v790, 16
        %v860 = vrot.slane %v858, 4
        %v861 = vshll.u32 %v790, 16
        %v863 = vrot.slane %v861, 5
        %v864 = vor.u32 %v860, %v863
        %v866 = vshrl.u32 %v791, 16
        %v868 = vrot.slane %v866, 4
        %v869 = vshll.u32 %v791, 16
        %v871 = vrot.slane %v869, 5
        %v872 = vor.u32 %v868, %v871
        %v874 = vshrl.u32 %v792, 16
        %v876 = vrot.slane %v874, 4
        %v877 = vshll.u32 %v792, 16
        %v879 = vrot.slane %v877, 5
        %v880 = vor.u32 %v876, %v879
        %v882 = vshrl.u32 %v793, 16
        %v884 = vrot.slane %v882, 4
        %v885 = vshll.u32 %v793, 16
        %v887 = vrot.slane %v885, 5
        %v888 = vor.u32 %v884, %v887
        %v890 = vshrl.u32 %v794, 16
        %v892 = vrot.slane %v890, 4
        %v893 = vshll.u32 %v794, 16
        %v895 = vrot.slane %v893, 5
        %v896 = vor.u32 %v892, %v895
        %v898 = vshrl.u32 %v795, 16
        %v900 = vrot.slane %v898, 4
        %v901 = vshll.u32 %v795, 16
        %v903 = vrot.slane %v901, 5
        %v904 = vor.u32 %v900, %v903
        %v906 = vshrl.u32 %v796, 16
        %v908 = vrot.slane %v906, 4
        %v909 = vshll.u32 %v796, 16
        %v911 = vrot.slane %v909, 5
        %v912 = vor.u32 %v908, %v911
        %v914 = vshrl.u32 %v797, 16
        %v916 = vrot.slane %v914, 4
        %v917 = vshll.u32 %v797, 16
        %v919 = vrot.slane %v917, 5
        %v920 = vor.u32 %v916, %v919
        %v922 = vshrl.u32 %v798, 16
        %v924 = vrot.slane %v922, 4
        %v925 = vshll.u32 %v798, 16
        %v927 = vrot.slane %v925, 5
        %v928 = vor.u32 %v924, %v927
        %v930 = vshrl.u32 %v799, 16
        %v932 = vrot.slane %v930, 4
        %v933 = vshll.u32 %v799, 16
        %v935 = vrot.slane %v933, 5
        %v936 = vor.u32 %v932, %v935
        %v938 = vshrl.u32 %v800, 16
        %v940 = vrot.slane %v938, 4
        %v941 = vshll.u32 %v800, 16
        %v943 = vrot.slane %v941, 5
        %v944 = vor.u32 %v940, %v943
        %v963 = vunpack.c.l.b16 %v621
        %v964 = vunpack.c.l.b16 %v622
        %v965 = vunpack.c.l.b16 %v623
        %v966 = vunpack.c.l.b16 %v624
        %v967 = vunpack.c.l.b16 %v625
        %v968 = vunpack.c.l.b16 %v626
        %v969 = vunpack.c.l.b16 %v627
        %v970 = vunpack.c.l.b16 %v628
        %v971 = vunpack.c.l.b16 %v629
        %v972 = vunpack.c.l.b16 %v630
        %v973 = vunpack.c.l.b16 %v631
        %v974 = vunpack.c.l.b16 %v632
        %v975 = vunpack.c.l.b16 %v633
        %v976 = vunpack.c.l.b16 %v634
        %v977 = vunpack.c.l.b16 %v635
        %v978 = vunpack.c.l.b16 %v636
        %v979 = vunpack.c.l.b16 %v637
        %v980 = vunpack.c.l.b16 %v638
        %v981 = vpack.c.b16 %v963, %v963
        %v982 = vpack.c.b16 %v964, %v964
        %v983 = vpack.c.b16 %v965, %v965
        %v984 = vpack.c.b16 %v966, %v966
        %v985 = vpack.c.b16 %v967, %v967
        %v986 = vpack.c.b16 %v968, %v968
        %v987 = vpack.c.b16 %v969, %v969
        %v988 = vpack.c.b16 %v970, %v970
        %v989 = vpack.c.b16 %v971, %v971
        %v990 = vpack.c.b16 %v972, %v972
        %v991 = vpack.c.b16 %v973, %v973
        %v992 = vpack.c.b16 %v974, %v974
        %v993 = vpack.c.b16 %v975, %v975
        %v994 = vpack.c.b16 %v976, %v976
        %v995 = vpack.c.b16 %v977, %v977
        %v996 = vpack.c.b16 %v978, %v978
        %v997 = vpack.c.b16 %v979, %v979
        %v998 = vpack.c.b16 %v980, %v980
        %vm999 = vcmask 1042432
        %v1000 = vrot.slane %v783, 5
        %v1001 = vrot.slane %v981, 5
        %v1002 = vsel %vm999, %v1000, %v1001
        %v1003 = vrot.slane %v784, 5
        %v1004 = vrot.slane %v982, 5
        %v1005 = vsel %vm999, %v1003, %v1004
        %v1006 = vrot.slane %v785, 5
        %v1007 = vrot.slane %v983, 5
        %v1008 = vsel %vm999, %v1006, %v1007
        %v1009 = vrot.slane %v786, 5
        %v1010 = vrot.slane %v984, 5
        %v1011 = vsel %vm999, %v1009, %v1010
        %v1012 = vrot.slane %v787, 5
        %v1013 = vrot.slane %v985, 5
        %v1014 = vsel %vm999, %v1012, %v1013
        %v1015 = vrot.slane %v788, 5
        %v1016 = vrot.slane %v986, 5
        %v1017 = vsel %vm999, %v1015, %v1016
        %v1018 = vrot.slane %v789, 5
        %v1019 = vrot.slane %v987, 5
        %v1020 = vsel %vm999, %v1018, %v1019
        %v1021 = vrot.slane %v790, 5
        %v1022 = vrot.slane %v988, 5
        %v1023 = vsel %vm999, %v1021, %v1022
        %v1024 = vrot.slane %v791, 5
        %v1025 = vrot.slane %v989, 5
        %v1026 = vsel %vm999, %v1024, %v1025
        %v1027 = vrot.slane %v792, 5
        %v1028 = vrot.slane %v990, 5
        %v1029 = vsel %vm999, %v1027, %v1028
        %v1030 = vrot.slane %v793, 5
        %v1031 = vrot.slane %v991, 5
        %v1032 = vsel %vm999, %v1030, %v1031
        %v1033 = vrot.slane %v794, 5
        %v1034 = vrot.slane %v992, 5
        %v1035 = vsel %vm999, %v1033, %v1034
        %v1036 = vrot.slane %v795, 5
        %v1037 = vrot.slane %v993, 5
        %v1038 = vsel %vm999, %v1036, %v1037
        %v1039 = vrot.slane %v796, 5
        %v1040 = vrot.slane %v994, 5
        %v1041 = vsel %vm999, %v1039, %v1040
        %v1042 = vrot.slane %v797, 5
        %v1043 = vrot.slane %v995, 5
        %v1044 = vsel %vm999, %v1042, %v1043
        %v1045 = vrot.slane %v798, 5
        %v1046 = vrot.slane %v996, 5
        %v1047 = vsel %vm999, %v1045, %v1046
        %v1048 = vrot.slane %v799, 5
        %v1049 = vrot.slane %v997, 5
        %v1050 = vsel %vm999, %v1048, %v1049
        %v1051 = vrot.slane %v800, 5
        %v1052 = vrot.slane %v998, 5
        %v1053 = vsel %vm999, %v1051, %v1052
        %v1054 = vld [vmem:[#allocation3] sm:$0xff]
        %v1055 = vld [vmem:[#allocation3 + $0x8] sm:$0xff]
        %v1056 = vld [vmem:[#allocation3 + $0x10] sm:$0xff]
        %v1057 = vld [vmem:[#allocation3 + $0x18] sm:$0xff]
        %v1058 = vld [vmem:[#allocation3 + $0x20] sm:$0xff]
        %v1059 = vld [vmem:[#allocation3 + $0x28] sm:$0xff]
        %v1060 = vld [vmem:[#allocation3 + $0x30] sm:$0xff]
        %v1061 = vld [vmem:[#allocation3 + $0x38] sm:$0xff]
        %v1062 = vld [vmem:[#allocation3 + $0x40] sm:$0xff]
        %v1063 = vld [vmem:[#allocation3 + $0x48] sm:$0xff]
        %v1064 = vld [vmem:[#allocation3 + $0x50] sm:$0xff]
        %v1065 = vld [vmem:[#allocation3 + $0x58] sm:$0xff]
        %v1066 = vld [vmem:[#allocation3 + $0x60] sm:$0xff]
        %v1067 = vld [vmem:[#allocation3 + $0x68] sm:$0xff]
        %v1068 = vld [vmem:[#allocation3 + $0x70] sm:$0xff]
        %v1069 = vld [vmem:[#allocation3 + $0x78] sm:$0xff]
        %v1070 = vld [vmem:[#allocation3 + $0x80] sm:$0xff]
        %v1071 = vld [vmem:[#allocation3 + $0x88] sm:$0xff]
        %v1072 = vld [vmem:[#allocation3 + $0x90] sm:$0xff]
        %v1073 = vld [vmem:[#allocation3 + $0x98] sm:$0xff]
        %v1074 = vld [vmem:[#allocation3 + $0xa0] sm:$0xff]
        %v1075 = vld [vmem:[#allocation3 + $0xa8] sm:$0xff]
        %v1076 = vld [vmem:[#allocation3 + $0xb0] sm:$0xff]
        %v1077 = vld [vmem:[#allocation3 + $0xb8] sm:$0xff]
        %v1078 = vld [vmem:[#allocation3 + $0xc0] sm:$0xff]
        %v1079 = vld [vmem:[#allocation3 + $0xc8] sm:$0xff]
        %v1080 = vld [vmem:[#allocation3 + $0xd0] sm:$0xff]
        %v1081 = vld [vmem:[#allocation3 + $0xd8] sm:$0xff]
        %v1082 = vld [vmem:[#allocation3 + $0xe0] sm:$0xff]
        %v1083 = vld [vmem:[#allocation3 + $0xe8] sm:$0xff]
        %v1084 = vld [vmem:[#allocation3 + $0xf0] sm:$0xff]
        %v1085 = vld [vmem:[#allocation3 + $0xf8] sm:$0xff]
        %s1086 = smul.u32 %s29, 128
        %s1087 = sshra.s32 %s1086, 3
        %s1088 = sand.u32 %s1086, 7
        %s1089 = smul.addr %s1087, 4
        %s1090 = scalar_lea.vmem [#allocation7], %s1089
        %v1091 = vld [vmem:[%s1090] sm:$0xf]
        %v1092 = vld [vmem:[%s1090 + $0x4] sm:$0xf]
        %v1093 = vld [vmem:[%s1090 + $0x8] sm:$0xf]
        %v1094 = vld [vmem:[%s1090 + $0xc] sm:$0xf]
        %v1095 = vld [vmem:[%s1090 + $0x10] sm:$0xf]
        %v1096 = vld [vmem:[%s1090 + $0x14] sm:$0xf]
        %v1097 = vld [vmem:[%s1090 + $0x18] sm:$0xf]
        %v1098 = vld [vmem:[%s1090 + $0x1c] sm:$0xf]
        %v1099 = vld [vmem:[%s1090 + $0x20] sm:$0xf]
        %v1100 = vld [vmem:[%s1090 + $0x24] sm:$0xf]
        %v1101 = vld [vmem:[%s1090 + $0x28] sm:$0xf]
        %v1102 = vld [vmem:[%s1090 + $0x2c] sm:$0xf]
        %v1103 = vld [vmem:[%s1090 + $0x30] sm:$0xf]
        %v1104 = vld [vmem:[%s1090 + $0x34] sm:$0xf]
        %v1105 = vld [vmem:[%s1090 + $0x38] sm:$0xf]
        %v1106 = vld [vmem:[%s1090 + $0x3c] sm:$0xf]
        %v1107 = vld [vmem:[%s1090 + $0x100] sm:$0xf]
        %v1108 = vld [vmem:[%s1090 + $0x104] sm:$0xf]
        %v1109 = vld [vmem:[%s1090 + $0x108] sm:$0xf]
        %v1110 = vld [vmem:[%s1090 + $0x10c] sm:$0xf]
        %v1111 = vld [vmem:[%s1090 + $0x110] sm:$0xf]
        %v1112 = vld [vmem:[%s1090 + $0x114] sm:$0xf]
        %v1113 = vld [vmem:[%s1090 + $0x118] sm:$0xf]
        %v1114 = vld [vmem:[%s1090 + $0x11c] sm:$0xf]
        %v1115 = vld [vmem:[%s1090 + $0x120] sm:$0xf]
        %v1116 = vld [vmem:[%s1090 + $0x124] sm:$0xf]
        %v1117 = vld [vmem:[%s1090 + $0x128] sm:$0xf]
        %v1118 = vld [vmem:[%s1090 + $0x12c] sm:$0xf]
        %v1119 = vld [vmem:[%s1090 + $0x130] sm:$0xf]
        %v1120 = vld [vmem:[%s1090 + $0x134] sm:$0xf]
        %v1121 = vld [vmem:[%s1090 + $0x138] sm:$0xf]
        %v1122 = vld [vmem:[%s1090 + $0x13c] sm:$0xf]
        %v1123 = vld [vmem:[%s1090 + $0x200] sm:$0xf]
        %v1124 = vld [vmem:[%s1090 + $0x204] sm:$0xf]
        %v1125 = vld [vmem:[%s1090 + $0x208] sm:$0xf]
        %v1126 = vld [vmem:[%s1090 + $0x20c] sm:$0xf]
        %v1127 = vld [vmem:[%s1090 + $0x210] sm:$0xf]
        %v1128 = vld [vmem:[%s1090 + $0x214] sm:$0xf]
        %v1129 = vld [vmem:[%s1090 + $0x218] sm:$0xf]
        %v1130 = vld [vmem:[%s1090 + $0x21c] sm:$0xf]
        %v1131 = vld [vmem:[%s1090 + $0x220] sm:$0xf]
        %v1132 = vld [vmem:[%s1090 + $0x224] sm:$0xf]
        %v1133 = vld [vmem:[%s1090 + $0x228] sm:$0xf]
        %v1134 = vld [vmem:[%s1090 + $0x22c] sm:$0xf]
        %v1135 = vld [vmem:[%s1090 + $0x230] sm:$0xf]
        %v1136 = vld [vmem:[%s1090 + $0x234] sm:$0xf]
        %v1137 = vld [vmem:[%s1090 + $0x238] sm:$0xf]
        %v1138 = vld [vmem:[%s1090 + $0x23c] sm:$0xf]
        %vm1139 = vsmask.f32 4352
        %v1141 = vshrl.u32 %v747, 16
        %v1143 = vrot.slane %v1141, 3
        %v1144 = vshll.u32 %v747, 16
        %v1146 = vrot.slane %v1144, 4
        %v1147 = vor.u32 %v1143, %v1146
        %v1149 = vshrl.u32 %v748, 16
        %v1151 = vrot.slane %v1149, 3
        %v1152 = vshll.u32 %v748, 16
        %v1154 = vrot.slane %v1152, 4
        %v1155 = vor.u32 %v1151, %v1154
        %v1156 = vsel %vm1139, %v1147, %v1155
        %v1158 = vshrl.u32 %v808, 16
        %v1160 = vrot.slane %v1158, 3
        %v1161 = vshll.u32 %v808, 16
        %v1163 = vrot.slane %v1161, 4
        %v1164 = vor.u32 %v1160, %v1163
        %v1165 = vsel %vm1139, %v1164, %v1164
        %v1167 = vshrl.u32 %v1000, 16
        %v1169 = vrot.slane %v1167, 3
        %v1170 = vshll.u32 %v1000, 16
        %v1172 = vrot.slane %v1170, 4
        %v1173 = vor.u32 %v1169, %v1172
        %v1175 = vshrl.u32 %v1002, 16
        %v1177 = vrot.slane %v1175, 3
        %v1178 = vshll.u32 %v1002, 16
        %v1180 = vrot.slane %v1178, 4
        %v1181 = vor.u32 %v1177, %v1180
        %v1182 = vsel %vm1139, %v1173, %v1181
        %v1184 = vshrl.u32 %v749, 16
        %v1186 = vrot.slane %v1184, 3
        %v1187 = vshll.u32 %v749, 16
        %v1189 = vrot.slane %v1187, 4
        %v1190 = vor.u32 %v1186, %v1189
        %v1192 = vshrl.u32 %v750, 16
        %v1194 = vrot.slane %v1192, 3
        %v1195 = vshll.u32 %v750, 16
        %v1197 = vrot.slane %v1195, 4
        %v1198 = vor.u32 %v1194, %v1197
        %v1199 = vsel %vm1139, %v1190, %v1198
        %v1201 = vshrl.u32 %v816, 16
        %v1203 = vrot.slane %v1201, 3
        %v1204 = vshll.u32 %v816, 16
        %v1206 = vrot.slane %v1204, 4
        %v1207 = vor.u32 %v1203, %v1206
        %v1208 = vsel %vm1139, %v1207, %v1207
        %v1210 = vshrl.u32 %v1003, 16
        %v1212 = vrot.slane %v1210, 3
        %v1213 = vshll.u32 %v1003, 16
        %v1215 = vrot.slane %v1213, 4
        %v1216 = vor.u32 %v1212, %v1215
        %v1218 = vshrl.u32 %v1005, 16
        %v1220 = vrot.slane %v1218, 3
        %v1221 = vshll.u32 %v1005, 16
        %v1223 = vrot.slane %v1221, 4
        %v1224 = vor.u32 %v1220, %v1223
        %v1225 = vsel %vm1139, %v1216, %v1224
        %v1227 = vshrl.u32 %v751, 16
        %v1229 = vrot.slane %v1227, 3
        %v1230 = vshll.u32 %v751, 16
        %v1232 = vrot.slane %v1230, 4
        %v1233 = vor.u32 %v1229, %v1232
        %v1235 = vshrl.u32 %v752, 16
        %v1237 = vrot.slane %v1235, 3
        %v1238 = vshll.u32 %v752, 16
        %v1240 = vrot.slane %v1238, 4
        %v1241 = vor.u32 %v1237, %v1240
        %v1242 = vsel %vm1139, %v1233, %v1241
        %v1244 = vshrl.u32 %v824, 16
        %v1246 = vrot.slane %v1244, 3
        %v1247 = vshll.u32 %v824, 16
        %v1249 = vrot.slane %v1247, 4
        %v1250 = vor.u32 %v1246, %v1249
        %v1251 = vsel %vm1139, %v1250, %v1250
        %v1253 = vshrl.u32 %v1006, 16
        %v1255 = vrot.slane %v1253, 3
        %v1256 = vshll.u32 %v1006, 16
        %v1258 = vrot.slane %v1256, 4
        %v1259 = vor.u32 %v1255, %v1258
        %v1261 = vshrl.u32 %v1008, 16
        %v1263 = vrot.slane %v1261, 3
        %v1264 = vshll.u32 %v1008, 16
        %v1266 = vrot.slane %v1264, 4
        %v1267 = vor.u32 %v1263, %v1266
        %v1268 = vsel %vm1139, %v1259, %v1267
        %v1270 = vshrl.u32 %v753, 16
        %v1272 = vrot.slane %v1270, 3
        %v1273 = vshll.u32 %v753, 16
        %v1275 = vrot.slane %v1273, 4
        %v1276 = vor.u32 %v1272, %v1275
        %v1278 = vshrl.u32 %v754, 16
        %v1280 = vrot.slane %v1278, 3
        %v1281 = vshll.u32 %v754, 16
        %v1283 = vrot.slane %v1281, 4
        %v1284 = vor.u32 %v1280, %v1283
        %v1285 = vsel %vm1139, %v1276, %v1284
        %v1287 = vshrl.u32 %v832, 16
        %v1289 = vrot.slane %v1287, 3
        %v1290 = vshll.u32 %v832, 16
        %v1292 = vrot.slane %v1290, 4
        %v1293 = vor.u32 %v1289, %v1292
        %v1294 = vsel %vm1139, %v1293, %v1293
        %v1296 = vshrl.u32 %v1009, 16
        %v1298 = vrot.slane %v1296, 3
        %v1299 = vshll.u32 %v1009, 16
        %v1301 = vrot.slane %v1299, 4
        %v1302 = vor.u32 %v1298, %v1301
        %v1304 = vshrl.u32 %v1011, 16
        %v1306 = vrot.slane %v1304, 3
        %v1307 = vshll.u32 %v1011, 16
        %v1309 = vrot.slane %v1307, 4
        %v1310 = vor.u32 %v1306, %v1309
        %v1311 = vsel %vm1139, %v1302, %v1310
        %v1313 = vshrl.u32 %v755, 16
        %v1315 = vrot.slane %v1313, 3
        %v1316 = vshll.u32 %v755, 16
        %v1318 = vrot.slane %v1316, 4
        %v1319 = vor.u32 %v1315, %v1318
        %v1321 = vshrl.u32 %v756, 16
        %v1323 = vrot.slane %v1321, 3
        %v1324 = vshll.u32 %v756, 16
        %v1326 = vrot.slane %v1324, 4
        %v1327 = vor.u32 %v1323, %v1326
        %v1328 = vsel %vm1139, %v1319, %v1327
        %v1330 = vshrl.u32 %v840, 16
        %v1332 = vrot.slane %v1330, 3
        %v1333 = vshll.u32 %v840, 16
        %v1335 = vrot.slane %v1333, 4
        %v1336 = vor.u32 %v1332, %v1335
        %v1337 = vsel %vm1139, %v1336, %v1336
        %v1339 = vshrl.u32 %v1012, 16
        %v1341 = vrot.slane %v1339, 3
        %v1342 = vshll.u32 %v1012, 16
        %v1344 = vrot.slane %v1342, 4
        %v1345 = vor.u32 %v1341, %v1344
        %v1347 = vshrl.u32 %v1014, 16
        %v1349 = vrot.slane %v1347, 3
        %v1350 = vshll.u32 %v1014, 16
        %v1352 = vrot.slane %v1350, 4
        %v1353 = vor.u32 %v1349, %v1352
        %v1354 = vsel %vm1139, %v1345, %v1353
        %v1356 = vshrl.u32 %v757, 16
        %v1358 = vrot.slane %v1356, 3
        %v1359 = vshll.u32 %v757, 16
        %v1361 = vrot.slane %v1359, 4
        %v1362 = vor.u32 %v1358, %v1361
        %v1364 = vshrl.u32 %v758, 16
        %v1366 = vrot.slane %v1364, 3
        %v1367 = vshll.u32 %v758, 16
        %v1369 = vrot.slane %v1367, 4
        %v1370 = vor.u32 %v1366, %v1369
        %v1371 = vsel %vm1139, %v1362, %v1370
        %v1373 = vshrl.u32 %v848, 16
        %v1375 = vrot.slane %v1373, 3
        %v1376 = vshll.u32 %v848, 16
        %v1378 = vrot.slane %v1376, 4
        %v1379 = vor.u32 %v1375, %v1378
        %v1380 = vsel %vm1139, %v1379, %v1379
        %v1382 = vshrl.u32 %v1015, 16
        %v1384 = vrot.slane %v1382, 3
        %v1385 = vshll.u32 %v1015, 16
        %v1387 = vrot.slane %v1385, 4
        %v1388 = vor.u32 %v1384, %v1387
        %v1390 = vshrl.u32 %v1017, 16
        %v1392 = vrot.slane %v1390, 3
        %v1393 = vshll.u32 %v1017, 16
        %v1395 = vrot.slane %v1393, 4
        %v1396 = vor.u32 %v1392, %v1395
        %v1397 = vsel %vm1139, %v1388, %v1396
        %v1399 = vshrl.u32 %v759, 16
        %v1401 = vrot.slane %v1399, 3
        %v1402 = vshll.u32 %v759, 16
        %v1404 = vrot.slane %v1402, 4
        %v1405 = vor.u32 %v1401, %v1404
        %v1407 = vshrl.u32 %v760, 16
        %v1409 = vrot.slane %v1407, 3
        %v1410 = vshll.u32 %v760, 16
        %v1412 = vrot.slane %v1410, 4
        %v1413 = vor.u32 %v1409, %v1412
        %v1414 = vsel %vm1139, %v1405, %v1413
        %v1416 = vshrl.u32 %v856, 16
        %v1418 = vrot.slane %v1416, 3
        %v1419 = vshll.u32 %v856, 16
        %v1421 = vrot.slane %v1419, 4
        %v1422 = vor.u32 %v1418, %v1421
        %v1423 = vsel %vm1139, %v1422, %v1422
        %v1425 = vshrl.u32 %v1018, 16
        %v1427 = vrot.slane %v1425, 3
        %v1428 = vshll.u32 %v1018, 16
        %v1430 = vrot.slane %v1428, 4
        %v1431 = vor.u32 %v1427, %v1430
        %v1433 = vshrl.u32 %v1020, 16
        %v1435 = vrot.slane %v1433, 3
        %v1436 = vshll.u32 %v1020, 16
        %v1438 = vrot.slane %v1436, 4
        %v1439 = vor.u32 %v1435, %v1438
        %v1440 = vsel %vm1139, %v1431, %v1439
        %v1442 = vshrl.u32 %v761, 16
        %v1444 = vrot.slane %v1442, 3
        %v1445 = vshll.u32 %v761, 16
        %v1447 = vrot.slane %v1445, 4
        %v1448 = vor.u32 %v1444, %v1447
        %v1450 = vshrl.u32 %v762, 16
        %v1452 = vrot.slane %v1450, 3
        %v1453 = vshll.u32 %v762, 16
        %v1455 = vrot.slane %v1453, 4
        %v1456 = vor.u32 %v1452, %v1455
        %v1457 = vsel %vm1139, %v1448, %v1456
        %v1459 = vshrl.u32 %v864, 16
        %v1461 = vrot.slane %v1459, 3
        %v1462 = vshll.u32 %v864, 16
        %v1464 = vrot.slane %v1462, 4
        %v1465 = vor.u32 %v1461, %v1464
        %v1466 = vsel %vm1139, %v1465, %v1465
        %v1468 = vshrl.u32 %v1021, 16
        %v1470 = vrot.slane %v1468, 3
        %v1471 = vshll.u32 %v1021, 16
        %v1473 = vrot.slane %v1471, 4
        %v1474 = vor.u32 %v1470, %v1473
        %v1476 = vshrl.u32 %v1023, 16
        %v1478 = vrot.slane %v1476, 3
        %v1479 = vshll.u32 %v1023, 16
        %v1481 = vrot.slane %v1479, 4
        %v1482 = vor.u32 %v1478, %v1481
        %v1483 = vsel %vm1139, %v1474, %v1482
        %v1485 = vshrl.u32 %v763, 16
        %v1487 = vrot.slane %v1485, 3
        %v1488 = vshll.u32 %v763, 16
        %v1490 = vrot.slane %v1488, 4
        %v1491 = vor.u32 %v1487, %v1490
        %v1493 = vshrl.u32 %v764, 16
        %v1495 = vrot.slane %v1493, 3
        %v1496 = vshll.u32 %v764, 16
        %v1498 = vrot.slane %v1496, 4
        %v1499 = vor.u32 %v1495, %v1498
        %v1500 = vsel %vm1139, %v1491, %v1499
        %v1502 = vshrl.u32 %v872, 16
        %v1504 = vrot.slane %v1502, 3
        %v1505 = vshll.u32 %v872, 16
        %v1507 = vrot.slane %v1505, 4
        %v1508 = vor.u32 %v1504, %v1507
        %v1509 = vsel %vm1139, %v1508, %v1508
        %v1511 = vshrl.u32 %v1024, 16
        %v1513 = vrot.slane %v1511, 3
        %v1514 = vshll.u32 %v1024, 16
        %v1516 = vrot.slane %v1514, 4
        %v1517 = vor.u32 %v1513, %v1516
        %v1519 = vshrl.u32 %v1026, 16
        %v1521 = vrot.slane %v1519, 3
        %v1522 = vshll.u32 %v1026, 16
        %v1524 = vrot.slane %v1522, 4
        %v1525 = vor.u32 %v1521, %v1524
        %v1526 = vsel %vm1139, %v1517, %v1525
        %v1528 = vshrl.u32 %v765, 16
        %v1530 = vrot.slane %v1528, 3
        %v1531 = vshll.u32 %v765, 16
        %v1533 = vrot.slane %v1531, 4
        %v1534 = vor.u32 %v1530, %v1533
        %v1536 = vshrl.u32 %v766, 16
        %v1538 = vrot.slane %v1536, 3
        %v1539 = vshll.u32 %v766, 16
        %v1541 = vrot.slane %v1539, 4
        %v1542 = vor.u32 %v1538, %v1541
        %v1543 = vsel %vm1139, %v1534, %v1542
        %v1545 = vshrl.u32 %v880, 16
        %v1547 = vrot.slane %v1545, 3
        %v1548 = vshll.u32 %v880, 16
        %v1550 = vrot.slane %v1548, 4
        %v1551 = vor.u32 %v1547, %v1550
        %v1552 = vsel %vm1139, %v1551, %v1551
        %v1554 = vshrl.u32 %v1027, 16
        %v1556 = vrot.slane %v1554, 3
        %v1557 = vshll.u32 %v1027, 16
        %v1559 = vrot.slane %v1557, 4
        %v1560 = vor.u32 %v1556, %v1559
        %v1562 = vshrl.u32 %v1029, 16
        %v1564 = vrot.slane %v1562, 3
        %v1565 = vshll.u32 %v1029, 16
        %v1567 = vrot.slane %v1565, 4
        %v1568 = vor.u32 %v1564, %v1567
        %v1569 = vsel %vm1139, %v1560, %v1568
        %v1571 = vshrl.u32 %v767, 16
        %v1573 = vrot.slane %v1571, 3
        %v1574 = vshll.u32 %v767, 16
        %v1576 = vrot.slane %v1574, 4
        %v1577 = vor.u32 %v1573, %v1576
        %v1579 = vshrl.u32 %v768, 16
        %v1581 = vrot.slane %v1579, 3
        %v1582 = vshll.u32 %v768, 16
        %v1584 = vrot.slane %v1582, 4
        %v1585 = vor.u32 %v1581, %v1584
        %v1586 = vsel %vm1139, %v1577, %v1585
        %v1588 = vshrl.u32 %v888, 16
        %v1590 = vrot.slane %v1588, 3
        %v1591 = vshll.u32 %v888, 16
        %v1593 = vrot.slane %v1591, 4
        %v1594 = vor.u32 %v1590, %v1593
        %v1595 = vsel %vm1139, %v1594, %v1594
        %v1597 = vshrl.u32 %v1030, 16
        %v1599 = vrot.slane %v1597, 3
        %v1600 = vshll.u32 %v1030, 16
        %v1602 = vrot.slane %v1600, 4
        %v1603 = vor.u32 %v1599, %v1602
        %v1605 = vshrl.u32 %v1032, 16
        %v1607 = vrot.slane %v1605, 3
        %v1608 = vshll.u32 %v1032, 16
        %v1610 = vrot.slane %v1608, 4
        %v1611 = vor.u32 %v1607, %v1610
        %v1612 = vsel %vm1139, %v1603, %v1611
        %v1614 = vshrl.u32 %v769, 16
        %v1616 = vrot.slane %v1614, 3
        %v1617 = vshll.u32 %v769, 16
        %v1619 = vrot.slane %v1617, 4
        %v1620 = vor.u32 %v1616, %v1619
        %v1622 = vshrl.u32 %v770, 16
        %v1624 = vrot.slane %v1622, 3
        %v1625 = vshll.u32 %v770, 16
        %v1627 = vrot.slane %v1625, 4
        %v1628 = vor.u32 %v1624, %v1627
        %v1629 = vsel %vm1139, %v1620, %v1628
        %v1631 = vshrl.u32 %v896, 16
        %v1633 = vrot.slane %v1631, 3
        %v1634 = vshll.u32 %v896, 16
        %v1636 = vrot.slane %v1634, 4
        %v1637 = vor.u32 %v1633, %v1636
        %v1638 = vsel %vm1139, %v1637, %v1637
        %v1640 = vshrl.u32 %v1033, 16
        %v1642 = vrot.slane %v1640, 3
        %v1643 = vshll.u32 %v1033, 16
        %v1645 = vrot.slane %v1643, 4
        %v1646 = vor.u32 %v1642, %v1645
        %v1648 = vshrl.u32 %v1035, 16
        %v1650 = vrot.slane %v1648, 3
        %v1651 = vshll.u32 %v1035, 16
        %v1653 = vrot.slane %v1651, 4
        %v1654 = vor.u32 %v1650, %v1653
        %v1655 = vsel %vm1139, %v1646, %v1654
        %v1657 = vshrl.u32 %v771, 16
        %v1659 = vrot.slane %v1657, 3
        %v1660 = vshll.u32 %v771, 16
        %v1662 = vrot.slane %v1660, 4
        %v1663 = vor.u32 %v1659, %v1662
        %v1665 = vshrl.u32 %v772, 16
        %v1667 = vrot.slane %v1665, 3
        %v1668 = vshll.u32 %v772, 16
        %v1670 = vrot.slane %v1668, 4
        %v1671 = vor.u32 %v1667, %v1670
        %v1672 = vsel %vm1139, %v1663, %v1671
        %v1674 = vshrl.u32 %v904, 16
        %v1676 = vrot.slane %v1674, 3
        %v1677 = vshll.u32 %v904, 16
        %v1679 = vrot.slane %v1677, 4
        %v1680 = vor.u32 %v1676, %v1679
        %v1681 = vsel %vm1139, %v1680, %v1680
        %v1683 = vshrl.u32 %v1036, 16
        %v1685 = vrot.slane %v1683, 3
        %v1686 = vshll.u32 %v1036, 16
        %v1688 = vrot.slane %v1686, 4
        %v1689 = vor.u32 %v1685, %v1688
        %v1691 = vshrl.u32 %v1038, 16
        %v1693 = vrot.slane %v1691, 3
        %v1694 = vshll.u32 %v1038, 16
        %v1696 = vrot.slane %v1694, 4
        %v1697 = vor.u32 %v1693, %v1696
        %v1698 = vsel %vm1139, %v1689, %v1697
        %v1700 = vshrl.u32 %v773, 16
        %v1702 = vrot.slane %v1700, 3
        %v1703 = vshll.u32 %v773, 16
        %v1705 = vrot.slane %v1703, 4
        %v1706 = vor.u32 %v1702, %v1705
        %v1708 = vshrl.u32 %v774, 16
        %v1710 = vrot.slane %v1708, 3
        %v1711 = vshll.u32 %v774, 16
        %v1713 = vrot.slane %v1711, 4
        %v1714 = vor.u32 %v1710, %v1713
        %v1715 = vsel %vm1139, %v1706, %v1714
        %v1717 = vshrl.u32 %v912, 16
        %v1719 = vrot.slane %v1717, 3
        %v1720 = vshll.u32 %v912, 16
        %v1722 = vrot.slane %v1720, 4
        %v1723 = vor.u32 %v1719, %v1722
        %v1724 = vsel %vm1139, %v1723, %v1723
        %v1726 = vshrl.u32 %v1039, 16
        %v1728 = vrot.slane %v1726, 3
        %v1729 = vshll.u32 %v1039, 16
        %v1731 = vrot.slane %v1729, 4
        %v1732 = vor.u32 %v1728, %v1731
        %v1734 = vshrl.u32 %v1041, 16
        %v1736 = vrot.slane %v1734, 3
        %v1737 = vshll.u32 %v1041, 16
        %v1739 = vrot.slane %v1737, 4
        %v1740 = vor.u32 %v1736, %v1739
        %v1741 = vsel %vm1139, %v1732, %v1740
        %v1743 = vshrl.u32 %v775, 16
        %v1745 = vrot.slane %v1743, 3
        %v1746 = vshll.u32 %v775, 16
        %v1748 = vrot.slane %v1746, 4
        %v1749 = vor.u32 %v1745, %v1748
        %v1751 = vshrl.u32 %v776, 16
        %v1753 = vrot.slane %v1751, 3
        %v1754 = vshll.u32 %v776, 16
        %v1756 = vrot.slane %v1754, 4
        %v1757 = vor.u32 %v1753, %v1756
        %v1758 = vsel %vm1139, %v1749, %v1757
        %v1760 = vshrl.u32 %v920, 16
        %v1762 = vrot.slane %v1760, 3
        %v1763 = vshll.u32 %v920, 16
        %v1765 = vrot.slane %v1763, 4
        %v1766 = vor.u32 %v1762, %v1765
        %v1767 = vsel %vm1139, %v1766, %v1766
        %v1769 = vshrl.u32 %v1042, 16
        %v1771 = vrot.slane %v1769, 3
        %v1772 = vshll.u32 %v1042, 16
        %v1774 = vrot.slane %v1772, 4
        %v1775 = vor.u32 %v1771, %v1774
        %v1777 = vshrl.u32 %v1044, 16
        %v1779 = vrot.slane %v1777, 3
        %v1780 = vshll.u32 %v1044, 16
        %v1782 = vrot.slane %v1780, 4
        %v1783 = vor.u32 %v1779, %v1782
        %v1784 = vsel %vm1139, %v1775, %v1783
        %v1786 = vshrl.u32 %v777, 16
        %v1788 = vrot.slane %v1786, 3
        %v1789 = vshll.u32 %v777, 16
        %v1791 = vrot.slane %v1789, 4
        %v1792 = vor.u32 %v1788, %v1791
        %v1794 = vshrl.u32 %v778, 16
        %v1796 = vrot.slane %v1794, 3
        %v1797 = vshll.u32 %v778, 16
        %v1799 = vrot.slane %v1797, 4
        %v1800 = vor.u32 %v1796, %v1799
        %v1801 = vsel %vm1139, %v1792, %v1800
        %v1803 = vshrl.u32 %v928, 16
        %v1805 = vrot.slane %v1803, 3
        %v1806 = vshll.u32 %v928, 16
        %v1808 = vrot.slane %v1806, 4
        %v1809 = vor.u32 %v1805, %v1808
        %v1810 = vsel %vm1139, %v1809, %v1809
        %v1812 = vshrl.u32 %v1045, 16
        %v1814 = vrot.slane %v1812, 3
        %v1815 = vshll.u32 %v1045, 16
        %v1817 = vrot.slane %v1815, 4
        %v1818 = vor.u32 %v1814, %v1817
        %v1820 = vshrl.u32 %v1047, 16
        %v1822 = vrot.slane %v1820, 3
        %v1823 = vshll.u32 %v1047, 16
        %v1825 = vrot.slane %v1823, 4
        %v1826 = vor.u32 %v1822, %v1825
        %v1827 = vsel %vm1139, %v1818, %v1826
        %v1924 = vunpack.c.l.b16 %v1091
        %v1925 = vunpack.c.l.b16 %v1092
        %v1926 = vunpack.c.l.b16 %v1093
        %v1927 = vunpack.c.l.b16 %v1094
        %v1928 = vunpack.c.l.b16 %v1095
        %v1929 = vunpack.c.l.b16 %v1096
        %v1930 = vunpack.c.l.b16 %v1097
        %v1931 = vunpack.c.l.b16 %v1098
        %v1932 = vunpack.c.l.b16 %v1099
        %v1933 = vunpack.c.l.b16 %v1100
        %v1934 = vunpack.c.l.b16 %v1101
        %v1935 = vunpack.c.l.b16 %v1102
        %v1936 = vunpack.c.l.b16 %v1103
        %v1937 = vunpack.c.l.b16 %v1104
        %v1938 = vunpack.c.l.b16 %v1105
        %v1939 = vunpack.c.l.b16 %v1106
        %v1940 = vunpack.c.l.b16 %v1107
        %v1941 = vunpack.c.l.b16 %v1108
        %v1942 = vunpack.c.l.b16 %v1109
        %v1943 = vunpack.c.l.b16 %v1110
        %v1944 = vunpack.c.l.b16 %v1111
        %v1945 = vunpack.c.l.b16 %v1112
        %v1946 = vunpack.c.l.b16 %v1113
        %v1947 = vunpack.c.l.b16 %v1114
        %v1948 = vunpack.c.l.b16 %v1115
        %v1949 = vunpack.c.l.b16 %v1116
        %v1950 = vunpack.c.l.b16 %v1117
        %v1951 = vunpack.c.l.b16 %v1118
        %v1952 = vunpack.c.l.b16 %v1119
        %v1953 = vunpack.c.l.b16 %v1120
        %v1954 = vunpack.c.l.b16 %v1121
        %v1955 = vunpack.c.l.b16 %v1122
        %v1956 = vunpack.c.l.b16 %v1123
        %v1957 = vunpack.c.l.b16 %v1124
        %v1958 = vunpack.c.l.b16 %v1125
        %v1959 = vunpack.c.l.b16 %v1126
        %v1960 = vunpack.c.l.b16 %v1127
        %v1961 = vunpack.c.l.b16 %v1128
        %v1962 = vunpack.c.l.b16 %v1129
        %v1963 = vunpack.c.l.b16 %v1130
        %v1964 = vunpack.c.l.b16 %v1131
        %v1965 = vunpack.c.l.b16 %v1132
        %v1966 = vunpack.c.l.b16 %v1133
        %v1967 = vunpack.c.l.b16 %v1134
        %v1968 = vunpack.c.l.b16 %v1135
        %v1969 = vunpack.c.l.b16 %v1136
        %v1970 = vunpack.c.l.b16 %v1137
        %v1971 = vunpack.c.l.b16 %v1138
        %v1972 = vpack.c.b16 %v1925, %v1924
        %v1973 = vpack.c.b16 %v1927, %v1926
        %v1974 = vpack.c.b16 %v1929, %v1928
        %v1975 = vpack.c.b16 %v1931, %v1930
        %v1976 = vpack.c.b16 %v1933, %v1932
        %v1977 = vpack.c.b16 %v1935, %v1934
        %v1978 = vpack.c.b16 %v1937, %v1936
        %v1979 = vpack.c.b16 %v1939, %v1938
        %v1980 = vpack.c.b16 %v1941, %v1940
        %v1981 = vpack.c.b16 %v1943, %v1942
        %v1982 = vpack.c.b16 %v1945, %v1944
        %v1983 = vpack.c.b16 %v1947, %v1946
        %v1984 = vpack.c.b16 %v1949, %v1948
        %v1985 = vpack.c.b16 %v1951, %v1950
        %v1986 = vpack.c.b16 %v1953, %v1952
        %v1987 = vpack.c.b16 %v1955, %v1954
        %v1988 = vpack.c.b16 %v1957, %v1956
        %v1989 = vpack.c.b16 %v1959, %v1958
        %v1990 = vpack.c.b16 %v1961, %v1960
        %v1991 = vpack.c.b16 %v1963, %v1962
        %v1992 = vpack.c.b16 %v1965, %v1964
        %v1993 = vpack.c.b16 %v1967, %v1966
        %v1994 = vpack.c.b16 %v1969, %v1968
        %v1995 = vpack.c.b16 %v1971, %v1970
        %2020 = vmatpush.bf16.msra.mxu0 %v1979
        %2021 = vmatpush.bf16.msra.mxu0 %v1978
        %2022 = vmatpush.bf16.msra.mxu0 %v1977
        %2023 = vmatpush.bf16.msra.mxu0 %v1976
        %2024 = vmatpush.bf16.msra.mxu0 %v1975
        %2025 = vmatpush.bf16.msra.mxu0 %v1974
        %2026 = vmatpush.bf16.msra.mxu0 %v1973
        %2027 = vmatpush.bf16.msra.mxu0 %v1972
        %2028 = vmatmul.bf16.gmra.mxu0 %v1156
        %v2029 = vpop.f32.mrf.mxu0
        %v2030 = vadd.f32 0.0, %v2029
        %v2031 = vpop.f32.mrf.mxu0
        %v2032 = vadd.f32 0.0, %v2031
        %2033 = vmatmul.bf16.gmra.mxu0 %v1199
        %v2034 = vpop.f32.mrf.mxu0
        %v2035 = vadd.f32 0.0, %v2034
        %v2036 = vpop.f32.mrf.mxu0
        %v2037 = vadd.f32 0.0, %v2036
        %2038 = vmatmul.bf16.gmra.mxu0 %v1242
        %v2039 = vpop.f32.mrf.mxu0
        %v2040 = vadd.f32 0.0, %v2039
        %v2041 = vpop.f32.mrf.mxu0
        %v2042 = vadd.f32 0.0, %v2041
        %2043 = vmatmul.bf16.gmra.mxu0 %v1285
        %v2044 = vpop.f32.mrf.mxu0
        %v2045 = vadd.f32 0.0, %v2044
        %v2046 = vpop.f32.mrf.mxu0
        %v2047 = vadd.f32 0.0, %v2046
        %2048 = vmatmul.bf16.gmra.mxu0 %v1328
        %v2049 = vpop.f32.mrf.mxu0
        %v2050 = vadd.f32 0.0, %v2049
        %v2051 = vpop.f32.mrf.mxu0
        %v2052 = vadd.f32 0.0, %v2051
        %2053 = vmatmul.bf16.gmra.mxu0 %v1371
        %v2054 = vpop.f32.mrf.mxu0
        %v2055 = vadd.f32 0.0, %v2054
        %v2056 = vpop.f32.mrf.mxu0
        %v2057 = vadd.f32 0.0, %v2056
        %2058 = vmatmul.bf16.gmra.mxu0 %v1414
        %v2059 = vpop.f32.mrf.mxu0
        %v2060 = vadd.f32 0.0, %v2059
        %v2061 = vpop.f32.mrf.mxu0
        %v2062 = vadd.f32 0.0, %v2061
        %2063 = vmatmul.bf16.gmra.mxu0 %v1457
        %v2064 = vpop.f32.mrf.mxu0
        %v2065 = vadd.f32 0.0, %v2064
        %v2066 = vpop.f32.mrf.mxu0
        %v2067 = vadd.f32 0.0, %v2066
        %2068 = vmatmul.bf16.gmra.mxu0 %v1500
        %v2069 = vpop.f32.mrf.mxu0
        %v2070 = vadd.f32 0.0, %v2069
        %v2071 = vpop.f32.mrf.mxu0
        %v2072 = vadd.f32 0.0, %v2071
        %2073 = vmatmul.bf16.gmra.mxu0 %v1543
        %v2074 = vpop.f32.mrf.mxu0
        %v2075 = vadd.f32 0.0, %v2074
        %v2076 = vpop.f32.mrf.mxu0
        %v2077 = vadd.f32 0.0, %v2076
        %2078 = vmatmul.bf16.gmra.mxu0 %v1586
        %v2079 = vpop.f32.mrf.mxu0
        %v2080 = vadd.f32 0.0, %v2079
        %v2081 = vpop.f32.mrf.mxu0
        %v2082 = vadd.f32 0.0, %v2081
        %2083 = vmatmul.bf16.gmra.mxu0 %v1629
        %v2084 = vpop.f32.mrf.mxu0
        %v2085 = vadd.f32 0.0, %v2084
        %v2086 = vpop.f32.mrf.mxu0
        %v2087 = vadd.f32 0.0, %v2086
        %2088 = vmatmul.bf16.gmra.mxu0 %v1672
        %v2089 = vpop.f32.mrf.mxu0
        %v2090 = vadd.f32 0.0, %v2089
        %v2091 = vpop.f32.mrf.mxu0
        %v2092 = vadd.f32 0.0, %v2091
        %2093 = vmatmul.bf16.gmra.mxu0 %v1715
        %v2094 = vpop.f32.mrf.mxu0
        %v2095 = vadd.f32 0.0, %v2094
        %v2096 = vpop.f32.mrf.mxu0
        %v2097 = vadd.f32 0.0, %v2096
        %2098 = vmatmul.bf16.gmra.mxu0 %v1758
        %v2099 = vpop.f32.mrf.mxu0
        %v2100 = vadd.f32 0.0, %v2099
        %v2101 = vpop.f32.mrf.mxu0
        %v2102 = vadd.f32 0.0, %v2101
        %2103 = vmatmul.bf16.gmra.mxu0 %v1801
        %v2104 = vpop.f32.mrf.mxu0
        %v2105 = vadd.f32 0.0, %v2104
        %v2106 = vpop.f32.mrf.mxu0
        %v2107 = vadd.f32 0.0, %v2106
        %2108 = vdwg.mxu0
        %2109 = vmatpush.bf16.msra.mxu0 %v1987
        %2110 = vmatpush.bf16.msra.mxu0 %v1986
        %2111 = vmatpush.bf16.msra.mxu0 %v1985
        %2112 = vmatpush.bf16.msra.mxu0 %v1984
        %2113 = vmatpush.bf16.msra.mxu0 %v1983
        %2114 = vmatpush.bf16.msra.mxu0 %v1982
        %2115 = vmatpush.bf16.msra.mxu0 %v1981
        %2116 = vmatpush.bf16.msra.mxu0 %v1980
        %2117 = vmatmul.bf16.gmra.mxu0 %v1165
        %v2118 = vpop.f32.mrf.mxu0
        %v2119 = vadd.f32 %v2030, %v2118
        %v2120 = vpop.f32.mrf.mxu0
        %v2121 = vadd.f32 %v2032, %v2120
        %2122 = vmatmul.bf16.gmra.mxu0 %v1208
        %v2123 = vpop.f32.mrf.mxu0
        %v2124 = vadd.f32 %v2035, %v2123
        %v2125 = vpop.f32.mrf.mxu0
        %v2126 = vadd.f32 %v2037, %v2125
        %2127 = vmatmul.bf16.gmra.mxu0 %v1251
        %v2128 = vpop.f32.mrf.mxu0
        %v2129 = vadd.f32 %v2040, %v2128
        %v2130 = vpop.f32.mrf.mxu0
        %v2131 = vadd.f32 %v2042, %v2130
        %2132 = vmatmul.bf16.gmra.mxu0 %v1294
        %v2133 = vpop.f32.mrf.mxu0
        %v2134 = vadd.f32 %v2045, %v2133
        %v2135 = vpop.f32.mrf.mxu0
        %v2136 = vadd.f32 %v2047, %v2135
        %2137 = vmatmul.bf16.gmra.mxu0 %v1337
        %v2138 = vpop.f32.mrf.mxu0
        %v2139 = vadd.f32 %v2050, %v2138
        %v2140 = vpop.f32.mrf.mxu0
        %v2141 = vadd.f32 %v2052, %v2140
        %2142 = vmatmul.bf16.gmra.mxu0 %v1380
        %v2143 = vpop.f32.mrf.mxu0
        %v2144 = vadd.f32 %v2055, %v2143
        %v2145 = vpop.f32.mrf.mxu0
        %v2146 = vadd.f32 %v2057, %v2145
        %2147 = vmatmul.bf16.gmra.mxu0 %v1423
        %v2148 = vpop.f32.mrf.mxu0
        %v2149 = vadd.f32 %v2060, %v2148
        %v2150 = vpop.f32.mrf.mxu0
        %v2151 = vadd.f32 %v2062, %v2150
        %2152 = vmatmul.bf16.gmra.mxu0 %v1466
        %v2153 = vpop.f32.mrf.mxu0
        %v2154 = vadd.f32 %v2065, %v2153
        %v2155 = vpop.f32.mrf.mxu0
        %v2156 = vadd.f32 %v2067, %v2155
        %2157 = vmatmul.bf16.gmra.mxu0 %v1509
        %v2158 = vpop.f32.mrf.mxu0
        %v2159 = vadd.f32 %v2070, %v2158
        %v2160 = vpop.f32.mrf.mxu0
        %v2161 = vadd.f32 %v2072, %v2160
        %2162 = vmatmul.bf16.gmra.mxu0 %v1552
        %v2163 = vpop.f32.mrf.mxu0
        %v2164 = vadd.f32 %v2075, %v2163
        %v2165 = vpop.f32.mrf.mxu0
        %v2166 = vadd.f32 %v2077, %v2165
        %2167 = vmatmul.bf16.gmra.mxu0 %v1595
        %v2168 = vpop.f32.mrf.mxu0
        %v2169 = vadd.f32 %v2080, %v2168
        %v2170 = vpop.f32.mrf.mxu0
        %v2171 = vadd.f32 %v2082, %v2170
        %2172 = vmatmul.bf16.gmra.mxu0 %v1638
        %v2173 = vpop.f32.mrf.mxu0
        %v2174 = vadd.f32 %v2085, %v2173
        %v2175 = vpop.f32.mrf.mxu0
        %v2176 = vadd.f32 %v2087, %v2175
        %2177 = vmatmul.bf16.gmra.mxu0 %v1681
        %v2178 = vpop.f32.mrf.mxu0
        %v2179 = vadd.f32 %v2090, %v2178
        %v2180 = vpop.f32.mrf.mxu0
        %v2181 = vadd.f32 %v2092, %v2180
        %2182 = vmatmul.bf16.gmra.mxu0 %v1724
        %v2183 = vpop.f32.mrf.mxu0
        %v2184 = vadd.f32 %v2095, %v2183
        %v2185 = vpop.f32.mrf.mxu0
        %v2186 = vadd.f32 %v2097, %v2185
        %2187 = vmatmul.bf16.gmra.mxu0 %v1767
        %v2188 = vpop.f32.mrf.mxu0
        %v2189 = vadd.f32 %v2100, %v2188
        %v2190 = vpop.f32.mrf.mxu0
        %v2191 = vadd.f32 %v2102, %v2190
        %2192 = vmatmul.bf16.gmra.mxu0 %v1810
        %v2193 = vpop.f32.mrf.mxu0
        %v2194 = vadd.f32 %v2105, %v2193
        %v2195 = vpop.f32.mrf.mxu0
        %v2196 = vadd.f32 %v2107, %v2195
        %2197 = vdwg.mxu0
        %2198 = vmatpush.bf16.msra.mxu0 %v1995
        %2199 = vmatpush.bf16.msra.mxu0 %v1994
        %2200 = vmatpush.bf16.msra.mxu0 %v1993
        %2201 = vmatpush.bf16.msra.mxu0 %v1992
        %2202 = vmatpush.bf16.msra.mxu0 %v1991
        %2203 = vmatpush.bf16.msra.mxu0 %v1990
        %2204 = vmatpush.bf16.msra.mxu0 %v1989
        %2205 = vmatpush.bf16.msra.mxu0 %v1988
        %2206 = vmatmul.bf16.gmra.mxu0 %v1182
        %v2207 = vpop.f32.mrf.mxu0
        %v2208 = vadd.f32 %v2119, %v2207
        %v2209 = vpop.f32.mrf.mxu0
        %v2210 = vadd.f32 %v2121, %v2209
        %2211 = vmatmul.bf16.gmra.mxu0 %v1225
        %v2212 = vpop.f32.mrf.mxu0
        %v2213 = vadd.f32 %v2124, %v2212
        %v2214 = vpop.f32.mrf.mxu0
        %v2215 = vadd.f32 %v2126, %v2214
        %2216 = vmatmul.bf16.gmra.mxu0 %v1268
        %v2217 = vpop.f32.mrf.mxu0
        %v2218 = vadd.f32 %v2129, %v2217
        %v2219 = vpop.f32.mrf.mxu0
        %v2220 = vadd.f32 %v2131, %v2219
        %2221 = vmatmul.bf16.gmra.mxu0 %v1311
        %v2222 = vpop.f32.mrf.mxu0
        %v2223 = vadd.f32 %v2134, %v2222
        %v2224 = vpop.f32.mrf.mxu0
        %v2225 = vadd.f32 %v2136, %v2224
        %2226 = vmatmul.bf16.gmra.mxu0 %v1354
        %v2227 = vpop.f32.mrf.mxu0
        %v2228 = vadd.f32 %v2139, %v2227
        %v2229 = vpop.f32.mrf.mxu0
        %v2230 = vadd.f32 %v2141, %v2229
        %2231 = vmatmul.bf16.gmra.mxu0 %v1397
        %v2232 = vpop.f32.mrf.mxu0
        %v2233 = vadd.f32 %v2144, %v2232
        %v2234 = vpop.f32.mrf.mxu0
        %v2235 = vadd.f32 %v2146, %v2234
        %2236 = vmatmul.bf16.gmra.mxu0 %v1440
        %v2237 = vpop.f32.mrf.mxu0
        %v2238 = vadd.f32 %v2149, %v2237
        %v2239 = vpop.f32.mrf.mxu0
        %v2240 = vadd.f32 %v2151, %v2239
        %2241 = vmatmul.bf16.gmra.mxu0 %v1483
        %v2242 = vpop.f32.mrf.mxu0
        %v2243 = vadd.f32 %v2154, %v2242
        %v2244 = vpop.f32.mrf.mxu0
        %v2245 = vadd.f32 %v2156, %v2244
        %2246 = vmatmul.bf16.gmra.mxu0 %v1526
        %v2247 = vpop.f32.mrf.mxu0
        %v2248 = vadd.f32 %v2159, %v2247
        %v2249 = vpop.f32.mrf.mxu0
        %v2250 = vadd.f32 %v2161, %v2249
        %2251 = vmatmul.bf16.gmra.mxu0 %v1569
        %v2252 = vpop.f32.mrf.mxu0
        %v2253 = vadd.f32 %v2164, %v2252
        %v2254 = vpop.f32.mrf.mxu0
        %v2255 = vadd.f32 %v2166, %v2254
        %2256 = vmatmul.bf16.gmra.mxu0 %v1612
        %v2257 = vpop.f32.mrf.mxu0
        %v2258 = vadd.f32 %v2169, %v2257
        %v2259 = vpop.f32.mrf.mxu0
        %v2260 = vadd.f32 %v2171, %v2259
        %2261 = vmatmul.bf16.gmra.mxu0 %v1655
        %v2262 = vpop.f32.mrf.mxu0
        %v2263 = vadd.f32 %v2174, %v2262
        %v2264 = vpop.f32.mrf.mxu0
        %v2265 = vadd.f32 %v2176, %v2264
        %2266 = vmatmul.bf16.gmra.mxu0 %v1698
        %v2267 = vpop.f32.mrf.mxu0
        %v2268 = vadd.f32 %v2179, %v2267
        %v2269 = vpop.f32.mrf.mxu0
        %v2270 = vadd.f32 %v2181, %v2269
        %2271 = vmatmul.bf16.gmra.mxu0 %v1741
        %v2272 = vpop.f32.mrf.mxu0
        %v2273 = vadd.f32 %v2184, %v2272
        %v2274 = vpop.f32.mrf.mxu0
        %v2275 = vadd.f32 %v2186, %v2274
        %2276 = vmatmul.bf16.gmra.mxu0 %v1784
        %v2277 = vpop.f32.mrf.mxu0
        %v2278 = vadd.f32 %v2189, %v2277
        %v2279 = vpop.f32.mrf.mxu0
        %v2280 = vadd.f32 %v2191, %v2279
        %2281 = vmatmul.bf16.gmra.mxu0 %v1827
        %v2282 = vpop.f32.mrf.mxu0
        %v2283 = vadd.f32 %v2194, %v2282
        %v2284 = vpop.f32.mrf.mxu0
        %v2285 = vadd.f32 %v2196, %v2284
        %2286 = vdwg.mxu0
        %v2287 = vadd.f32 %v1054, %v2208
        %v2288 = vadd.f32 %v1055, %v2210
        %v2289 = vadd.f32 %v1056, %v2213
        %v2290 = vadd.f32 %v1057, %v2215
        %v2291 = vadd.f32 %v1058, %v2218
        %v2292 = vadd.f32 %v1059, %v2220
        %v2293 = vadd.f32 %v1060, %v2223
        %v2294 = vadd.f32 %v1061, %v2225
        %v2295 = vadd.f32 %v1062, %v2228
        %v2296 = vadd.f32 %v1063, %v2230
        %v2297 = vadd.f32 %v1064, %v2233
        %v2298 = vadd.f32 %v1065, %v2235
        %v2299 = vadd.f32 %v1066, %v2238
        %v2300 = vadd.f32 %v1067, %v2240
        %v2301 = vadd.f32 %v1068, %v2243
        %v2302 = vadd.f32 %v1069, %v2245
        %v2303 = vadd.f32 %v1070, %v2248
        %v2304 = vadd.f32 %v1071, %v2250
        %v2305 = vadd.f32 %v1072, %v2253
        %v2306 = vadd.f32 %v1073, %v2255
        %v2307 = vadd.f32 %v1074, %v2258
        %v2308 = vadd.f32 %v1075, %v2260
        %v2309 = vadd.f32 %v1076, %v2263
        %v2310 = vadd.f32 %v1077, %v2265
        %v2311 = vadd.f32 %v1078, %v2268
        %v2312 = vadd.f32 %v1079, %v2270
        %v2313 = vadd.f32 %v1080, %v2273
        %v2314 = vadd.f32 %v1081, %v2275
        %v2315 = vadd.f32 %v1082, %v2278
        %v2316 = vadd.f32 %v1083, %v2280
        %v2317 = vadd.f32 %v1084, %v2283
        %v2318 = vadd.f32 %v1085, %v2285
        %s2319 = sadd.s32 %s1087, 192
        %s2320 = smul.addr %s2319, 4
        %s2321 = scalar_lea.vmem [#allocation7], %s2320
        %v2322 = vld [vmem:[%s2321] sm:$0xf]
        %v2323 = vld [vmem:[%s2321 + $0x4] sm:$0xf]
        %v2324 = vld [vmem:[%s2321 + $0x8] sm:$0xf]
        %v2325 = vld [vmem:[%s2321 + $0xc] sm:$0xf]
        %v2326 = vld [vmem:[%s2321 + $0x10] sm:$0xf]
        %v2327 = vld [vmem:[%s2321 + $0x14] sm:$0xf]
        %v2328 = vld [vmem:[%s2321 + $0x18] sm:$0xf]
        %v2329 = vld [vmem:[%s2321 + $0x1c] sm:$0xf]
        %v2330 = vld [vmem:[%s2321 + $0x20] sm:$0xf]
        %v2331 = vld [vmem:[%s2321 + $0x24] sm:$0xf]
        %v2332 = vld [vmem:[%s2321 + $0x28] sm:$0xf]
        %v2333 = vld [vmem:[%s2321 + $0x2c] sm:$0xf]
        %v2334 = vld [vmem:[%s2321 + $0x30] sm:$0xf]
        %v2335 = vld [vmem:[%s2321 + $0x34] sm:$0xf]
        %v2336 = vld [vmem:[%s2321 + $0x38] sm:$0xf]
        %v2337 = vld [vmem:[%s2321 + $0x3c] sm:$0xf]
        %v2338 = vld [vmem:[%s2321 + $0x100] sm:$0xf]
        %v2339 = vld [vmem:[%s2321 + $0x104] sm:$0xf]
        %v2340 = vld [vmem:[%s2321 + $0x108] sm:$0xf]
        %v2341 = vld [vmem:[%s2321 + $0x10c] sm:$0xf]
        %v2342 = vld [vmem:[%s2321 + $0x110] sm:$0xf]
        %v2343 = vld [vmem:[%s2321 + $0x114] sm:$0xf]
        %v2344 = vld [vmem:[%s2321 + $0x118] sm:$0xf]
        %v2345 = vld [vmem:[%s2321 + $0x11c] sm:$0xf]
        %v2346 = vld [vmem:[%s2321 + $0x120] sm:$0xf]
        %v2347 = vld [vmem:[%s2321 + $0x124] sm:$0xf]
        %v2348 = vld [vmem:[%s2321 + $0x128] sm:$0xf]
        %v2349 = vld [vmem:[%s2321 + $0x12c] sm:$0xf]
        %v2350 = vld [vmem:[%s2321 + $0x130] sm:$0xf]
        %v2351 = vld [vmem:[%s2321 + $0x134] sm:$0xf]
        %v2352 = vld [vmem:[%s2321 + $0x138] sm:$0xf]
        %v2353 = vld [vmem:[%s2321 + $0x13c] sm:$0xf]
        %v2354 = vld [vmem:[%s2321 + $0x200] sm:$0xf]
        %v2355 = vld [vmem:[%s2321 + $0x204] sm:$0xf]
        %v2356 = vld [vmem:[%s2321 + $0x208] sm:$0xf]
        %v2357 = vld [vmem:[%s2321 + $0x20c] sm:$0xf]
        %v2358 = vld [vmem:[%s2321 + $0x210] sm:$0xf]
        %v2359 = vld [vmem:[%s2321 + $0x214] sm:$0xf]
        %v2360 = vld [vmem:[%s2321 + $0x218] sm:$0xf]
        %v2361 = vld [vmem:[%s2321 + $0x21c] sm:$0xf]
        %v2362 = vld [vmem:[%s2321 + $0x220] sm:$0xf]
        %v2363 = vld [vmem:[%s2321 + $0x224] sm:$0xf]
        %v2364 = vld [vmem:[%s2321 + $0x228] sm:$0xf]
        %v2365 = vld [vmem:[%s2321 + $0x22c] sm:$0xf]
        %v2366 = vld [vmem:[%s2321 + $0x230] sm:$0xf]
        %v2367 = vld [vmem:[%s2321 + $0x234] sm:$0xf]
        %v2368 = vld [vmem:[%s2321 + $0x238] sm:$0xf]
        %v2369 = vld [vmem:[%s2321 + $0x23c] sm:$0xf]
        %v2371 = vshrl.u32 %v779, 16
        %v2373 = vrot.slane %v2371, 3
        %v2374 = vshll.u32 %v779, 16
        %v2376 = vrot.slane %v2374, 4
        %v2377 = vor.u32 %v2373, %v2376
        %v2379 = vshrl.u32 %v780, 16
        %v2381 = vrot.slane %v2379, 3
        %v2382 = vshll.u32 %v780, 16
        %v2384 = vrot.slane %v2382, 4
        %v2385 = vor.u32 %v2381, %v2384
        %v2386 = vsel %vm1139, %v2377, %v2385
        %v2388 = vshrl.u32 %v936, 16
        %v2390 = vrot.slane %v2388, 3
        %v2391 = vshll.u32 %v936, 16
        %v2393 = vrot.slane %v2391, 4
        %v2394 = vor.u32 %v2390, %v2393
        %v2395 = vsel %vm1139, %v2394, %v2394
        %v2397 = vshrl.u32 %v1048, 16
        %v2399 = vrot.slane %v2397, 3
        %v2400 = vshll.u32 %v1048, 16
        %v2402 = vrot.slane %v2400, 4
        %v2403 = vor.u32 %v2399, %v2402
        %v2405 = vshrl.u32 %v1050, 16
        %v2407 = vrot.slane %v2405, 3
        %v2408 = vshll.u32 %v1050, 16
        %v2410 = vrot.slane %v2408, 4
        %v2411 = vor.u32 %v2407, %v2410
        %v2412 = vsel %vm1139, %v2403, %v2411
        %v2464 = vunpack.c.l.b16 %v2322
        %v2465 = vunpack.c.l.b16 %v2323
        %v2466 = vunpack.c.l.b16 %v2324
        %v2467 = vunpack.c.l.b16 %v2325
        %v2468 = vunpack.c.l.b16 %v2326
        %v2469 = vunpack.c.l.b16 %v2327
        %v2470 = vunpack.c.l.b16 %v2328
        %v2471 = vunpack.c.l.b16 %v2329
        %v2472 = vunpack.c.l.b16 %v2330
        %v2473 = vunpack.c.l.b16 %v2331
        %v2474 = vunpack.c.l.b16 %v2332
        %v2475 = vunpack.c.l.b16 %v2333
        %v2476 = vunpack.c.l.b16 %v2334
        %v2477 = vunpack.c.l.b16 %v2335
        %v2478 = vunpack.c.l.b16 %v2336
        %v2479 = vunpack.c.l.b16 %v2337
        %v2480 = vunpack.c.l.b16 %v2338
        %v2481 = vunpack.c.l.b16 %v2339
        %v2482 = vunpack.c.l.b16 %v2340
        %v2483 = vunpack.c.l.b16 %v2341
        %v2484 = vunpack.c.l.b16 %v2342
        %v2485 = vunpack.c.l.b16 %v2343
        %v2486 = vunpack.c.l.b16 %v2344
        %v2487 = vunpack.c.l.b16 %v2345
        %v2488 = vunpack.c.l.b16 %v2346
        %v2489 = vunpack.c.l.b16 %v2347
        %v2490 = vunpack.c.l.b16 %v2348
        %v2491 = vunpack.c.l.b16 %v2349
        %v2492 = vunpack.c.l.b16 %v2350
        %v2493 = vunpack.c.l.b16 %v2351
        %v2494 = vunpack.c.l.b16 %v2352
        %v2495 = vunpack.c.l.b16 %v2353
        %v2496 = vunpack.c.l.b16 %v2354
        %v2497 = vunpack.c.l.b16 %v2355
        %v2498 = vunpack.c.l.b16 %v2356
        %v2499 = vunpack.c.l.b16 %v2357
        %v2500 = vunpack.c.l.b16 %v2358
        %v2501 = vunpack.c.l.b16 %v2359
        %v2502 = vunpack.c.l.b16 %v2360
        %v2503 = vunpack.c.l.b16 %v2361
        %v2504 = vunpack.c.l.b16 %v2362
        %v2505 = vunpack.c.l.b16 %v2363
        %v2506 = vunpack.c.l.b16 %v2364
        %v2507 = vunpack.c.l.b16 %v2365
        %v2508 = vunpack.c.l.b16 %v2366
        %v2509 = vunpack.c.l.b16 %v2367
        %v2510 = vunpack.c.l.b16 %v2368
        %v2511 = vunpack.c.l.b16 %v2369
        %v2512 = vpack.c.b16 %v2465, %v2464
        %v2513 = vpack.c.b16 %v2467, %v2466
        %v2514 = vpack.c.b16 %v2469, %v2468
        %v2515 = vpack.c.b16 %v2471, %v2470
        %v2516 = vpack.c.b16 %v2473, %v2472
        %v2517 = vpack.c.b16 %v2475, %v2474
        %v2518 = vpack.c.b16 %v2477, %v2476
        %v2519 = vpack.c.b16 %v2479, %v2478
        %v2520 = vpack.c.b16 %v2481, %v2480
        %v2521 = vpack.c.b16 %v2483, %v2482
        %v2522 = vpack.c.b16 %v2485, %v2484
        %v2523 = vpack.c.b16 %v2487, %v2486
        %v2524 = vpack.c.b16 %v2489, %v2488
        %v2525 = vpack.c.b16 %v2491, %v2490
        %v2526 = vpack.c.b16 %v2493, %v2492
        %v2527 = vpack.c.b16 %v2495, %v2494
        %v2528 = vpack.c.b16 %v2497, %v2496
        %v2529 = vpack.c.b16 %v2499, %v2498
        %v2530 = vpack.c.b16 %v2501, %v2500
        %v2531 = vpack.c.b16 %v2503, %v2502
        %v2532 = vpack.c.b16 %v2505, %v2504
        %v2533 = vpack.c.b16 %v2507, %v2506
        %v2534 = vpack.c.b16 %v2509, %v2508
        %v2535 = vpack.c.b16 %v2511, %v2510
        %2560 = vmatpush.bf16.msra.mxu0 %v2519
        %2561 = vmatpush.bf16.msra.mxu0 %v2518
        %2562 = vmatpush.bf16.msra.mxu0 %v2517
        %2563 = vmatpush.bf16.msra.mxu0 %v2516
        %2564 = vmatpush.bf16.msra.mxu0 %v2515
        %2565 = vmatpush.bf16.msra.mxu0 %v2514
        %2566 = vmatpush.bf16.msra.mxu0 %v2513
        %2567 = vmatpush.bf16.msra.mxu0 %v2512
        %2568 = vmatmul.bf16.gmra.mxu0 %v1199
        %v2569 = vpop.f32.mrf.mxu0
        %v2570 = vadd.f32 0.0, %v2569
        %v2571 = vpop.f32.mrf.mxu0
        %v2572 = vadd.f32 0.0, %v2571
        %2573 = vmatmul.bf16.gmra.mxu0 %v1242
        %v2574 = vpop.f32.mrf.mxu0
        %v2575 = vadd.f32 0.0, %v2574
        %v2576 = vpop.f32.mrf.mxu0
        %v2577 = vadd.f32 0.0, %v2576
        %2578 = vmatmul.bf16.gmra.mxu0 %v1285
        %v2579 = vpop.f32.mrf.mxu0
        %v2580 = vadd.f32 0.0, %v2579
        %v2581 = vpop.f32.mrf.mxu0
        %v2582 = vadd.f32 0.0, %v2581
        %2583 = vmatmul.bf16.gmra.mxu0 %v1328
        %v2584 = vpop.f32.mrf.mxu0
        %v2585 = vadd.f32 0.0, %v2584
        %v2586 = vpop.f32.mrf.mxu0
        %v2587 = vadd.f32 0.0, %v2586
        %2588 = vmatmul.bf16.gmra.mxu0 %v1371
        %v2589 = vpop.f32.mrf.mxu0
        %v2590 = vadd.f32 0.0, %v2589
        %v2591 = vpop.f32.mrf.mxu0
        %v2592 = vadd.f32 0.0, %v2591
        %2593 = vmatmul.bf16.gmra.mxu0 %v1414
        %v2594 = vpop.f32.mrf.mxu0
        %v2595 = vadd.f32 0.0, %v2594
        %v2596 = vpop.f32.mrf.mxu0
        %v2597 = vadd.f32 0.0, %v2596
        %2598 = vmatmul.bf16.gmra.mxu0 %v1457
        %v2599 = vpop.f32.mrf.mxu0
        %v2600 = vadd.f32 0.0, %v2599
        %v2601 = vpop.f32.mrf.mxu0
        %v2602 = vadd.f32 0.0, %v2601
        %2603 = vmatmul.bf16.gmra.mxu0 %v1500
        %v2604 = vpop.f32.mrf.mxu0
        %v2605 = vadd.f32 0.0, %v2604
        %v2606 = vpop.f32.mrf.mxu0
        %v2607 = vadd.f32 0.0, %v2606
        %2608 = vmatmul.bf16.gmra.mxu0 %v1543
        %v2609 = vpop.f32.mrf.mxu0
        %v2610 = vadd.f32 0.0, %v2609
        %v2611 = vpop.f32.mrf.mxu0
        %v2612 = vadd.f32 0.0, %v2611
        %2613 = vmatmul.bf16.gmra.mxu0 %v1586
        %v2614 = vpop.f32.mrf.mxu0
        %v2615 = vadd.f32 0.0, %v2614
        %v2616 = vpop.f32.mrf.mxu0
        %v2617 = vadd.f32 0.0, %v2616
        %2618 = vmatmul.bf16.gmra.mxu0 %v1629
        %v2619 = vpop.f32.mrf.mxu0
        %v2620 = vadd.f32 0.0, %v2619
        %v2621 = vpop.f32.mrf.mxu0
        %v2622 = vadd.f32 0.0, %v2621
        %2623 = vmatmul.bf16.gmra.mxu0 %v1672
        %v2624 = vpop.f32.mrf.mxu0
        %v2625 = vadd.f32 0.0, %v2624
        %v2626 = vpop.f32.mrf.mxu0
        %v2627 = vadd.f32 0.0, %v2626
        %2628 = vmatmul.bf16.gmra.mxu0 %v1715
        %v2629 = vpop.f32.mrf.mxu0
        %v2630 = vadd.f32 0.0, %v2629
        %v2631 = vpop.f32.mrf.mxu0
        %v2632 = vadd.f32 0.0, %v2631
        %2633 = vmatmul.bf16.gmra.mxu0 %v1758
        %v2634 = vpop.f32.mrf.mxu0
        %v2635 = vadd.f32 0.0, %v2634
        %v2636 = vpop.f32.mrf.mxu0
        %v2637 = vadd.f32 0.0, %v2636
        %2638 = vmatmul.bf16.gmra.mxu0 %v1801
        %v2639 = vpop.f32.mrf.mxu0
        %v2640 = vadd.f32 0.0, %v2639
        %v2641 = vpop.f32.mrf.mxu0
        %v2642 = vadd.f32 0.0, %v2641
        %2643 = vmatmul.bf16.gmra.mxu0 %v2386
        %v2644 = vpop.f32.mrf.mxu0
        %v2645 = vadd.f32 0.0, %v2644
        %v2646 = vpop.f32.mrf.mxu0
        %v2647 = vadd.f32 0.0, %v2646
        %2648 = vdwg.mxu0
        %2649 = vmatpush.bf16.msra.mxu0 %v2527
        %2650 = vmatpush.bf16.msra.mxu0 %v2526
        %2651 = vmatpush.bf16.msra.mxu0 %v2525
        %2652 = vmatpush.bf16.msra.mxu0 %v2524
        %2653 = vmatpush.bf16.msra.mxu0 %v2523
        %2654 = vmatpush.bf16.msra.mxu0 %v2522
        %2655 = vmatpush.bf16.msra.mxu0 %v2521
        %2656 = vmatpush.bf16.msra.mxu0 %v2520
        %2657 = vmatmul.bf16.gmra.mxu0 %v1208
        %v2658 = vpop.f32.mrf.mxu0
        %v2659 = vadd.f32 %v2570, %v2658
        %v2660 = vpop.f32.mrf.mxu0
        %v2661 = vadd.f32 %v2572, %v2660
        %2662 = vmatmul.bf16.gmra.mxu0 %v1251
        %v2663 = vpop.f32.mrf.mxu0
        %v2664 = vadd.f32 %v2575, %v2663
        %v2665 = vpop.f32.mrf.mxu0
        %v2666 = vadd.f32 %v2577, %v2665
        %2667 = vmatmul.bf16.gmra.mxu0 %v1294
        %v2668 = vpop.f32.mrf.mxu0
        %v2669 = vadd.f32 %v2580, %v2668
        %v2670 = vpop.f32.mrf.mxu0
        %v2671 = vadd.f32 %v2582, %v2670
        %2672 = vmatmul.bf16.gmra.mxu0 %v1337
        %v2673 = vpop.f32.mrf.mxu0
        %v2674 = vadd.f32 %v2585, %v2673
        %v2675 = vpop.f32.mrf.mxu0
        %v2676 = vadd.f32 %v2587, %v2675
        %2677 = vmatmul.bf16.gmra.mxu0 %v1380
        %v2678 = vpop.f32.mrf.mxu0
        %v2679 = vadd.f32 %v2590, %v2678
        %v2680 = vpop.f32.mrf.mxu0
        %v2681 = vadd.f32 %v2592, %v2680
        %2682 = vmatmul.bf16.gmra.mxu0 %v1423
        %v2683 = vpop.f32.mrf.mxu0
        %v2684 = vadd.f32 %v2595, %v2683
        %v2685 = vpop.f32.mrf.mxu0
        %v2686 = vadd.f32 %v2597, %v2685
        %2687 = vmatmul.bf16.gmra.mxu0 %v1466
        %v2688 = vpop.f32.mrf.mxu0
        %v2689 = vadd.f32 %v2600, %v2688
        %v2690 = vpop.f32.mrf.mxu0
        %v2691 = vadd.f32 %v2602, %v2690
        %2692 = vmatmul.bf16.gmra.mxu0 %v1509
        %v2693 = vpop.f32.mrf.mxu0
        %v2694 = vadd.f32 %v2605, %v2693
        %v2695 = vpop.f32.mrf.mxu0
        %v2696 = vadd.f32 %v2607, %v2695
        %2697 = vmatmul.bf16.gmra.mxu0 %v1552
        %v2698 = vpop.f32.mrf.mxu0
        %v2699 = vadd.f32 %v2610, %v2698
        %v2700 = vpop.f32.mrf.mxu0
        %v2701 = vadd.f32 %v2612, %v2700
        %2702 = vmatmul.bf16.gmra.mxu0 %v1595
        %v2703 = vpop.f32.mrf.mxu0
        %v2704 = vadd.f32 %v2615, %v2703
        %v2705 = vpop.f32.mrf.mxu0
        %v2706 = vadd.f32 %v2617, %v2705
        %2707 = vmatmul.bf16.gmra.mxu0 %v1638
        %v2708 = vpop.f32.mrf.mxu0
        %v2709 = vadd.f32 %v2620, %v2708
        %v2710 = vpop.f32.mrf.mxu0
        %v2711 = vadd.f32 %v2622, %v2710
        %2712 = vmatmul.bf16.gmra.mxu0 %v1681
        %v2713 = vpop.f32.mrf.mxu0
        %v2714 = vadd.f32 %v2625, %v2713
        %v2715 = vpop.f32.mrf.mxu0
        %v2716 = vadd.f32 %v2627, %v2715
        %2717 = vmatmul.bf16.gmra.mxu0 %v1724
        %v2718 = vpop.f32.mrf.mxu0
        %v2719 = vadd.f32 %v2630, %v2718
        %v2720 = vpop.f32.mrf.mxu0
        %v2721 = vadd.f32 %v2632, %v2720
        %2722 = vmatmul.bf16.gmra.mxu0 %v1767
        %v2723 = vpop.f32.mrf.mxu0
        %v2724 = vadd.f32 %v2635, %v2723
        %v2725 = vpop.f32.mrf.mxu0
        %v2726 = vadd.f32 %v2637, %v2725
        %2727 = vmatmul.bf16.gmra.mxu0 %v1810
        %v2728 = vpop.f32.mrf.mxu0
        %v2729 = vadd.f32 %v2640, %v2728
        %v2730 = vpop.f32.mrf.mxu0
        %v2731 = vadd.f32 %v2642, %v2730
        %2732 = vmatmul.bf16.gmra.mxu0 %v2395
        %v2733 = vpop.f32.mrf.mxu0
        %v2734 = vadd.f32 %v2645, %v2733
        %v2735 = vpop.f32.mrf.mxu0
        %v2736 = vadd.f32 %v2647, %v2735
        %2737 = vdwg.mxu0
        %2738 = vmatpush.bf16.msra.mxu0 %v2535
        %2739 = vmatpush.bf16.msra.mxu0 %v2534
        %2740 = vmatpush.bf16.msra.mxu0 %v2533
        %2741 = vmatpush.bf16.msra.mxu0 %v2532
        %2742 = vmatpush.bf16.msra.mxu0 %v2531
        %2743 = vmatpush.bf16.msra.mxu0 %v2530
        %2744 = vmatpush.bf16.msra.mxu0 %v2529
        %2745 = vmatpush.bf16.msra.mxu0 %v2528
        %2746 = vmatmul.bf16.gmra.mxu0 %v1225
        %v2747 = vpop.f32.mrf.mxu0
        %v2748 = vadd.f32 %v2659, %v2747
        %v2749 = vpop.f32.mrf.mxu0
        %v2750 = vadd.f32 %v2661, %v2749
        %2751 = vmatmul.bf16.gmra.mxu0 %v1268
        %v2752 = vpop.f32.mrf.mxu0
        %v2753 = vadd.f32 %v2664, %v2752
        %v2754 = vpop.f32.mrf.mxu0
        %v2755 = vadd.f32 %v2666, %v2754
        %2756 = vmatmul.bf16.gmra.mxu0 %v1311
        %v2757 = vpop.f32.mrf.mxu0
        %v2758 = vadd.f32 %v2669, %v2757
        %v2759 = vpop.f32.mrf.mxu0
        %v2760 = vadd.f32 %v2671, %v2759
        %2761 = vmatmul.bf16.gmra.mxu0 %v1354
        %v2762 = vpop.f32.mrf.mxu0
        %v2763 = vadd.f32 %v2674, %v2762
        %v2764 = vpop.f32.mrf.mxu0
        %v2765 = vadd.f32 %v2676, %v2764
        %2766 = vmatmul.bf16.gmra.mxu0 %v1397
        %v2767 = vpop.f32.mrf.mxu0
        %v2768 = vadd.f32 %v2679, %v2767
        %v2769 = vpop.f32.mrf.mxu0
        %v2770 = vadd.f32 %v2681, %v2769
        %2771 = vmatmul.bf16.gmra.mxu0 %v1440
        %v2772 = vpop.f32.mrf.mxu0
        %v2773 = vadd.f32 %v2684, %v2772
        %v2774 = vpop.f32.mrf.mxu0
        %v2775 = vadd.f32 %v2686, %v2774
        %2776 = vmatmul.bf16.gmra.mxu0 %v1483
        %v2777 = vpop.f32.mrf.mxu0
        %v2778 = vadd.f32 %v2689, %v2777
        %v2779 = vpop.f32.mrf.mxu0
        %v2780 = vadd.f32 %v2691, %v2779
        %2781 = vmatmul.bf16.gmra.mxu0 %v1526
        %v2782 = vpop.f32.mrf.mxu0
        %v2783 = vadd.f32 %v2694, %v2782
        %v2784 = vpop.f32.mrf.mxu0
        %v2785 = vadd.f32 %v2696, %v2784
        %2786 = vmatmul.bf16.gmra.mxu0 %v1569
        %v2787 = vpop.f32.mrf.mxu0
        %v2788 = vadd.f32 %v2699, %v2787
        %v2789 = vpop.f32.mrf.mxu0
        %v2790 = vadd.f32 %v2701, %v2789
        %2791 = vmatmul.bf16.gmra.mxu0 %v1612
        %v2792 = vpop.f32.mrf.mxu0
        %v2793 = vadd.f32 %v2704, %v2792
        %v2794 = vpop.f32.mrf.mxu0
        %v2795 = vadd.f32 %v2706, %v2794
        %2796 = vmatmul.bf16.gmra.mxu0 %v1655
        %v2797 = vpop.f32.mrf.mxu0
        %v2798 = vadd.f32 %v2709, %v2797
        %v2799 = vpop.f32.mrf.mxu0
        %v2800 = vadd.f32 %v2711, %v2799
        %2801 = vmatmul.bf16.gmra.mxu0 %v1698
        %v2802 = vpop.f32.mrf.mxu0
        %v2803 = vadd.f32 %v2714, %v2802
        %v2804 = vpop.f32.mrf.mxu0
        %v2805 = vadd.f32 %v2716, %v2804
        %2806 = vmatmul.bf16.gmra.mxu0 %v1741
        %v2807 = vpop.f32.mrf.mxu0
        %v2808 = vadd.f32 %v2719, %v2807
        %v2809 = vpop.f32.mrf.mxu0
        %v2810 = vadd.f32 %v2721, %v2809
        %2811 = vmatmul.bf16.gmra.mxu0 %v1784
        %v2812 = vpop.f32.mrf.mxu0
        %v2813 = vadd.f32 %v2724, %v2812
        %v2814 = vpop.f32.mrf.mxu0
        %v2815 = vadd.f32 %v2726, %v2814
        %2816 = vmatmul.bf16.gmra.mxu0 %v1827
        %v2817 = vpop.f32.mrf.mxu0
        %v2818 = vadd.f32 %v2729, %v2817
        %v2819 = vpop.f32.mrf.mxu0
        %v2820 = vadd.f32 %v2731, %v2819
        %2821 = vmatmul.bf16.gmra.mxu0 %v2412
        %v2822 = vpop.f32.mrf.mxu0
        %v2823 = vadd.f32 %v2734, %v2822
        %v2824 = vpop.f32.mrf.mxu0
        %v2825 = vadd.f32 %v2736, %v2824
        %2826 = vdwg.mxu0
        %v2827 = vadd.f32 %v2287, %v2748
        %v2828 = vadd.f32 %v2288, %v2750
        %v2829 = vadd.f32 %v2289, %v2753
        %v2830 = vadd.f32 %v2290, %v2755
        %v2831 = vadd.f32 %v2291, %v2758
        %v2832 = vadd.f32 %v2292, %v2760
        %v2833 = vadd.f32 %v2293, %v2763
        %v2834 = vadd.f32 %v2294, %v2765
        %v2835 = vadd.f32 %v2295, %v2768
        %v2836 = vadd.f32 %v2296, %v2770
        %v2837 = vadd.f32 %v2297, %v2773
        %v2838 = vadd.f32 %v2298, %v2775
        %v2839 = vadd.f32 %v2299, %v2778
        %v2840 = vadd.f32 %v2300, %v2780
        %v2841 = vadd.f32 %v2301, %v2783
        %v2842 = vadd.f32 %v2302, %v2785
        %v2843 = vadd.f32 %v2303, %v2788
        %v2844 = vadd.f32 %v2304, %v2790
        %v2845 = vadd.f32 %v2305, %v2793
        %v2846 = vadd.f32 %v2306, %v2795
        %v2847 = vadd.f32 %v2307, %v2798
        %v2848 = vadd.f32 %v2308, %v2800
        %v2849 = vadd.f32 %v2309, %v2803
        %v2850 = vadd.f32 %v2310, %v2805
        %v2851 = vadd.f32 %v2311, %v2808
        %v2852 = vadd.f32 %v2312, %v2810
        %v2853 = vadd.f32 %v2313, %v2813
        %v2854 = vadd.f32 %v2314, %v2815
        %v2855 = vadd.f32 %v2315, %v2818
        %v2856 = vadd.f32 %v2316, %v2820
        %v2857 = vadd.f32 %v2317, %v2823
        %v2858 = vadd.f32 %v2318, %v2825
        %s2859 = sadd.s32 %s1087, 384
        %s2860 = smul.addr %s2859, 4
        %s2861 = scalar_lea.vmem [#allocation7], %s2860
        %v2862 = vld [vmem:[%s2861] sm:$0xf]
        %v2863 = vld [vmem:[%s2861 + $0x4] sm:$0xf]
        %v2864 = vld [vmem:[%s2861 + $0x8] sm:$0xf]
        %v2865 = vld [vmem:[%s2861 + $0xc] sm:$0xf]
        %v2866 = vld [vmem:[%s2861 + $0x10] sm:$0xf]
        %v2867 = vld [vmem:[%s2861 + $0x14] sm:$0xf]
        %v2868 = vld [vmem:[%s2861 + $0x18] sm:$0xf]
        %v2869 = vld [vmem:[%s2861 + $0x1c] sm:$0xf]
        %v2870 = vld [vmem:[%s2861 + $0x20] sm:$0xf]
        %v2871 = vld [vmem:[%s2861 + $0x24] sm:$0xf]
        %v2872 = vld [vmem:[%s2861 + $0x28] sm:$0xf]
        %v2873 = vld [vmem:[%s2861 + $0x2c] sm:$0xf]
        %v2874 = vld [vmem:[%s2861 + $0x30] sm:$0xf]
        %v2875 = vld [vmem:[%s2861 + $0x34] sm:$0xf]
        %v2876 = vld [vmem:[%s2861 + $0x38] sm:$0xf]
        %v2877 = vld [vmem:[%s2861 + $0x3c] sm:$0xf]
        %v2878 = vld [vmem:[%s2861 + $0x100] sm:$0xf]
        %v2879 = vld [vmem:[%s2861 + $0x104] sm:$0xf]
        %v2880 = vld [vmem:[%s2861 + $0x108] sm:$0xf]
        %v2881 = vld [vmem:[%s2861 + $0x10c] sm:$0xf]
        %v2882 = vld [vmem:[%s2861 + $0x110] sm:$0xf]
        %v2883 = vld [vmem:[%s2861 + $0x114] sm:$0xf]
        %v2884 = vld [vmem:[%s2861 + $0x118] sm:$0xf]
        %v2885 = vld [vmem:[%s2861 + $0x11c] sm:$0xf]
        %v2886 = vld [vmem:[%s2861 + $0x120] sm:$0xf]
        %v2887 = vld [vmem:[%s2861 + $0x124] sm:$0xf]
        %v2888 = vld [vmem:[%s2861 + $0x128] sm:$0xf]
        %v2889 = vld [vmem:[%s2861 + $0x12c] sm:$0xf]
        %v2890 = vld [vmem:[%s2861 + $0x130] sm:$0xf]
        %v2891 = vld [vmem:[%s2861 + $0x134] sm:$0xf]
        %v2892 = vld [vmem:[%s2861 + $0x138] sm:$0xf]
        %v2893 = vld [vmem:[%s2861 + $0x13c] sm:$0xf]
        %v2894 = vld [vmem:[%s2861 + $0x200] sm:$0xf]
        %v2895 = vld [vmem:[%s2861 + $0x204] sm:$0xf]
        %v2896 = vld [vmem:[%s2861 + $0x208] sm:$0xf]
        %v2897 = vld [vmem:[%s2861 + $0x20c] sm:$0xf]
        %v2898 = vld [vmem:[%s2861 + $0x210] sm:$0xf]
        %v2899 = vld [vmem:[%s2861 + $0x214] sm:$0xf]
        %v2900 = vld [vmem:[%s2861 + $0x218] sm:$0xf]
        %v2901 = vld [vmem:[%s2861 + $0x21c] sm:$0xf]
        %v2902 = vld [vmem:[%s2861 + $0x220] sm:$0xf]
        %v2903 = vld [vmem:[%s2861 + $0x224] sm:$0xf]
        %v2904 = vld [vmem:[%s2861 + $0x228] sm:$0xf]
        %v2905 = vld [vmem:[%s2861 + $0x22c] sm:$0xf]
        %v2906 = vld [vmem:[%s2861 + $0x230] sm:$0xf]
        %v2907 = vld [vmem:[%s2861 + $0x234] sm:$0xf]
        %v2908 = vld [vmem:[%s2861 + $0x238] sm:$0xf]
        %v2909 = vld [vmem:[%s2861 + $0x23c] sm:$0xf]
        %v2911 = vshrl.u32 %v781, 16
        %v2913 = vrot.slane %v2911, 3
        %v2914 = vshll.u32 %v781, 16
        %v2916 = vrot.slane %v2914, 4
        %v2917 = vor.u32 %v2913, %v2916
        %v2919 = vshrl.u32 %v782, 16
        %v2921 = vrot.slane %v2919, 3
        %v2922 = vshll.u32 %v782, 16
        %v2924 = vrot.slane %v2922, 4
        %v2925 = vor.u32 %v2921, %v2924
        %v2926 = vsel %vm1139, %v2917, %v2925
        %v2928 = vshrl.u32 %v944, 16
        %v2930 = vrot.slane %v2928, 3
        %v2931 = vshll.u32 %v944, 16
        %v2933 = vrot.slane %v2931, 4
        %v2934 = vor.u32 %v2930, %v2933
        %v2935 = vsel %vm1139, %v2934, %v2934
        %v2937 = vshrl.u32 %v1051, 16
        %v2939 = vrot.slane %v2937, 3
        %v2940 = vshll.u32 %v1051, 16
        %v2942 = vrot.slane %v2940, 4
        %v2943 = vor.u32 %v2939, %v2942
        %v2945 = vshrl.u32 %v1053, 16
        %v2947 = vrot.slane %v2945, 3
        %v2948 = vshll.u32 %v1053, 16
        %v2950 = vrot.slane %v2948, 4
        %v2951 = vor.u32 %v2947, %v2950
        %v2952 = vsel %vm1139, %v2943, %v2951
        %v3004 = vunpack.c.l.b16 %v2862
        %v3005 = vunpack.c.l.b16 %v2863
        %v3006 = vunpack.c.l.b16 %v2864
        %v3007 = vunpack.c.l.b16 %v2865
        %v3008 = vunpack.c.l.b16 %v2866
        %v3009 = vunpack.c.l.b16 %v2867
        %v3010 = vunpack.c.l.b16 %v2868
        %v3011 = vunpack.c.l.b16 %v2869
        %v3012 = vunpack.c.l.b16 %v2870
        %v3013 = vunpack.c.l.b16 %v2871
        %v3014 = vunpack.c.l.b16 %v2872
        %v3015 = vunpack.c.l.b16 %v2873
        %v3016 = vunpack.c.l.b16 %v2874
        %v3017 = vunpack.c.l.b16 %v2875
        %v3018 = vunpack.c.l.b16 %v2876
        %v3019 = vunpack.c.l.b16 %v2877
        %v3020 = vunpack.c.l.b16 %v2878
        %v3021 = vunpack.c.l.b16 %v2879
        %v3022 = vunpack.c.l.b16 %v2880
        %v3023 = vunpack.c.l.b16 %v2881
        %v3024 = vunpack.c.l.b16 %v2882
        %v3025 = vunpack.c.l.b16 %v2883
        %v3026 = vunpack.c.l.b16 %v2884
        %v3027 = vunpack.c.l.b16 %v2885
        %v3028 = vunpack.c.l.b16 %v2886
        %v3029 = vunpack.c.l.b16 %v2887
        %v3030 = vunpack.c.l.b16 %v2888
        %v3031 = vunpack.c.l.b16 %v2889
        %v3032 = vunpack.c.l.b16 %v2890
        %v3033 = vunpack.c.l.b16 %v2891
        %v3034 = vunpack.c.l.b16 %v2892
        %v3035 = vunpack.c.l.b16 %v2893
        %v3036 = vunpack.c.l.b16 %v2894
        %v3037 = vunpack.c.l.b16 %v2895
        %v3038 = vunpack.c.l.b16 %v2896
        %v3039 = vunpack.c.l.b16 %v2897
        %v3040 = vunpack.c.l.b16 %v2898
        %v3041 = vunpack.c.l.b16 %v2899
        %v3042 = vunpack.c.l.b16 %v2900
        %v3043 = vunpack.c.l.b16 %v2901
        %v3044 = vunpack.c.l.b16 %v2902
        %v3045 = vunpack.c.l.b16 %v2903
        %v3046 = vunpack.c.l.b16 %v2904
        %v3047 = vunpack.c.l.b16 %v2905
        %v3048 = vunpack.c.l.b16 %v2906
        %v3049 = vunpack.c.l.b16 %v2907
        %v3050 = vunpack.c.l.b16 %v2908
        %v3051 = vunpack.c.l.b16 %v2909
        %v3052 = vpack.c.b16 %v3005, %v3004
        %v3053 = vpack.c.b16 %v3007, %v3006
        %v3054 = vpack.c.b16 %v3009, %v3008
        %v3055 = vpack.c.b16 %v3011, %v3010
        %v3056 = vpack.c.b16 %v3013, %v3012
        %v3057 = vpack.c.b16 %v3015, %v3014
        %v3058 = vpack.c.b16 %v3017, %v3016
        %v3059 = vpack.c.b16 %v3019, %v3018
        %v3060 = vpack.c.b16 %v3021, %v3020
        %v3061 = vpack.c.b16 %v3023, %v3022
        %v3062 = vpack.c.b16 %v3025, %v3024
        %v3063 = vpack.c.b16 %v3027, %v3026
        %v3064 = vpack.c.b16 %v3029, %v3028
        %v3065 = vpack.c.b16 %v3031, %v3030
        %v3066 = vpack.c.b16 %v3033, %v3032
        %v3067 = vpack.c.b16 %v3035, %v3034
        %v3068 = vpack.c.b16 %v3037, %v3036
        %v3069 = vpack.c.b16 %v3039, %v3038
        %v3070 = vpack.c.b16 %v3041, %v3040
        %v3071 = vpack.c.b16 %v3043, %v3042
        %v3072 = vpack.c.b16 %v3045, %v3044
        %v3073 = vpack.c.b16 %v3047, %v3046
        %v3074 = vpack.c.b16 %v3049, %v3048
        %v3075 = vpack.c.b16 %v3051, %v3050
        %3100 = vmatpush.bf16.msra.mxu0 %v3059
        %3101 = vmatpush.bf16.msra.mxu0 %v3058
        %3102 = vmatpush.bf16.msra.mxu0 %v3057
        %3103 = vmatpush.bf16.msra.mxu0 %v3056
        %3104 = vmatpush.bf16.msra.mxu0 %v3055
        %3105 = vmatpush.bf16.msra.mxu0 %v3054
        %3106 = vmatpush.bf16.msra.mxu0 %v3053
        %3107 = vmatpush.bf16.msra.mxu0 %v3052
        %3108 = vmatmul.bf16.gmra.mxu0 %v1242
        %v3109 = vpop.f32.mrf.mxu0
        %v3110 = vadd.f32 0.0, %v3109
        %v3111 = vpop.f32.mrf.mxu0
        %v3112 = vadd.f32 0.0, %v3111
        %3113 = vmatmul.bf16.gmra.mxu0 %v1285
        %v3114 = vpop.f32.mrf.mxu0
        %v3115 = vadd.f32 0.0, %v3114
        %v3116 = vpop.f32.mrf.mxu0
        %v3117 = vadd.f32 0.0, %v3116
        %3118 = vmatmul.bf16.gmra.mxu0 %v1328
        %v3119 = vpop.f32.mrf.mxu0
        %v3120 = vadd.f32 0.0, %v3119
        %v3121 = vpop.f32.mrf.mxu0
        %v3122 = vadd.f32 0.0, %v3121
        %3123 = vmatmul.bf16.gmra.mxu0 %v1371
        %v3124 = vpop.f32.mrf.mxu0
        %v3125 = vadd.f32 0.0, %v3124
        %v3126 = vpop.f32.mrf.mxu0
        %v3127 = vadd.f32 0.0, %v3126
        %3128 = vmatmul.bf16.gmra.mxu0 %v1414
        %v3129 = vpop.f32.mrf.mxu0
        %v3130 = vadd.f32 0.0, %v3129
        %v3131 = vpop.f32.mrf.mxu0
        %v3132 = vadd.f32 0.0, %v3131
        %3133 = vmatmul.bf16.gmra.mxu0 %v1457
        %v3134 = vpop.f32.mrf.mxu0
        %v3135 = vadd.f32 0.0, %v3134
        %v3136 = vpop.f32.mrf.mxu0
        %v3137 = vadd.f32 0.0, %v3136
        %3138 = vmatmul.bf16.gmra.mxu0 %v1500
        %v3139 = vpop.f32.mrf.mxu0
        %v3140 = vadd.f32 0.0, %v3139
        %v3141 = vpop.f32.mrf.mxu0
        %v3142 = vadd.f32 0.0, %v3141
        %3143 = vmatmul.bf16.gmra.mxu0 %v1543
        %v3144 = vpop.f32.mrf.mxu0
        %v3145 = vadd.f32 0.0, %v3144
        %v3146 = vpop.f32.mrf.mxu0
        %v3147 = vadd.f32 0.0, %v3146
        %3148 = vmatmul.bf16.gmra.mxu0 %v1586
        %v3149 = vpop.f32.mrf.mxu0
        %v3150 = vadd.f32 0.0, %v3149
        %v3151 = vpop.f32.mrf.mxu0
        %v3152 = vadd.f32 0.0, %v3151
        %3153 = vmatmul.bf16.gmra.mxu0 %v1629
        %v3154 = vpop.f32.mrf.mxu0
        %v3155 = vadd.f32 0.0, %v3154
        %v3156 = vpop.f32.mrf.mxu0
        %v3157 = vadd.f32 0.0, %v3156
        %3158 = vmatmul.bf16.gmra.mxu0 %v1672
        %v3159 = vpop.f32.mrf.mxu0
        %v3160 = vadd.f32 0.0, %v3159
        %v3161 = vpop.f32.mrf.mxu0
        %v3162 = vadd.f32 0.0, %v3161
        %3163 = vmatmul.bf16.gmra.mxu0 %v1715
        %v3164 = vpop.f32.mrf.mxu0
        %v3165 = vadd.f32 0.0, %v3164
        %v3166 = vpop.f32.mrf.mxu0
        %v3167 = vadd.f32 0.0, %v3166
        %3168 = vmatmul.bf16.gmra.mxu0 %v1758
        %v3169 = vpop.f32.mrf.mxu0
        %v3170 = vadd.f32 0.0, %v3169
        %v3171 = vpop.f32.mrf.mxu0
        %v3172 = vadd.f32 0.0, %v3171
        %3173 = vmatmul.bf16.gmra.mxu0 %v1801
        %v3174 = vpop.f32.mrf.mxu0
        %v3175 = vadd.f32 0.0, %v3174
        %v3176 = vpop.f32.mrf.mxu0
        %v3177 = vadd.f32 0.0, %v3176
        %3178 = vmatmul.bf16.gmra.mxu0 %v2386
        %v3179 = vpop.f32.mrf.mxu0
        %v3180 = vadd.f32 0.0, %v3179
        %v3181 = vpop.f32.mrf.mxu0
        %v3182 = vadd.f32 0.0, %v3181
        %3183 = vmatmul.bf16.gmra.mxu0 %v2926
        %v3184 = vpop.f32.mrf.mxu0
        %v3185 = vadd.f32 0.0, %v3184
        %v3186 = vpop.f32.mrf.mxu0
        %v3187 = vadd.f32 0.0, %v3186
        %3188 = vdwg.mxu0
        %3189 = vmatpush.bf16.msra.mxu0 %v3067
        %3190 = vmatpush.bf16.msra.mxu0 %v3066
        %3191 = vmatpush.bf16.msra.mxu0 %v3065
        %3192 = vmatpush.bf16.msra.mxu0 %v3064
        %3193 = vmatpush.bf16.msra.mxu0 %v3063
        %3194 = vmatpush.bf16.msra.mxu0 %v3062
        %3195 = vmatpush.bf16.msra.mxu0 %v3061
        %3196 = vmatpush.bf16.msra.mxu0 %v3060
        %3197 = vmatmul.bf16.gmra.mxu0 %v1251
        %v3198 = vpop.f32.mrf.mxu0
        %v3199 = vadd.f32 %v3110, %v3198
        %v3200 = vpop.f32.mrf.mxu0
        %v3201 = vadd.f32 %v3112, %v3200
        %3202 = vmatmul.bf16.gmra.mxu0 %v1294
        %v3203 = vpop.f32.mrf.mxu0
        %v3204 = vadd.f32 %v3115, %v3203
        %v3205 = vpop.f32.mrf.mxu0
        %v3206 = vadd.f32 %v3117, %v3205
        %3207 = vmatmul.bf16.gmra.mxu0 %v1337
        %v3208 = vpop.f32.mrf.mxu0
        %v3209 = vadd.f32 %v3120, %v3208
        %v3210 = vpop.f32.mrf.mxu0
        %v3211 = vadd.f32 %v3122, %v3210
        %3212 = vmatmul.bf16.gmra.mxu0 %v1380
        %v3213 = vpop.f32.mrf.mxu0
        %v3214 = vadd.f32 %v3125, %v3213
        %v3215 = vpop.f32.mrf.mxu0
        %v3216 = vadd.f32 %v3127, %v3215
        %3217 = vmatmul.bf16.gmra.mxu0 %v1423
        %v3218 = vpop.f32.mrf.mxu0
        %v3219 = vadd.f32 %v3130, %v3218
        %v3220 = vpop.f32.mrf.mxu0
        %v3221 = vadd.f32 %v3132, %v3220
        %3222 = vmatmul.bf16.gmra.mxu0 %v1466
        %v3223 = vpop.f32.mrf.mxu0
        %v3224 = vadd.f32 %v3135, %v3223
        %v3225 = vpop.f32.mrf.mxu0
        %v3226 = vadd.f32 %v3137, %v3225
        %3227 = vmatmul.bf16.gmra.mxu0 %v1509
        %v3228 = vpop.f32.mrf.mxu0
        %v3229 = vadd.f32 %v3140, %v3228
        %v3230 = vpop.f32.mrf.mxu0
        %v3231 = vadd.f32 %v3142, %v3230
        %3232 = vmatmul.bf16.gmra.mxu0 %v1552
        %v3233 = vpop.f32.mrf.mxu0
        %v3234 = vadd.f32 %v3145, %v3233
        %v3235 = vpop.f32.mrf.mxu0
        %v3236 = vadd.f32 %v3147, %v3235
        %3237 = vmatmul.bf16.gmra.mxu0 %v1595
        %v3238 = vpop.f32.mrf.mxu0
        %v3239 = vadd.f32 %v3150, %v3238
        %v3240 = vpop.f32.mrf.mxu0
        %v3241 = vadd.f32 %v3152, %v3240
        %3242 = vmatmul.bf16.gmra.mxu0 %v1638
        %v3243 = vpop.f32.mrf.mxu0
        %v3244 = vadd.f32 %v3155, %v3243
        %v3245 = vpop.f32.mrf.mxu0
        %v3246 = vadd.f32 %v3157, %v3245
        %3247 = vmatmul.bf16.gmra.mxu0 %v1681
        %v3248 = vpop.f32.mrf.mxu0
        %v3249 = vadd.f32 %v3160, %v3248
        %v3250 = vpop.f32.mrf.mxu0
        %v3251 = vadd.f32 %v3162, %v3250
        %3252 = vmatmul.bf16.gmra.mxu0 %v1724
        %v3253 = vpop.f32.mrf.mxu0
        %v3254 = vadd.f32 %v3165, %v3253
        %v3255 = vpop.f32.mrf.mxu0
        %v3256 = vadd.f32 %v3167, %v3255
        %3257 = vmatmul.bf16.gmra.mxu0 %v1767
        %v3258 = vpop.f32.mrf.mxu0
        %v3259 = vadd.f32 %v3170, %v3258
        %v3260 = vpop.f32.mrf.mxu0
        %v3261 = vadd.f32 %v3172, %v3260
        %3262 = vmatmul.bf16.gmra.mxu0 %v1810
        %v3263 = vpop.f32.mrf.mxu0
        %v3264 = vadd.f32 %v3175, %v3263
        %v3265 = vpop.f32.mrf.mxu0
        %v3266 = vadd.f32 %v3177, %v3265
        %3267 = vmatmul.bf16.gmra.mxu0 %v2395
        %v3268 = vpop.f32.mrf.mxu0
        %v3269 = vadd.f32 %v3180, %v3268
        %v3270 = vpop.f32.mrf.mxu0
        %v3271 = vadd.f32 %v3182, %v3270
        %3272 = vmatmul.bf16.gmra.mxu0 %v2935
        %v3273 = vpop.f32.mrf.mxu0
        %v3274 = vadd.f32 %v3185, %v3273
        %v3275 = vpop.f32.mrf.mxu0
        %v3276 = vadd.f32 %v3187, %v3275
        %3277 = vdwg.mxu0
        %3278 = vmatpush.bf16.msra.mxu0 %v3075
        %3279 = vmatpush.bf16.msra.mxu0 %v3074
        %3280 = vmatpush.bf16.msra.mxu0 %v3073
        %3281 = vmatpush.bf16.msra.mxu0 %v3072
        %3282 = vmatpush.bf16.msra.mxu0 %v3071
        %3283 = vmatpush.bf16.msra.mxu0 %v3070
        %3284 = vmatpush.bf16.msra.mxu0 %v3069
        %3285 = vmatpush.bf16.msra.mxu0 %v3068
        %3286 = vmatmul.bf16.gmra.mxu0 %v1268
        %v3287 = vpop.f32.mrf.mxu0
        %v3288 = vadd.f32 %v3199, %v3287
        %v3289 = vpop.f32.mrf.mxu0
        %v3290 = vadd.f32 %v3201, %v3289
        %3291 = vmatmul.bf16.gmra.mxu0 %v1311
        %v3292 = vpop.f32.mrf.mxu0
        %v3293 = vadd.f32 %v3204, %v3292
        %v3294 = vpop.f32.mrf.mxu0
        %v3295 = vadd.f32 %v3206, %v3294
        %3296 = vmatmul.bf16.gmra.mxu0 %v1354
        %v3297 = vpop.f32.mrf.mxu0
        %v3298 = vadd.f32 %v3209, %v3297
        %v3299 = vpop.f32.mrf.mxu0
        %v3300 = vadd.f32 %v3211, %v3299
        %3301 = vmatmul.bf16.gmra.mxu0 %v1397
        %v3302 = vpop.f32.mrf.mxu0
        %v3303 = vadd.f32 %v3214, %v3302
        %v3304 = vpop.f32.mrf.mxu0
        %v3305 = vadd.f32 %v3216, %v3304
        %3306 = vmatmul.bf16.gmra.mxu0 %v1440
        %v3307 = vpop.f32.mrf.mxu0
        %v3308 = vadd.f32 %v3219, %v3307
        %v3309 = vpop.f32.mrf.mxu0
        %v3310 = vadd.f32 %v3221, %v3309
        %3311 = vmatmul.bf16.gmra.mxu0 %v1483
        %v3312 = vpop.f32.mrf.mxu0
        %v3313 = vadd.f32 %v3224, %v3312
        %v3314 = vpop.f32.mrf.mxu0
        %v3315 = vadd.f32 %v3226, %v3314
        %3316 = vmatmul.bf16.gmra.mxu0 %v1526
        %v3317 = vpop.f32.mrf.mxu0
        %v3318 = vadd.f32 %v3229, %v3317
        %v3319 = vpop.f32.mrf.mxu0
        %v3320 = vadd.f32 %v3231, %v3319
        %3321 = vmatmul.bf16.gmra.mxu0 %v1569
        %v3322 = vpop.f32.mrf.mxu0
        %v3323 = vadd.f32 %v3234, %v3322
        %v3324 = vpop.f32.mrf.mxu0
        %v3325 = vadd.f32 %v3236, %v3324
        %3326 = vmatmul.bf16.gmra.mxu0 %v1612
        %v3327 = vpop.f32.mrf.mxu0
        %v3328 = vadd.f32 %v3239, %v3327
        %v3329 = vpop.f32.mrf.mxu0
        %v3330 = vadd.f32 %v3241, %v3329
        %3331 = vmatmul.bf16.gmra.mxu0 %v1655
        %v3332 = vpop.f32.mrf.mxu0
        %v3333 = vadd.f32 %v3244, %v3332
        %v3334 = vpop.f32.mrf.mxu0
        %v3335 = vadd.f32 %v3246, %v3334
        %3336 = vmatmul.bf16.gmra.mxu0 %v1698
        %v3337 = vpop.f32.mrf.mxu0
        %v3338 = vadd.f32 %v3249, %v3337
        %v3339 = vpop.f32.mrf.mxu0
        %v3340 = vadd.f32 %v3251, %v3339
        %3341 = vmatmul.bf16.gmra.mxu0 %v1741
        %v3342 = vpop.f32.mrf.mxu0
        %v3343 = vadd.f32 %v3254, %v3342
        %v3344 = vpop.f32.mrf.mxu0
        %v3345 = vadd.f32 %v3256, %v3344
        %3346 = vmatmul.bf16.gmra.mxu0 %v1784
        %v3347 = vpop.f32.mrf.mxu0
        %v3348 = vadd.f32 %v3259, %v3347
        %v3349 = vpop.f32.mrf.mxu0
        %v3350 = vadd.f32 %v3261, %v3349
        %3351 = vmatmul.bf16.gmra.mxu0 %v1827
        %v3352 = vpop.f32.mrf.mxu0
        %v3353 = vadd.f32 %v3264, %v3352
        %v3354 = vpop.f32.mrf.mxu0
        %v3355 = vadd.f32 %v3266, %v3354
        %3356 = vmatmul.bf16.gmra.mxu0 %v2412
        %v3357 = vpop.f32.mrf.mxu0
        %v3358 = vadd.f32 %v3269, %v3357
        %v3359 = vpop.f32.mrf.mxu0
        %v3360 = vadd.f32 %v3271, %v3359
        %3361 = vmatmul.bf16.gmra.mxu0 %v2952
        %v3362 = vpop.f32.mrf.mxu0
        %v3363 = vadd.f32 %v3274, %v3362
        %v3364 = vpop.f32.mrf.mxu0
        %v3365 = vadd.f32 %v3276, %v3364
        %3366 = vdwg.mxu0
        %v3367 = vadd.f32 %v2827, %v3288
        %v3368 = vadd.f32 %v2828, %v3290
        %v3369 = vadd.f32 %v2829, %v3293
        %v3370 = vadd.f32 %v2830, %v3295
        %v3371 = vadd.f32 %v2831, %v3298
        %v3372 = vadd.f32 %v2832, %v3300
        %v3373 = vadd.f32 %v2833, %v3303
        %v3374 = vadd.f32 %v2834, %v3305
        %v3375 = vadd.f32 %v2835, %v3308
        %v3376 = vadd.f32 %v2836, %v3310
        %v3377 = vadd.f32 %v2837, %v3313
        %v3378 = vadd.f32 %v2838, %v3315
        %v3379 = vadd.f32 %v2839, %v3318
        %v3380 = vadd.f32 %v2840, %v3320
        %v3381 = vadd.f32 %v2841, %v3323
        %v3382 = vadd.f32 %v2842, %v3325
        %v3383 = vadd.f32 %v2843, %v3328
        %v3384 = vadd.f32 %v2844, %v3330
        %v3385 = vadd.f32 %v2845, %v3333
        %v3386 = vadd.f32 %v2846, %v3335
        %v3387 = vadd.f32 %v2847, %v3338
        %v3388 = vadd.f32 %v2848, %v3340
        %v3389 = vadd.f32 %v2849, %v3343
        %v3390 = vadd.f32 %v2850, %v3345
        %v3391 = vadd.f32 %v2851, %v3348
        %v3392 = vadd.f32 %v2852, %v3350
        %v3393 = vadd.f32 %v2853, %v3353
        %v3394 = vadd.f32 %v2854, %v3355
        %v3395 = vadd.f32 %v2855, %v3358
        %v3396 = vadd.f32 %v2856, %v3360
        %v3397 = vadd.f32 %v2857, %v3363
        %v3398 = vadd.f32 %v2858, %v3365
        %3399 = vst [vmem:[#allocation3] sm:$0xff] %v3367
        %3400 = vst [vmem:[#allocation3 + $0x8] sm:$0xff] %v3368
        %3401 = vst [vmem:[#allocation3 + $0x10] sm:$0xff] %v3369
        %3402 = vst [vmem:[#allocation3 + $0x18] sm:$0xff] %v3370
        %3403 = vst [vmem:[#allocation3 + $0x20] sm:$0xff] %v3371
        %3404 = vst [vmem:[#allocation3 + $0x28] sm:$0xff] %v3372
        %3405 = vst [vmem:[#allocation3 + $0x30] sm:$0xff] %v3373
        %3406 = vst [vmem:[#allocation3 + $0x38] sm:$0xff] %v3374
        %3407 = vst [vmem:[#allocation3 + $0x40] sm:$0xff] %v3375
        %3408 = vst [vmem:[#allocation3 + $0x48] sm:$0xff] %v3376
        %3409 = vst [vmem:[#allocation3 + $0x50] sm:$0xff] %v3377
        %3410 = vst [vmem:[#allocation3 + $0x58] sm:$0xff] %v3378
        %3411 = vst [vmem:[#allocation3 + $0x60] sm:$0xff] %v3379
        %3412 = vst [vmem:[#allocation3 + $0x68] sm:$0xff] %v3380
        %3413 = vst [vmem:[#allocation3 + $0x70] sm:$0xff] %v3381
        %3414 = vst [vmem:[#allocation3 + $0x78] sm:$0xff] %v3382
        %3415 = vst [vmem:[#allocation3 + $0x80] sm:$0xff] %v3383
        %3416 = vst [vmem:[#allocation3 + $0x88] sm:$0xff] %v3384
        %3417 = vst [vmem:[#allocation3 + $0x90] sm:$0xff] %v3385
        %3418 = vst [vmem:[#allocation3 + $0x98] sm:$0xff] %v3386
        %3419 = vst [vmem:[#allocation3 + $0xa0] sm:$0xff] %v3387
        %3420 = vst [vmem:[#allocation3 + $0xa8] sm:$0xff] %v3388
        %3421 = vst [vmem:[#allocation3 + $0xb0] sm:$0xff] %v3389
        %3422 = vst [vmem:[#allocation3 + $0xb8] sm:$0xff] %v3390
        %3423 = vst [vmem:[#allocation3 + $0xc0] sm:$0xff] %v3391
        %3424 = vst [vmem:[#allocation3 + $0xc8] sm:$0xff] %v3392
        %3425 = vst [vmem:[#allocation3 + $0xd0] sm:$0xff] %v3393
        %3426 = vst [vmem:[#allocation3 + $0xd8] sm:$0xff] %v3394
        %3427 = vst [vmem:[#allocation3 + $0xe0] sm:$0xff] %v3395
        %3428 = vst [vmem:[#allocation3 + $0xe8] sm:$0xff] %v3396
        %3429 = vst [vmem:[#allocation3 + $0xf0] sm:$0xff] %v3397
        %3430 = vst [vmem:[#allocation3 + $0xf8] sm:$0xff] %v3398
        %p3431 = scmp.eq.s32.totalorder %s29, 3
        // Predicated region
        $region65: #{tpu_custom_call.1} parent=39 // pred_check
          %p3432 = pneg %p3431
        $region66: #{tpu_custom_call.1} parent=39 // pred_check_branch
          %3434 = sbr.rel (%p3432) target = $region68
        $region67: #{tpu_custom_call.1} parent=39 // pred_region
          %v3435 = vld [vmem:[#allocation3] sm:$0xff]
          %v3436 = vld [vmem:[#allocation3 + $0x8] sm:$0xff]
          %v3437 = vld [vmem:[#allocation3 + $0x10] sm:$0xff]
          %v3438 = vld [vmem:[#allocation3 + $0x18] sm:$0xff]
          %v3439 = vld [vmem:[#allocation3 + $0x20] sm:$0xff]
          %v3440 = vld [vmem:[#allocation3 + $0x28] sm:$0xff]
          %v3441 = vld [vmem:[#allocation3 + $0x30] sm:$0xff]
          %v3442 = vld [vmem:[#allocation3 + $0x38] sm:$0xff]
          %v3443 = vld [vmem:[#allocation3 + $0x40] sm:$0xff]
          %v3444 = vld [vmem:[#allocation3 + $0x48] sm:$0xff]
          %v3445 = vld [vmem:[#allocation3 + $0x50] sm:$0xff]
          %v3446 = vld [vmem:[#allocation3 + $0x58] sm:$0xff]
          %v3447 = vld [vmem:[#allocation3 + $0x60] sm:$0xff]
          %v3448 = vld [vmem:[#allocation3 + $0x68] sm:$0xff]
          %v3449 = vld [vmem:[#allocation3 + $0x70] sm:$0xff]
          %v3450 = vld [vmem:[#allocation3 + $0x78] sm:$0xff]
          %v3451 = vld [vmem:[#allocation3 + $0x80] sm:$0xff]
          %v3452 = vld [vmem:[#allocation3 + $0x88] sm:$0xff]
          %v3453 = vld [vmem:[#allocation3 + $0x90] sm:$0xff]
          %v3454 = vld [vmem:[#allocation3 + $0x98] sm:$0xff]
          %v3455 = vld [vmem:[#allocation3 + $0xa0] sm:$0xff]
          %v3456 = vld [vmem:[#allocation3 + $0xa8] sm:$0xff]
          %v3457 = vld [vmem:[#allocation3 + $0xb0] sm:$0xff]
          %v3458 = vld [vmem:[#allocation3 + $0xb8] sm:$0xff]
          %v3459 = vld [vmem:[#allocation3 + $0xc0] sm:$0xff]
          %v3460 = vld [vmem:[#allocation3 + $0xc8] sm:$0xff]
          %v3461 = vld [vmem:[#allocation3 + $0xd0] sm:$0xff]
          %v3462 = vld [vmem:[#allocation3 + $0xd8] sm:$0xff]
          %v3463 = vld [vmem:[#allocation3 + $0xe0] sm:$0xff]
          %v3464 = vld [vmem:[#allocation3 + $0xe8] sm:$0xff]
          %v3465 = vld [vmem:[#allocation3 + $0xf0] sm:$0xff]
          %v3466 = vld [vmem:[#allocation3 + $0xf8] sm:$0xff]
          %v3467 = vld [vmem:[#allocation9] sm:$0x1]
          %v3469 = vperm.slane %v3467, 0
          %v3471 = vadd.f32 %v3435, %v3469
          %v3472 = vadd.f32 %v3436, %v3469
          %v3473 = vadd.f32 %v3437, %v3469
          %v3474 = vadd.f32 %v3438, %v3469
          %v3475 = vadd.f32 %v3439, %v3469
          %v3476 = vadd.f32 %v3440, %v3469
          %v3477 = vadd.f32 %v3441, %v3469
          %v3478 = vadd.f32 %v3442, %v3469
          %v3479 = vadd.f32 %v3443, %v3469
          %v3480 = vadd.f32 %v3444, %v3469
          %v3481 = vadd.f32 %v3445, %v3469
          %v3482 = vadd.f32 %v3446, %v3469
          %v3483 = vadd.f32 %v3447, %v3469
          %v3484 = vadd.f32 %v3448, %v3469
          %v3485 = vadd.f32 %v3449, %v3469
          %v3486 = vadd.f32 %v3450, %v3469
          %v3487 = vadd.f32 %v3451, %v3469
          %v3488 = vadd.f32 %v3452, %v3469
          %v3489 = vadd.f32 %v3453, %v3469
          %v3490 = vadd.f32 %v3454, %v3469
          %v3491 = vadd.f32 %v3455, %v3469
          %v3492 = vadd.f32 %v3456, %v3469
          %v3493 = vadd.f32 %v3457, %v3469
          %v3494 = vadd.f32 %v3458, %v3469
          %v3495 = vadd.f32 %v3459, %v3469
          %v3496 = vadd.f32 %v3460, %v3469
          %v3497 = vadd.f32 %v3461, %v3469
          %v3498 = vadd.f32 %v3462, %v3469
          %v3499 = vadd.f32 %v3463, %v3469
          %v3500 = vadd.f32 %v3464, %v3469
          %v3501 = vadd.f32 %v3465, %v3469
          %v3502 = vadd.f32 %v3466, %v3469
          %v3503 = vmax.f32 %v3471, 0.0
          %v3504 = vmax.f32 %v3472, 0.0
          %v3505 = vmax.f32 %v3473, 0.0
          %v3506 = vmax.f32 %v3474, 0.0
          %v3507 = vmax.f32 %v3475, 0.0
          %v3508 = vmax.f32 %v3476, 0.0
          %v3509 = vmax.f32 %v3477, 0.0
          %v3510 = vmax.f32 %v3478, 0.0
          %v3511 = vmax.f32 %v3479, 0.0
          %v3512 = vmax.f32 %v3480, 0.0
          %v3513 = vmax.f32 %v3481, 0.0
          %v3514 = vmax.f32 %v3482, 0.0
          %v3515 = vmax.f32 %v3483, 0.0
          %v3516 = vmax.f32 %v3484, 0.0
          %v3517 = vmax.f32 %v3485, 0.0
          %v3518 = vmax.f32 %v3486, 0.0
          %v3519 = vmax.f32 %v3487, 0.0
          %v3520 = vmax.f32 %v3488, 0.0
          %v3521 = vmax.f32 %v3489, 0.0
          %v3522 = vmax.f32 %v3490, 0.0
          %v3523 = vmax.f32 %v3491, 0.0
          %v3524 = vmax.f32 %v3492, 0.0
          %v3525 = vmax.f32 %v3493, 0.0
          %v3526 = vmax.f32 %v3494, 0.0
          %v3527 = vmax.f32 %v3495, 0.0
          %v3528 = vmax.f32 %v3496, 0.0
          %v3529 = vmax.f32 %v3497, 0.0
          %v3530 = vmax.f32 %v3498, 0.0
          %v3531 = vmax.f32 %v3499, 0.0
          %v3532 = vmax.f32 %v3500, 0.0
          %v3533 = vmax.f32 %v3501, 0.0
          %v3534 = vmax.f32 %v3502, 0.0
          %v3535 = vpack.c.bf16 %v3504, %v3503
          %v3536 = vpack.c.bf16 %v3506, %v3505
          %v3537 = vpack.c.bf16 %v3508, %v3507
          %v3538 = vpack.c.bf16 %v3510, %v3509
          %v3539 = vpack.c.bf16 %v3512, %v3511
          %v3540 = vpack.c.bf16 %v3514, %v3513
          %v3541 = vpack.c.bf16 %v3516, %v3515
          %v3542 = vpack.c.bf16 %v3518, %v3517
          %v3543 = vpack.c.bf16 %v3520, %v3519
          %v3544 = vpack.c.bf16 %v3522, %v3521
          %v3545 = vpack.c.bf16 %v3524, %v3523
          %v3546 = vpack.c.bf16 %v3526, %v3525
          %v3547 = vpack.c.bf16 %v3528, %v3527
          %v3548 = vpack.c.bf16 %v3530, %v3529
          %v3549 = vpack.c.bf16 %v3532, %v3531
          %v3550 = vpack.c.bf16 %v3534, %v3533
          %v3551 = vld [vmem:[#allocation10] sm:$0xf]
          %v3552 = vld [vmem:[#allocation10 + $0x4] sm:$0xf]
          %v3553 = vld [vmem:[#allocation10 + $0x8] sm:$0xf]
          %v3554 = vld [vmem:[#allocation10 + $0xc] sm:$0xf]
          %v3555 = vld [vmem:[#allocation10 + $0x10] sm:$0xf]
          %v3556 = vld [vmem:[#allocation10 + $0x14] sm:$0xf]
          %v3557 = vld [vmem:[#allocation10 + $0x18] sm:$0xf]
          %v3558 = vld [vmem:[#allocation10 + $0x1c] sm:$0xf]
          %v3559 = vld [vmem:[#allocation10 + $0x20] sm:$0xf]
          %v3560 = vld [vmem:[#allocation10 + $0x24] sm:$0xf]
          %v3561 = vld [vmem:[#allocation10 + $0x28] sm:$0xf]
          %v3562 = vld [vmem:[#allocation10 + $0x2c] sm:$0xf]
          %v3563 = vld [vmem:[#allocation10 + $0x30] sm:$0xf]
          %v3564 = vld [vmem:[#allocation10 + $0x34] sm:$0xf]
          %v3565 = vld [vmem:[#allocation10 + $0x38] sm:$0xf]
          %v3566 = vld [vmem:[#allocation10 + $0x3c] sm:$0xf]
          %v3567 = vld [vmem:[#allocation12] sm:$0x1]
          %v3569 = vperm.slane %v3567, 0
          %v3587 = vunpack.c.l.b16 %v3551
          %v3588 = vunpack.c.l.b16 %v3552
          %v3589 = vunpack.c.l.b16 %v3553
          %v3590 = vunpack.c.l.b16 %v3554
          %v3591 = vunpack.c.l.b16 %v3555
          %v3592 = vunpack.c.l.b16 %v3556
          %v3593 = vunpack.c.l.b16 %v3557
          %v3594 = vunpack.c.l.b16 %v3558
          %v3595 = vunpack.c.l.b16 %v3559
          %v3596 = vunpack.c.l.b16 %v3560
          %v3597 = vunpack.c.l.b16 %v3561
          %v3598 = vunpack.c.l.b16 %v3562
          %v3599 = vunpack.c.l.b16 %v3563
          %v3600 = vunpack.c.l.b16 %v3564
          %v3601 = vunpack.c.l.b16 %v3565
          %v3602 = vunpack.c.l.b16 %v3566
          %v3603 = vpack.c.b16 %v3588, %v3587
          %v3604 = vpack.c.b16 %v3590, %v3589
          %v3605 = vpack.c.b16 %v3592, %v3591
          %v3606 = vpack.c.b16 %v3594, %v3593
          %v3607 = vpack.c.b16 %v3596, %v3595
          %v3608 = vpack.c.b16 %v3598, %v3597
          %v3609 = vpack.c.b16 %v3600, %v3599
          %v3610 = vpack.c.b16 %v3602, %v3601
          %3619 = vmatpush.bf16.msra.mxu0 %v3610
          %3620 = vmatpush.bf16.msra.mxu0 %v3609
          %3621 = vmatpush.bf16.msra.mxu0 %v3608
          %3622 = vmatpush.bf16.msra.mxu0 %v3607
          %3623 = vmatpush.bf16.msra.mxu0 %v3606
          %3624 = vmatpush.bf16.msra.mxu0 %v3605
          %3625 = vmatpush.bf16.msra.mxu0 %v3604
          %3626 = vmatpush.bf16.msra.mxu0 %v3603
          %3627 = vmatmul.bf16.gmra.mxu0 %v3535
          %v3628 = vpop.f32.mrf.mxu0
          %v3629 = vadd.f32 %v3569, %v3628
          %v3630 = vpop.f32.mrf.mxu0
          %v3631 = vadd.f32 %v3569, %v3630
          %3632 = vmatmul.bf16.gmra.mxu0 %v3536
          %v3633 = vpop.f32.mrf.mxu0
          %v3634 = vadd.f32 %v3569, %v3633
          %v3635 = vpop.f32.mrf.mxu0
          %v3636 = vadd.f32 %v3569, %v3635
          %3637 = vmatmul.bf16.gmra.mxu0 %v3537
          %v3638 = vpop.f32.mrf.mxu0
          %v3639 = vadd.f32 %v3569, %v3638
          %v3640 = vpop.f32.mrf.mxu0
          %v3641 = vadd.f32 %v3569, %v3640
          %3642 = vmatmul.bf16.gmra.mxu0 %v3538
          %v3643 = vpop.f32.mrf.mxu0
          %v3644 = vadd.f32 %v3569, %v3643
          %v3645 = vpop.f32.mrf.mxu0
          %v3646 = vadd.f32 %v3569, %v3645
          %3647 = vmatmul.bf16.gmra.mxu0 %v3539
          %v3648 = vpop.f32.mrf.mxu0
          %v3649 = vadd.f32 %v3569, %v3648
          %v3650 = vpop.f32.mrf.mxu0
          %v3651 = vadd.f32 %v3569, %v3650
          %3652 = vmatmul.bf16.gmra.mxu0 %v3540
          %v3653 = vpop.f32.mrf.mxu0
          %v3654 = vadd.f32 %v3569, %v3653
          %v3655 = vpop.f32.mrf.mxu0
          %v3656 = vadd.f32 %v3569, %v3655
          %3657 = vmatmul.bf16.gmra.mxu0 %v3541
          %v3658 = vpop.f32.mrf.mxu0
          %v3659 = vadd.f32 %v3569, %v3658
          %v3660 = vpop.f32.mrf.mxu0
          %v3661 = vadd.f32 %v3569, %v3660
          %3662 = vmatmul.bf16.gmra.mxu0 %v3542
          %v3663 = vpop.f32.mrf.mxu0
          %v3664 = vadd.f32 %v3569, %v3663
          %v3665 = vpop.f32.mrf.mxu0
          %v3666 = vadd.f32 %v3569, %v3665
          %3667 = vmatmul.bf16.gmra.mxu0 %v3543
          %v3668 = vpop.f32.mrf.mxu0
          %v3669 = vadd.f32 %v3569, %v3668
          %v3670 = vpop.f32.mrf.mxu0
          %v3671 = vadd.f32 %v3569, %v3670
          %3672 = vmatmul.bf16.gmra.mxu0 %v3544
          %v3673 = vpop.f32.mrf.mxu0
          %v3674 = vadd.f32 %v3569, %v3673
          %v3675 = vpop.f32.mrf.mxu0
          %v3676 = vadd.f32 %v3569, %v3675
          %3677 = vmatmul.bf16.gmra.mxu0 %v3545
          %v3678 = vpop.f32.mrf.mxu0
          %v3679 = vadd.f32 %v3569, %v3678
          %v3680 = vpop.f32.mrf.mxu0
          %v3681 = vadd.f32 %v3569, %v3680
          %3682 = vmatmul.bf16.gmra.mxu0 %v3546
          %v3683 = vpop.f32.mrf.mxu0
          %v3684 = vadd.f32 %v3569, %v3683
          %v3685 = vpop.f32.mrf.mxu0
          %v3686 = vadd.f32 %v3569, %v3685
          %3687 = vmatmul.bf16.gmra.mxu0 %v3547
          %v3688 = vpop.f32.mrf.mxu0
          %v3689 = vadd.f32 %v3569, %v3688
          %v3690 = vpop.f32.mrf.mxu0
          %v3691 = vadd.f32 %v3569, %v3690
          %3692 = vmatmul.bf16.gmra.mxu0 %v3548
          %v3693 = vpop.f32.mrf.mxu0
          %v3694 = vadd.f32 %v3569, %v3693
          %v3695 = vpop.f32.mrf.mxu0
          %v3696 = vadd.f32 %v3569, %v3695
          %3697 = vmatmul.bf16.gmra.mxu0 %v3549
          %v3698 = vpop.f32.mrf.mxu0
          %v3699 = vadd.f32 %v3569, %v3698
          %v3700 = vpop.f32.mrf.mxu0
          %v3701 = vadd.f32 %v3569, %v3700
          %3702 = vmatmul.bf16.gmra.mxu0 %v3550
          %v3703 = vpop.f32.mrf.mxu0
          %v3704 = vadd.f32 %v3569, %v3703
          %v3705 = vpop.f32.mrf.mxu0
          %v3706 = vadd.f32 %v3569, %v3705
          %3707 = vdwg.mxu0
          %3708 = vst [vmem:[%s321] sm:$0xff] %v3629
          %3709 = vst [vmem:[%s321 + $0x8] sm:$0xff] %v3631
          %3710 = vst [vmem:[%s321 + $0x10] sm:$0xff] %v3634
          %3711 = vst [vmem:[%s321 + $0x18] sm:$0xff] %v3636
          %3712 = vst [vmem:[%s321 + $0x20] sm:$0xff] %v3639
          %3713 = vst [vmem:[%s321 + $0x28] sm:$0xff] %v3641
          %3714 = vst [vmem:[%s321 + $0x30] sm:$0xff] %v3644
          %3715 = vst [vmem:[%s321 + $0x38] sm:$0xff] %v3646
          %3716 = vst [vmem:[%s321 + $0x40] sm:$0xff] %v3649
          %3717 = vst [vmem:[%s321 + $0x48] sm:$0xff] %v3651
          %3718 = vst [vmem:[%s321 + $0x50] sm:$0xff] %v3654
          %3719 = vst [vmem:[%s321 + $0x58] sm:$0xff] %v3656
          %3720 = vst [vmem:[%s321 + $0x60] sm:$0xff] %v3659
          %3721 = vst [vmem:[%s321 + $0x68] sm:$0xff] %v3661
          %3722 = vst [vmem:[%s321 + $0x70] sm:$0xff] %v3664
          %3723 = vst [vmem:[%s321 + $0x78] sm:$0xff] %v3666
          %3724 = vst [vmem:[%s321 + $0x80] sm:$0xff] %v3669
          %3725 = vst [vmem:[%s321 + $0x88] sm:$0xff] %v3671
          %3726 = vst [vmem:[%s321 + $0x90] sm:$0xff] %v3674
          %3727 = vst [vmem:[%s321 + $0x98] sm:$0xff] %v3676
          %3728 = vst [vmem:[%s321 + $0xa0] sm:$0xff] %v3679
          %3729 = vst [vmem:[%s321 + $0xa8] sm:$0xff] %v3681
          %3730 = vst [vmem:[%s321 + $0xb0] sm:$0xff] %v3684
          %3731 = vst [vmem:[%s321 + $0xb8] sm:$0xff] %v3686
          %3732 = vst [vmem:[%s321 + $0xc0] sm:$0xff] %v3689
          %3733 = vst [vmem:[%s321 + $0xc8] sm:$0xff] %v3691
          %3734 = vst [vmem:[%s321 + $0xd0] sm:$0xff] %v3694
          %3735 = vst [vmem:[%s321 + $0xd8] sm:$0xff] %v3696
          %3736 = vst [vmem:[%s321 + $0xe0] sm:$0xff] %v3699
          %3737 = vst [vmem:[%s321 + $0xe8] sm:$0xff] %v3701
          %3738 = vst [vmem:[%s321 + $0xf0] sm:$0xff] %v3704
          %3739 = vst [vmem:[%s321 + $0xf8] sm:$0xff] %v3706
        $region68: #{tpu_custom_call.1} parent=39 // pred_fallthru
          _
        %s3740 = sand.u32 %s156, 1
        %s3741 = scalar_lea.sflag [#allocation6], %s3740
        %s3742 = sand.u32 %s156, 1
        %s3743 = smul.addr %s3742, 256
        %s3744 = scalar_lea.vmem [#allocation13], %s3743
        // Predicated region
        $region69: #{tpu_custom_call.1} parent=39 // pred_check
          %p3745 = pneg %p166
        $region70: #{tpu_custom_call.1} parent=39 // pred_check_branch
          %3747 = sbr.rel (%p3745) target = $region72
        $region71: #{tpu_custom_call.1} parent=39 // pred_region
          %3749 = vsyncadd %s3741, 0
          %s3750 = smul.addr %s28, 32
          %s3751 = smul.addr %s3750, 8
          %s3752 = scalar_lea.hbm %s5, %s3751
          %s3753 = sshll.u32 %s3744, 4
          %s3754 = int_to_ptr.vmem [resolvable:$true] %s3753
          %s3755 = sshll.u32 %s3752, 4
          %s3756 = int_to_ptr.hbm [resolvable:$true] %s3755
          %3761 = dma.vmem_to_hbm [thread:$0]  %s3754, 4096, %s3756, %s3741, 128, 128, 8
        $region72: #{tpu_custom_call.1} parent=39 // pred_fallthru
          _
      $region40: #{tpu_custom_call.1} parent=5 // pred_fallthru
        _
      %p3762 = scmp.le.s32.totalorder 2, %s19
      // Predicated region
      $region73: #{tpu_custom_call.1} parent=5 // pred_check
        %p3763 = pneg %p3762
      $region74: #{tpu_custom_call.1} parent=5 // pred_check_branch
        %3765 = sbr.rel (%p3763) target = $region76
      $region75: #{tpu_custom_call.1} parent=5 // pred_region
        %s3766 = ssub.s32 %s19, 2
        // Predicated region
        $region77: #{tpu_custom_call.1} parent=75 // pred_check
          %p3767 = pneg %p172
        $region78: #{tpu_custom_call.1} parent=75 // pred_check_branch
          %3769 = sbr.rel (%p3767) target = $region80
        $region79: #{tpu_custom_call.1} parent=75 // pred_region
          %s3770 = sand.u32 %s157, 1
          %s3771 = scalar_lea.sflag [#allocation6], %s3770
          %s3772 = sand.u32 %s157, 1
          %s3773 = smul.addr %s3772, 256
          %s3774 = scalar_lea.vmem [#allocation13], %s3773
          %3776 = dma.done %s3771, 4096
        $region80: #{tpu_custom_call.1} parent=75 // pred_fallthru
          _
      $region76: #{tpu_custom_call.1} parent=5 // pred_fallthru
        _
    $region6: #{tpu_custom_call.1} parent=1 // loop_footer
      %s23 = sadd.s32 1, %s19
    $region7: #{tpu_custom_call.1} parent=1 // loop_footer_branch
      %18 = sbr.rel target = $region3
    $region8: #{tpu_custom_call.1} parent=1 // loop_exit
      _
    %3777 = vsyncpa [#allocation5], 1
    %s3778 = scalar_lea.sflag [#allocation5], 1
    %3779 = vsyncpa %s3778, 1
    %3780 = vsyncpa [#allocation8], 1
    %3781 = vsyncpa [#allocation11], 1
    %3782 = vsyncpa [#allocation6], 1
    %s3783 = scalar_lea.sflag [#allocation6], 1
    %3784 = vsyncpa %s3783, 1

</llo_original>
